<compile_context>
chip_gen: v5e
topology: v5e:2x2
jax: 0.10.0
libtpu: 0.0.40
codegen_flags: <defaults>
</compile_context>

<pallas_src>
import jax
import jax.numpy as jnp
from jax.experimental import pallas as pl
from jax.experimental.pallas import tpu as pltpu

EPS = 1e-5   # InstanceNorm2d default
LANE = 128


def _vmem_limit_bytes(H, W, Cp):
    """Scoped-VMEM limit from the actual per-sample working set (double-buffered
    in/out blocks + weights + scratch + peak kernel temporaries)."""
    f32, bf16 = 4, 2
    in_blk = (H + 2) * (W + 2) * Cp * f32
    out_blk = H * W * Cp * f32
    weights = 2 * 3 * 3 * Cp * Cp * bf16
    scratch = (H + 2) * W * 3 * Cp * bf16
    temps = ((H + 2) * (W + 2) * Cp * bf16      # one-shot bf16 cast of input
             + (H + 2) * W * 3 * Cp * bf16      # folded conv1 operand
             + 3 * H * W * Cp * f32             # accumulator + normalize temps
             + H * W * Cp * f32)                # residual slab
    need = 2 * in_blk + 2 * out_blk + 2 * weights + scratch + temps
    need = need + need // 4 + (4 << 20)         # headroom for compiler temps
    try:
        cap = pltpu.get_tpu_info().vmem_capacity_bytes
        return int(min(max(need, 32 << 20), cap - (8 << 20)))
    except Exception:
        # No chip info: do NOT clamp to a 64 MiB assumption; just ask for what
        # the working set needs (compiler rejects cleanly if it can't fit).
        return int(max(need, 32 << 20))


def _resnet_block_kernel(xp_ref, w1_ref, w2_ref, out_ref, ycat_ref):
    # xp_ref  : (H+2, W+2, Cp)  reflection-padded input, one sample (f32)
    # w*_ref  : (3, 3*Cp, Cp)   conv weights, [ky][kx*Cp + ci][co], bf16
    # out_ref : (H, W, Cp)
    # ycat_ref: (H+2, W, 3*Cp)  bf16 scratch: conv2's folded (dx-concatenated)
    #                           operand == reflection-padded intermediate.
    Hp, Wp, Cp = xp_ref.shape
    H, W = Hp - 2, Wp - 2
    K3 = 3 * Cp
    inv_n = 1.0 / (H * W)

    def conv3x3(rows, w_ref):
        # rows(dy) -> (H, W, 3*Cp) bf16 slab (layout-preserving reshape since
        # the second-minor dim is exactly W).  3 MXU matmuls with K=3*Cp into
        # a single f32 accumulator; halo columns are never computed.
        acc = jnp.dot(rows(0).reshape(H * W, K3), w_ref[0],
                      preferred_element_type=jnp.float32)
        for dy in (1, 2):
            acc = acc + jnp.dot(rows(dy).reshape(H * W, K3), w_ref[dy],
                                preferred_element_type=jnp.float32)
        return acc                                           # (H*W, Cp) f32

    def in_stats(y):
        # Fused sum / sum-of-squares statistics (biased variance, clamped).
        # Note: single-pass E[x^2]-E[x]^2; slightly less accurate than the
        # two-pass reference but inputs here are conv outputs of normalized
        # activations, so it is well within tolerance.
        mean = jnp.sum(y, axis=0, keepdims=True) * inv_n
        ex2 = jnp.sum(y * y, axis=0, keepdims=True) * inv_n
        var = jnp.maximum(ex2 - mean * mean, 0.0)
        return mean, jax.lax.rsqrt(var + EPS)

    # ---- conv1: cast input to bf16 once, build the folded operand once
    # (only 2 shifted sublane slices per sample).
    xb = xp_ref[...].astype(jnp.bfloat16)                         # (Hp, Wp, Cp)
    xcat = jnp.concatenate(
        [xb[:, 0:W], xb[:, 1:W + 1], xb[:, 2:W + 2]], axis=-1)    # (Hp, W, 3Cp)
    y = conv3x3(lambda dy: xcat[dy:dy + H], w1_ref)
    # (conv bias omitted: cancelled exactly by the affine-free IN that follows)

    # ---- fused epilogue: IN normalize + ReLU + bf16 cast + reflect-column
    # construction, stored channel-block-wise straight into conv2's operand.
    mean1, rstd1 = in_stats(y)
    y1 = jnp.maximum((y - mean1) * rstd1, 0.0).astype(jnp.bfloat16)
    y1 = y1.reshape(H, W, Cp)
    # TODO(synk): use_dropout=True would need pltpu.prng_* Bernoulli masking here.
    ycat_ref[1:H + 1, :, Cp:2 * Cp] = y1                                   # dx=1
    ycat_ref[1:H + 1, :, 0:Cp] = jnp.concatenate(                          # dx=0
        [y1[:, 1:2], y1[:, 0:W - 1]], axis=1)
    ycat_ref[1:H + 1, :, 2 * Cp:3 * Cp] = jnp.concatenate(                 # dx=2
        [y1[:, 1:W], y1[:, W - 2:W - 1]], axis=1)
    ycat_ref[0:1] = ycat_ref[2:3]                    # reflected top halo row
    ycat_ref[H + 1:H + 2] = ycat_ref[H - 1:H]        # reflected bottom halo row

    # ---- conv2: the scratch already is the folded operand (no shifts).
    y2 = conv3x3(lambda dy: ycat_ref[dy:dy + H], w2_ref)
    mean2, rstd2 = in_stats(y2)

    # Residual from the interior of the padded input (no extra x DMA), kept in
    # f32.  (v5e micro-opt would reuse the bf16 dx=1 slab; skipped for accuracy.)
    resid = xp_ref[1:H + 1, 1:W + 1, :].reshape(H * W, Cp)
    out = resid + (y2 - mean2) * rstd2
    out_ref[...] = out.reshape(H, W, Cp).astype(out_ref.dtype)


def resnet_block_forward(x_nchw, w1_oihw, b1, w2_oihw, b2):
    """x_nchw: (N, C, H, W) f32; conv weights in PyTorch OIHW layout.

    b1/b2 are accepted for interface parity but unused: with
    InstanceNorm2d(affine=False) directly after each conv, the per-channel bias
    is removed exactly by the mean subtraction.
    """
    del b1, b2

    x = jnp.transpose(x_nchw, (0, 2, 3, 1))          # NCHW -> NHWC
    N, H, W, C = x.shape

    # Lane-density: pad channels up to a multiple of 128 (no-op at real p2p C=256).
    Cp = ((C + LANE - 1) // LANE) * LANE

    def prep_w(w_oihw):
        w = jnp.transpose(w_oihw, (2, 3, 1, 0))      # OIHW -> HWIO
        if Cp != C:
            w = jnp.pad(w, ((0, 0), (0, 0), (0, Cp - C), (0, Cp - C)))
        # Fold the kx taps into the contracting dim: (3, 3, Cp, Cp) -> (3, 3Cp, Cp)
        return w.reshape(3, 3 * Cp, Cp).astype(jnp.bfloat16)

    w1 = prep_w(w1_oihw)
    w2 = prep_w(w2_oihw)

    if Cp != C:
        x = jnp.pad(x, ((0, 0), (0, 0), (0, 0), (0, Cp - C)))
    # Reflection padding of the *input* is cheap glue; the intermediate's
    # reflection pad happens inside the kernel.
    xp = jnp.pad(x, ((0, 0), (1, 1), (1, 1), (0, 0)), mode="reflect")

    flops = N * 36 * H * W * Cp * Cp                 # 2 convs x 3 matmuls, K=3Cp
    bytes_accessed = xp.size * 4 + N * H * W * Cp * 4 + (w1.size + w2.size) * 2

    out = pl.pallas_call(
        _resnet_block_kernel,
        out_shape=jax.ShapeDtypeStruct((N, H, W, Cp), x.dtype),
        grid=(N,),
        in_specs=[
            pl.BlockSpec((None, H + 2, W + 2, Cp), lambda n: (n, 0, 0, 0)),
            # Weights are grid-invariant (constant index map).
            # TODO(synk): pipeline_mode=pl.Buffered(1) would drop their second
            # buffer (~1.1 MiB each at C=256 on v7x) once buffer_count=1 is
            # stable across jax releases.
            pl.BlockSpec((3, 3 * Cp, Cp), lambda n: (0, 0, 0)),
            pl.BlockSpec((3, 3 * Cp, Cp), lambda n: (0, 0, 0)),
        ],
        out_specs=pl.BlockSpec((None, H, W, Cp), lambda n: (n, 0, 0, 0)),
        scratch_shapes=[pltpu.VMEM((H + 2, W, 3 * Cp), jnp.bfloat16)],
        compiler_params=pltpu.CompilerParams(
            dimension_semantics=("parallel",),
            vmem_limit_bytes=_vmem_limit_bytes(H, W, Cp)),
        cost_estimate=pl.CostEstimate(
            flops=flops, transcendentals=0, bytes_accessed=bytes_accessed),
    )(xp, w1, w2)

    out = out[..., :C]                               # drop lane padding
    return jnp.transpose(out, (0, 3, 1, 2))          # NHWC -> NCHW


def _reference_forward(x, w1, b1, w2, b2):
    """Pure-JAX reference (NCHW, f32, with biases) mirroring the PyTorch module."""
    def conv(xin, w, b):
        xpad = jnp.pad(xin, ((0, 0), (0, 0), (1, 1), (1, 1)), mode="reflect")
        y = jax.lax.conv_general_dilated(
            xpad, w, window_strides=(1, 1), padding="VALID",
            dimension_numbers=("NCHW", "OIHW", "NCHW"))
        return y + b.reshape(1, -1, 1, 1)

    def inorm(y):
        m = jnp.mean(y, axis=(2, 3), keepdims=True)
        v = jnp.mean((y - m) ** 2, axis=(2, 3), keepdims=True)
        return (y - m) * jax.lax.rsqrt(v + EPS)

    y = jnp.maximum(inorm(conv(x, w1, b1)), 0.0)
    y = inorm(conv(y, w2, b2))
    return x + y


if __name__ == "__main__":
    N, C, H, W = 2, 8, 16, 16
    key = jax.random.PRNGKey(0)
    kx, kw1, kb1, kw2, kb2 = jax.random.split(key, 5)

    x = jax.random.normal(kx, (N, C, H, W), dtype=jnp.float32)
    # Conv2d(dim, dim, kernel_size=3, bias=True): weight (C, C, 3, 3), bias (C,)
    w1 = jax.random.normal(kw1, (C, C, 3, 3), dtype=jnp.float32) * 0.1
    b1 = jax.random.normal(kb1, (C,), dtype=jnp.float32) * 0.1
    w2 = jax.random.normal(kw2, (C, C, 3, 3), dtype=jnp.float32) * 0.1
    b2 = jax.random.normal(kb2, (C,), dtype=jnp.float32) * 0.1

    out = jax.jit(resnet_block_forward)(x, w1, b1, w2, b2)
    out = jax.block_until_ready(out)

    ref = _reference_forward(x, w1, b1, w2, b2)
    assert out.shape == (N, C, H, W)
    max_err = jnp.max(jnp.abs(out - ref))
    # bf16 MXU operands => slightly relaxed tolerance vs the f32 PyTorch conv.
    assert jnp.allclose(out, ref, atol=3e-2, rtol=3e-2), f"max abs err {max_err}"

    print("KERNEL_OK")
</pallas_src>

<mosaic_0001>
module attributes {stable_mosaic.version = 11 : i64} {
  func.func @_resnet_block_kernel(%arg0: i32, %arg1: memref<1x18x18x128xf32, #tpu.memory_space<vmem>>, %arg2: memref<3x384x128xbf16, #tpu.memory_space<vmem>>, %arg3: memref<3x384x128xbf16, #tpu.memory_space<vmem>>, %arg4: memref<1x16x16x128xf32, #tpu.memory_space<vmem>>, %arg5: memref<18x16x384xbf16, #tpu.memory_space<vmem>>) attributes {dimension_semantics = [#tpu.dimension_semantics<parallel>], iteration_bounds = array<i64: 2>, scalar_prefetch = 0 : i64, scratch_operands = 1 : i64, tpu.core_type = #tpu.core_type<tc>, window_params = [{transform_indices = @transform_0, window_bounds = array<i64: 1, 18, 18, 128>}, {pipeline_mode = #tpu.pipeline_mode<synchronous>, transform_indices = @transform_1, window_bounds = array<i64: 3, 384, 128>}, {pipeline_mode = #tpu.pipeline_mode<synchronous>, transform_indices = @transform_2, window_bounds = array<i64: 3, 384, 128>}, {transform_indices = @transform_3, window_bounds = array<i64: 1, 16, 16, 128>}]} {
    %c0 = arith.constant 0 : index
    %c0_0 = arith.constant 0 : index
    %c0_1 = arith.constant 0 : index
    %c0_2 = arith.constant 0 : index
    %0 = vector.load %arg1[%c0, %c0_0, %c0_1, %c0_2] : memref<1x18x18x128xf32, #tpu.memory_space<vmem>>, vector<1x18x18x128xf32>
    %1 = vector.shape_cast %0 : vector<1x18x18x128xf32> to vector<18x18x128xf32>
    %2 = arith.truncf %1 : vector<18x18x128xf32> to vector<18x18x128xbf16>
    %3 = vector.extract_strided_slice %2 {offsets = [0, 0, 0], sizes = [18, 16, 128], strides = [1, 1, 1]} : vector<18x18x128xbf16> to vector<18x16x128xbf16>
    %4 = vector.extract_strided_slice %2 {offsets = [0, 1, 0], sizes = [18, 16, 128], strides = [1, 1, 1]} : vector<18x18x128xbf16> to vector<18x16x128xbf16>
    %5 = vector.extract_strided_slice %2 {offsets = [0, 2, 0], sizes = [18, 16, 128], strides = [1, 1, 1]} : vector<18x18x128xbf16> to vector<18x16x128xbf16>
    %6 = tpu.concatenate %3, %4, %5 in 2 : vector<18x16x128xbf16>, vector<18x16x128xbf16>, vector<18x16x128xbf16> -> vector<18x16x384xbf16>
    %7 = vector.extract_strided_slice %6 {offsets = [0, 0, 0], sizes = [16, 16, 384], strides = [1, 1, 1]} : vector<18x16x384xbf16> to vector<16x16x384xbf16>
    %8 = vector.shape_cast %7 : vector<16x16x384xbf16> to vector<256x384xbf16>
    %c0_3 = arith.constant 0 : index
    %c0_4 = arith.constant 0 : index
    %c0_5 = arith.constant 0 : index
    %9 = vector.load %arg2[%c0_3, %c0_4, %c0_5] : memref<3x384x128xbf16, #tpu.memory_space<vmem>>, vector<1x384x128xbf16>
    %10 = vector.shape_cast %9 : vector<1x384x128xbf16> to vector<384x128xbf16>
    %cst = arith.constant dense<0.000000e+00> : vector<256x128xf32>
    %11 = tpu.matmul %8, %10, %cst {dimension_numbers = #tpu.dot_dimension_numbers<[1], [0], [0], [1], [0, 0, 1, 1], [], []>} : vector<256x384xbf16>, vector<384x128xbf16>, vector<256x128xf32> -> vector<256x128xf32>
    %12 = vector.extract_strided_slice %6 {offsets = [1, 0, 0], sizes = [16, 16, 384], strides = [1, 1, 1]} : vector<18x16x384xbf16> to vector<16x16x384xbf16>
    %13 = vector.shape_cast %12 : vector<16x16x384xbf16> to vector<256x384xbf16>
    %c1 = arith.constant 1 : index
    %c0_6 = arith.constant 0 : index
    %c0_7 = arith.constant 0 : index
    %14 = vector.load %arg2[%c1, %c0_6, %c0_7] : memref<3x384x128xbf16, #tpu.memory_space<vmem>>, vector<1x384x128xbf16>
    %15 = vector.shape_cast %14 : vector<1x384x128xbf16> to vector<384x128xbf16>
    %cst_8 = arith.constant dense<0.000000e+00> : vector<256x128xf32>
    %16 = tpu.matmul %13, %15, %cst_8 {dimension_numbers = #tpu.dot_dimension_numbers<[1], [0], [0], [1], [0, 0, 1, 1], [], []>} : vector<256x384xbf16>, vector<384x128xbf16>, vector<256x128xf32> -> vector<256x128xf32>
    %17 = arith.addf %11, %16 : vector<256x128xf32>
    %18 = vector.extract_strided_slice %6 {offsets = [2, 0, 0], sizes = [16, 16, 384], strides = [1, 1, 1]} : vector<18x16x384xbf16> to vector<16x16x384xbf16>
    %19 = vector.shape_cast %18 : vector<16x16x384xbf16> to vector<256x384xbf16>
    %c2 = arith.constant 2 : index
    %c0_9 = arith.constant 0 : index
    %c0_10 = arith.constant 0 : index
    %20 = vector.load %arg2[%c2, %c0_9, %c0_10] : memref<3x384x128xbf16, #tpu.memory_space<vmem>>, vector<1x384x128xbf16>
    %21 = vector.shape_cast %20 : vector<1x384x128xbf16> to vector<384x128xbf16>
    %cst_11 = arith.constant dense<0.000000e+00> : vector<256x128xf32>
    %22 = tpu.matmul %19, %21, %cst_11 {dimension_numbers = #tpu.dot_dimension_numbers<[1], [0], [0], [1], [0, 0, 1, 1], [], []>} : vector<256x384xbf16>, vector<384x128xbf16>, vector<256x128xf32> -> vector<256x128xf32>
    %23 = arith.addf %17, %22 : vector<256x128xf32>
    %cst_12 = arith.constant dense<0.000000e+00> : vector<128xf32>
    %24 = vector.multi_reduction <add>, %23, %cst_12 [0] : vector<256x128xf32> to vector<128xf32>
    %25 = vector.shape_cast %24 : vector<128xf32> to vector<1x128xf32>
    %cst_13 = arith.constant 3.906250e-03 : f32
    %26 = vector.broadcast %cst_13 : f32 to vector<1x128xf32>
    %27 = arith.mulf %25, %26 : vector<1x128xf32>
    %28 = arith.mulf %23, %23 : vector<256x128xf32>
    %cst_14 = arith.constant dense<0.000000e+00> : vector<128xf32>
    %29 = vector.multi_reduction <add>, %28, %cst_14 [0] : vector<256x128xf32> to vector<128xf32>
    %30 = vector.shape_cast %29 : vector<128xf32> to vector<1x128xf32>
    %cst_15 = arith.constant 3.906250e-03 : f32
    %31 = vector.broadcast %cst_15 : f32 to vector<1x128xf32>
    %32 = arith.mulf %30, %31 : vector<1x128xf32>
    %33 = arith.mulf %27, %27 : vector<1x128xf32>
    %34 = arith.subf %32, %33 : vector<1x128xf32>
    %cst_16 = arith.constant 0.000000e+00 : f32
    %35 = vector.broadcast %cst_16 : f32 to vector<1x128xf32>
    %36 = arith.maximumf %34, %35 : vector<1x128xf32>
    %cst_17 = arith.constant 9.99999974E-6 : f32
    %37 = vector.broadcast %cst_17 : f32 to vector<1x128xf32>
    %38 = arith.addf %36, %37 : vector<1x128xf32>
    %39 = math.rsqrt %38 : vector<1x128xf32>
    %40 = vector.broadcast %27 : vector<1x128xf32> to vector<256x128xf32>
    %41 = arith.subf %23, %40 : vector<256x128xf32>
    %42 = vector.broadcast %39 : vector<1x128xf32> to vector<256x128xf32>
    %43 = arith.mulf %41, %42 : vector<256x128xf32>
    %cst_18 = arith.constant 0.000000e+00 : f32
    %44 = vector.broadcast %cst_18 : f32 to vector<256x128xf32>
    %45 = arith.maximumf %43, %44 : vector<256x128xf32>
    %46 = arith.truncf %45 : vector<256x128xf32> to vector<256x128xbf16>
    %47 = vector.shape_cast %46 : vector<256x128xbf16> to vector<16x16x128xbf16>
    %c1_19 = arith.constant 1 : index
    %c0_20 = arith.constant 0 : index
    %c128 = arith.constant 128 : index
    %48 = vector.load %arg5[%c1_19, %c0_20, %c128] : memref<18x16x384xbf16, #tpu.memory_space<vmem>>, vector<16x16x128xbf16>
    tpu.vector_store %arg5[%c1_19, %c0_20, %c128], %47 {strides = array<i32>} : memref<18x16x384xbf16, #tpu.memory_space<vmem>>, vector<16x16x128xbf16>,
    %49 = vector.extract_strided_slice %47 {offsets = [0, 1, 0], sizes = [16, 1, 128], strides = [1, 1, 1]} : vector<16x16x128xbf16> to vector<16x1x128xbf16>
    %50 = vector.extract_strided_slice %47 {offsets = [0, 0, 0], sizes = [16, 15, 128], strides = [1, 1, 1]} : vector<16x16x128xbf16> to vector<16x15x128xbf16>
    %51 = tpu.concatenate %49, %50 in 1 : vector<16x1x128xbf16>, vector<16x15x128xbf16> -> vector<16x16x128xbf16>
    %c1_21 = arith.constant 1 : index
    %c0_22 = arith.constant 0 : index
    %c0_23 = arith.constant 0 : index
    %52 = vector.load %arg5[%c1_21, %c0_22, %c0_23] : memref<18x16x384xbf16, #tpu.memory_space<vmem>>, vector<16x16x128xbf16>
    tpu.vector_store %arg5[%c1_21, %c0_22, %c0_23], %51 {strides = array<i32>} : memref<18x16x384xbf16, #tpu.memory_space<vmem>>, vector<16x16x128xbf16>,
    %53 = vector.extract_strided_slice %47 {offsets = [0, 1, 0], sizes = [16, 15, 128], strides = [1, 1, 1]} : vector<16x16x128xbf16> to vector<16x15x128xbf16>
    %54 = vector.extract_strided_slice %47 {offsets = [0, 14, 0], sizes = [16, 1, 128], strides = [1, 1, 1]} : vector<16x16x128xbf16> to vector<16x1x128xbf16>
    %55 = tpu.concatenate %53, %54 in 1 : vector<16x15x128xbf16>, vector<16x1x128xbf16> -> vector<16x16x128xbf16>
    %c1_24 = arith.constant 1 : index
    %c0_25 = arith.constant 0 : index
    %c256 = arith.constant 256 : index
    %56 = vector.load %arg5[%c1_24, %c0_25, %c256] : memref<18x16x384xbf16, #tpu.memory_space<vmem>>, vector<16x16x128xbf16>
    tpu.vector_store %arg5[%c1_24, %c0_25, %c256], %55 {strides = array<i32>} : memref<18x16x384xbf16, #tpu.memory_space<vmem>>, vector<16x16x128xbf16>,
    %c2_26 = arith.constant 2 : index
    %c0_27 = arith.constant 0 : index
    %c0_28 = arith.constant 0 : index
    %57 = vector.load %arg5[%c2_26, %c0_27, %c0_28] : memref<18x16x384xbf16, #tpu.memory_space<vmem>>, vector<1x16x384xbf16>
    %c0_29 = arith.constant 0 : index
    %c0_30 = arith.constant 0 : index
    %c0_31 = arith.constant 0 : index
    %58 = vector.load %arg5[%c0_29, %c0_30, %c0_31] : memref<18x16x384xbf16, #tpu.memory_space<vmem>>, vector<1x16x384xbf16>
    tpu.vector_store %arg5[%c0_29, %c0_30, %c0_31], %57 {strides = array<i32>} : memref<18x16x384xbf16, #tpu.memory_space<vmem>>, vector<1x16x384xbf16>,
    %c15 = arith.constant 15 : index
    %c0_32 = arith.constant 0 : index
    %c0_33 = arith.constant 0 : index
    %59 = vector.load %arg5[%c15, %c0_32, %c0_33] : memref<18x16x384xbf16, #tpu.memory_space<vmem>>, vector<1x16x384xbf16>
    %c17 = arith.constant 17 : index
    %c0_34 = arith.constant 0 : index
    %c0_35 = arith.constant 0 : index
    %60 = vector.load %arg5[%c17, %c0_34, %c0_35] : memref<18x16x384xbf16, #tpu.memory_space<vmem>>, vector<1x16x384xbf16>
    tpu.vector_store %arg5[%c17, %c0_34, %c0_35], %59 {strides = array<i32>} : memref<18x16x384xbf16, #tpu.memory_space<vmem>>, vector<1x16x384xbf16>,
    %c0_36 = arith.constant 0 : index
    %c0_37 = arith.constant 0 : index
    %c0_38 = arith.constant 0 : index
    %61 = vector.load %arg5[%c0_36, %c0_37, %c0_38] : memref<18x16x384xbf16, #tpu.memory_space<vmem>>, vector<16x16x384xbf16>
    %62 = vector.shape_cast %61 : vector<16x16x384xbf16> to vector<256x384xbf16>
    %c0_39 = arith.constant 0 : index
    %c0_40 = arith.constant 0 : index
    %c0_41 = arith.constant 0 : index
    %63 = vector.load %arg3[%c0_39, %c0_40, %c0_41] : memref<3x384x128xbf16, #tpu.memory_space<vmem>>, vector<1x384x128xbf16>
    %64 = vector.shape_cast %63 : vector<1x384x128xbf16> to vector<384x128xbf16>
    %cst_42 = arith.constant dense<0.000000e+00> : vector<256x128xf32>
    %65 = tpu.matmul %62, %64, %cst_42 {dimension_numbers = #tpu.dot_dimension_numbers<[1], [0], [0], [1], [0, 0, 1, 1], [], []>} : vector<256x384xbf16>, vector<384x128xbf16>, vector<256x128xf32> -> vector<256x128xf32>
    %c1_43 = arith.constant 1 : index
    %c0_44 = arith.constant 0 : index
    %c0_45 = arith.constant 0 : index
    %66 = vector.load %arg5[%c1_43, %c0_44, %c0_45] : memref<18x16x384xbf16, #tpu.memory_space<vmem>>, vector<16x16x384xbf16>
    %67 = vector.shape_cast %66 : vector<16x16x384xbf16> to vector<256x384xbf16>
    %c1_46 = arith.constant 1 : index
    %c0_47 = arith.constant 0 : index
    %c0_48 = arith.constant 0 : index
    %68 = vector.load %arg3[%c1_46, %c0_47, %c0_48] : memref<3x384x128xbf16, #tpu.memory_space<vmem>>, vector<1x384x128xbf16>
    %69 = vector.shape_cast %68 : vector<1x384x128xbf16> to vector<384x128xbf16>
    %cst_49 = arith.constant dense<0.000000e+00> : vector<256x128xf32>
    %70 = tpu.matmul %67, %69, %cst_49 {dimension_numbers = #tpu.dot_dimension_numbers<[1], [0], [0], [1], [0, 0, 1, 1], [], []>} : vector<256x384xbf16>, vector<384x128xbf16>, vector<256x128xf32> -> vector<256x128xf32>
    %71 = arith.addf %65, %70 : vector<256x128xf32>
    %c2_50 = arith.constant 2 : index
    %c0_51 = arith.constant 0 : index
    %c0_52 = arith.constant 0 : index
    %72 = vector.load %arg5[%c2_50, %c0_51, %c0_52] : memref<18x16x384xbf16, #tpu.memory_space<vmem>>, vector<16x16x384xbf16>
    %73 = vector.shape_cast %72 : vector<16x16x384xbf16> to vector<256x384xbf16>
    %c2_53 = arith.constant 2 : index
    %c0_54 = arith.constant 0 : index
    %c0_55 = arith.constant 0 : index
    %74 = vector.load %arg3[%c2_53, %c0_54, %c0_55] : memref<3x384x128xbf16, #tpu.memory_space<vmem>>, vector<1x384x128xbf16>
    %75 = vector.shape_cast %74 : vector<1x384x128xbf16> to vector<384x128xbf16>
    %cst_56 = arith.constant dense<0.000000e+00> : vector<256x128xf32>
    %76 = tpu.matmul %73, %75, %cst_56 {dimension_numbers = #tpu.dot_dimension_numbers<[1], [0], [0], [1], [0, 0, 1, 1], [], []>} : vector<256x384xbf16>, vector<384x128xbf16>, vector<256x128xf32> -> vector<256x128xf32>
    %77 = arith.addf %71, %76 : vector<256x128xf32>
    %cst_57 = arith.constant dense<0.000000e+00> : vector<128xf32>
    %78 = vector.multi_reduction <add>, %77, %cst_57 [0] : vector<256x128xf32> to vector<128xf32>
    %79 = vector.shape_cast %78 : vector<128xf32> to vector<1x128xf32>
    %cst_58 = arith.constant 3.906250e-03 : f32
    %80 = vector.broadcast %cst_58 : f32 to vector<1x128xf32>
    %81 = arith.mulf %79, %80 : vector<1x128xf32>
    %82 = arith.mulf %77, %77 : vector<256x128xf32>
    %cst_59 = arith.constant dense<0.000000e+00> : vector<128xf32>
    %83 = vector.multi_reduction <add>, %82, %cst_59 [0] : vector<256x128xf32> to vector<128xf32>
    %84 = vector.shape_cast %83 : vector<128xf32> to vector<1x128xf32>
    %cst_60 = arith.constant 3.906250e-03 : f32
    %85 = vector.broadcast %cst_60 : f32 to vector<1x128xf32>
    %86 = arith.mulf %84, %85 : vector<1x128xf32>
    %87 = arith.mulf %81, %81 : vector<1x128xf32>
    %88 = arith.subf %86, %87 : vector<1x128xf32>
    %cst_61 = arith.constant 0.000000e+00 : f32
    %89 = vector.broadcast %cst_61 : f32 to vector<1x128xf32>
    %90 = arith.maximumf %88, %89 : vector<1x128xf32>
    %cst_62 = arith.constant 9.99999974E-6 : f32
    %91 = vector.broadcast %cst_62 : f32 to vector<1x128xf32>
    %92 = arith.addf %90, %91 : vector<1x128xf32>
    %93 = math.rsqrt %92 : vector<1x128xf32>
    %c0_63 = arith.constant 0 : index
    %c1_64 = arith.constant 1 : index
    %c1_65 = arith.constant 1 : index
    %c0_66 = arith.constant 0 : index
    %94 = vector.load %arg1[%c0_63, %c1_64, %c1_65, %c0_66] : memref<1x18x18x128xf32, #tpu.memory_space<vmem>>, vector<1x16x16x128xf32>
    %95 = vector.shape_cast %94 : vector<1x16x16x128xf32> to vector<16x16x128xf32>
    %96 = vector.shape_cast %95 : vector<16x16x128xf32> to vector<256x128xf32>
    %97 = vector.broadcast %81 : vector<1x128xf32> to vector<256x128xf32>
    %98 = arith.subf %77, %97 : vector<256x128xf32>
    %99 = vector.broadcast %93 : vector<1x128xf32> to vector<256x128xf32>
    %100 = arith.mulf %98, %99 : vector<256x128xf32>
    %101 = arith.addf %96, %100 : vector<256x128xf32>
    %102 = vector.shape_cast %101 : vector<256x128xf32> to vector<16x16x128xf32>
    %c0_67 = arith.constant 0 : index
    %c0_68 = arith.constant 0 : index
    %c0_69 = arith.constant 0 : index
    %c0_70 = arith.constant 0 : index
    %103 = vector.load %arg4[%c0_67, %c0_68, %c0_69, %c0_70] : memref<1x16x16x128xf32, #tpu.memory_space<vmem>>, vector<1x16x16x128xf32>
    %104 = vector.shape_cast %103 : vector<1x16x16x128xf32> to vector<16x16x128xf32>
    %105 = vector.shape_cast %102 : vector<16x16x128xf32> to vector<1x16x16x128xf32>
    tpu.vector_store %arg4[%c0_67, %c0_68, %c0_69, %c0_70], %105 {strides = array<i32>} : memref<1x16x16x128xf32, #tpu.memory_space<vmem>>, vector<1x16x16x128xf32>,
    return
  }
  func.func @transform_0(%arg0: i32) -> (i32, i32, i32, i32) {
    %c0_i32 = arith.constant 0 : i32
    %c0_i32_0 = arith.constant 0 : i32
    %c0_i32_1 = arith.constant 0 : i32
    %c0_i32_2 = arith.constant 0 : i32
    return %arg0, %c0_i32, %c0_i32_0, %c0_i32_1 : i32, i32, i32, i32
  }
  func.func @transform_1(%arg0: i32) -> (i32, i32, i32) {
    %c0_i32 = arith.constant 0 : i32
    %c0_i32_0 = arith.constant 0 : i32
    %c0_i32_1 = arith.constant 0 : i32
    %c0_i32_2 = arith.constant 0 : i32
    return %c0_i32, %c0_i32_0, %c0_i32_1 : i32, i32, i32
  }
  func.func @transform_2(%arg0: i32) -> (i32, i32, i32) {
    %c0_i32 = arith.constant 0 : i32
    %c0_i32_0 = arith.constant 0 : i32
    %c0_i32_1 = arith.constant 0 : i32
    %c0_i32_2 = arith.constant 0 : i32
    return %c0_i32, %c0_i32_0, %c0_i32_1 : i32, i32, i32
  }
  func.func @transform_3(%arg0: i32) -> (i32, i32, i32, i32) {
    %c0_i32 = arith.constant 0 : i32
    %c0_i32_0 = arith.constant 0 : i32
    %c0_i32_1 = arith.constant 0 : i32
    %c0_i32_2 = arith.constant 0 : i32
    return %arg0, %c0_i32, %c0_i32_0, %c0_i32_1 : i32, i32, i32, i32
  }
}

</mosaic_0001>

<llo_original>
// kernel: resnet_block_forward.1
$region0: #{resnet_block_forward.1}
  #allocation0 [shape = 'u32[]', space=smem, size = 0x4, offset = 0x4, fixed_abs, tag = 'smem constant byte address 0x4 - core index']
  #allocation1 [shape = 'u32[72,128]{1,0:T(1,128)}', space=vmem, size = 0x9000, scoped, tag = 'internal scratch']
  #allocation2 [shape = 'bf16[18,16,384]{2,1,0:T(8,128)(2,1)}', space=vmem, size = 0x36000, scoped, tag = 'scratch operand']
  %s0 = inlined_call_operand.vmem [shape: f32[2,18,18,128], index: 0, kind: input, shape index: {}]
  %s1 = inlined_call_operand.vmem [shape: bf16[3,384,128], index: 1, kind: input, shape index: {}]
  %s2 = inlined_call_operand.vmem [shape: bf16[3,384,128], index: 2, kind: input, shape index: {}]
  %s3 = inlined_call_operand.vmem [shape: f32[2,16,16,128], index: 3, kind: output, shape index: {}]
  %s4 = sld [smem:[#allocation0]]
  $region45: #{resnet_block_forward.1} parent=0
    _
  %s6 = ssub.s32 1, %s4
  %s7 = scalar_select 0, %s6, %s4
  loop: start=0, step=1, limit=4
  $region2: #{resnet_block_forward.1} parent=0 // loop_pre_header
    _
  $region3: #{resnet_block_forward.1} parent=0 // loop_header
    %s9 = sphi 0, %s13
    %p10 = scmp.ge.s32.totalorder %s9, 4
    %s19 = sphi 0, %s21
    %s22 = sphi 0, %s19
    %s23 = sphi 0, %s22
    %s39 = sphi 0, %s23
    %s43 = sphi 0, %s43
    %s45 = sphi 0, %s43
    %s46 = sphi 0, %s45
    %s60 = sphi 0, %s46
    %s64 = sphi 0, %s64
    %s66 = sphi 0, %s64
    %s67 = sphi 0, %s66
    %s81 = sphi 0, %s67
    %s87 = sphi 0, %s89
    %s90 = sphi 0, %s87
    %s91 = sphi 0, %s90
    %s107 = sphi 0, %s91
  $region4: #{resnet_block_forward.1} parent=0 // loop_header_branch
    %12 = sbr.rel (%p10) target = $region8
  $region5: #{resnet_block_forward.1} parent=0 // loop_body
    %s14 = ssub.s32 %s9, 1
    %s15 = ssub.s32 %s9, 2
    %s16 = sadd.s32 %s9, 1
    %s17 = ssub.s32 %s9, %s16
    %p18 = scmp.eq.s32.totalorder %s17, 0
    %s20 = sadd.s32 %s19, 1
    %s21 = scalar_select %p18, %s19, %s20
    %p24 = pneg %p18
    %p25 = scmp.eq.s32.totalorder %s9, 1
    %p26 = por %p24, %p25
    %p27 = scmp.ne.s32.totalorder %s19, %s22
    %p28 = scmp.eq.s32.totalorder %s9, 0
    %p29 = por %p27, %p28
    %p30 = scmp.ne.s32.totalorder %s19, %s22
    %p31 = scmp.eq.s32.totalorder %s14, 1
    %p32 = por %p30, %p31
    %p33 = scmp.ne.s32.totalorder %s22, %s23
    %p34 = scmp.eq.s32.totalorder %s14, 0
    %p35 = por %p33, %p34
    %p36 = scmp.ne.s32.totalorder %s22, %s23
    %p37 = scmp.eq.s32.totalorder %s15, 1
    %p38 = por %p36, %p37
    %p40 = scmp.ne.s32.totalorder %s23, %s39
    %p41 = scmp.eq.s32.totalorder %s15, 0
    %p42 = por %p40, %p41
    %s44 = sadd.s32 %s43, 1
    %p47 = scmp.eq.s32.totalorder %s9, 1
    %p48 = scmp.ne.s32.totalorder %s43, %s45
    %p49 = scmp.eq.s32.totalorder %s9, 0
    %p50 = por %p48, %p49
    %p51 = scmp.ne.s32.totalorder %s43, %s45
    %p52 = scmp.eq.s32.totalorder %s14, 1
    %p53 = por %p51, %p52
    %p54 = scmp.ne.s32.totalorder %s45, %s46
    %p55 = scmp.eq.s32.totalorder %s14, 0
    %p56 = por %p54, %p55
    %p57 = scmp.ne.s32.totalorder %s45, %s46
    %p58 = scmp.eq.s32.totalorder %s15, 1
    %p59 = por %p57, %p58
    %p61 = scmp.ne.s32.totalorder %s46, %s60
    %p62 = scmp.eq.s32.totalorder %s15, 0
    %p63 = por %p61, %p62
    %s65 = sadd.s32 %s64, 1
    %p68 = scmp.eq.s32.totalorder %s9, 1
    %p69 = scmp.ne.s32.totalorder %s64, %s66
    %p70 = scmp.eq.s32.totalorder %s9, 0
    %p71 = por %p69, %p70
    %p72 = scmp.ne.s32.totalorder %s64, %s66
    %p73 = scmp.eq.s32.totalorder %s14, 1
    %p74 = por %p72, %p73
    %p75 = scmp.ne.s32.totalorder %s66, %s67
    %p76 = scmp.eq.s32.totalorder %s14, 0
    %p77 = por %p75, %p76
    %p78 = scmp.ne.s32.totalorder %s66, %s67
    %p79 = scmp.eq.s32.totalorder %s15, 1
    %p80 = por %p78, %p79
    %p82 = scmp.ne.s32.totalorder %s67, %s81
    %p83 = scmp.eq.s32.totalorder %s15, 0
    %p84 = por %p82, %p83
    %s85 = ssub.s32 %s9, %s16
    %p86 = scmp.eq.s32.totalorder %s85, 0
    %s88 = sadd.s32 %s87, 1
    %s89 = scalar_select %p86, %s87, %s88
    %p92 = pneg %p86
    %p93 = scmp.eq.s32.totalorder %s9, 1
    %p94 = por %p92, %p93
    %p95 = scmp.ne.s32.totalorder %s87, %s90
    %p96 = scmp.eq.s32.totalorder %s9, 0
    %p97 = por %p95, %p96
    %p98 = scmp.ne.s32.totalorder %s87, %s90
    %p99 = scmp.eq.s32.totalorder %s14, 1
    %p100 = por %p98, %p99
    %p101 = scmp.ne.s32.totalorder %s90, %s91
    %p102 = scmp.eq.s32.totalorder %s14, 0
    %p103 = por %p101, %p102
    %p104 = scmp.ne.s32.totalorder %s90, %s91
    %p105 = scmp.eq.s32.totalorder %s15, 1
    %p106 = por %p104, %p105
    %p108 = scmp.ne.s32.totalorder %s91, %s107
    %p109 = scmp.eq.s32.totalorder %s15, 0
    %p110 = por %p108, %p109
    %p111 = scmp.le.s32.totalorder 1, %s9
    %p112 = scmp.lt.s32.totalorder %s9, 3
    %p113 = pnand %p111, %p112
    %p114 = pneg %p113
    // Predicated region
    $region9: #{resnet_block_forward.1} parent=5 // pred_check
      _
    $region10: #{resnet_block_forward.1} parent=5 // pred_check_branch
      %116 = sbr.rel (%p113) target = $region12
    $region11: #{resnet_block_forward.1} parent=5 // pred_region
      %s117 = ssub.s32 %s9, 1
      // Predicated region
      $region13: #{resnet_block_forward.1} parent=11 // pred_check
        %p118 = pneg %p56
      $region14: #{resnet_block_forward.1} parent=11 // pred_check_branch
        %120 = sbr.rel (%p118) target = $region16
      $region15: #{resnet_block_forward.1} parent=11 // pred_region
        _
      $region16: #{resnet_block_forward.1} parent=11 // pred_fallthru
        _
      // Predicated region
      $region17: #{resnet_block_forward.1} parent=11 // pred_check
        %p121 = pneg %p77
      $region18: #{resnet_block_forward.1} parent=11 // pred_check_branch
        %123 = sbr.rel (%p121) target = $region20
      $region19: #{resnet_block_forward.1} parent=11 // pred_region
        _
      $region20: #{resnet_block_forward.1} parent=11 // pred_fallthru
        _
    $region12: #{resnet_block_forward.1} parent=5 // pred_fallthru
      _
    %p124 = scmp.lt.s32.totalorder %s9, 2
    // Predicated region
    $region21: #{resnet_block_forward.1} parent=5 // pred_check
      %p125 = pneg %p124
    $region22: #{resnet_block_forward.1} parent=5 // pred_check_branch
      %127 = sbr.rel (%p125) target = $region24
    $region23: #{resnet_block_forward.1} parent=5 // pred_region
      // Predicated region
      $region25: #{resnet_block_forward.1} parent=23 // pred_check
        %p128 = pneg %p29
      $region26: #{resnet_block_forward.1} parent=23 // pred_check_branch
        %130 = sbr.rel (%p128) target = $region28
      $region27: #{resnet_block_forward.1} parent=23 // pred_region
        %p131 = scmp.lt.s32.totalorder %s9, 1
        %s132 = scalar_select %p131, %s9, 1
        %s133 = smul.addr %s132, 54
        %s134 = smul.addr %s133, 8
        %s135 = scalar_lea.vmem %s0, %s134
      $region28: #{resnet_block_forward.1} parent=23 // pred_fallthru
        _
    $region24: #{resnet_block_forward.1} parent=5 // pred_fallthru
      _
    %p136 = scmp.le.s32.totalorder 1, %s9
    %p137 = scmp.lt.s32.totalorder %s9, 3
    %p138 = pnand %p136, %p137
    %p139 = pneg %p138
    // Predicated region
    $region29: #{resnet_block_forward.1} parent=5 // pred_check
      _
    $region30: #{resnet_block_forward.1} parent=5 // pred_check_branch
      %141 = sbr.rel (%p138) target = $region32
    $region31: #{resnet_block_forward.1} parent=5 // pred_region
      %s142 = ssub.s32 %s9, 1
      %p143 = scmp.lt.s32.totalorder %s14, 1
      %s144 = scalar_select %p143, %s14, 1
      %s145 = smul.addr %s144, 54
      %s146 = smul.addr %s145, 8
      %s147 = scalar_lea.vmem %s0, %s146
      %p148 = pneg %p35
      %p149 = pneg %p32
      %p150 = pneg %p56
      %p151 = pneg %p53
      %p152 = pneg %p77
      %p153 = pneg %p74
      %p154 = pneg %p103
      %p155 = pneg %p100
      %p156 = scmp.lt.s32.totalorder %s14, 1
      %s157 = scalar_select %p156, %s14, 1
      %s158 = smul.addr %s157, 32
      %s159 = smul.addr %s158, 8
      %s160 = scalar_lea.vmem %s3, %s159
      %p161 = scmp.lt.s32.totalorder %s14, 1
      %s162 = scalar_select %p161, %s14, 1
      %s163 = smul.addr %s162, 54
      %s164 = smul.addr %s163, 8
      %s165 = scalar_lea.vmem %s0, %s164
      %p166 = scmp.lt.s32.totalorder %s14, 1
      %s167 = scalar_select %p166, %s14, 1
      %s168 = smul.addr %s167, 32
      %s169 = smul.addr %s168, 8
      %s170 = scalar_lea.vmem %s3, %s169
      %v171 = vld [vmem:[%s165] sm:$0xff]
      %v172 = vld [vmem:[%s165 + $0x8] sm:$0xff]
      %v173 = vld [vmem:[%s165 + $0x10] sm:$0x3]
      %v174 = vld [vmem:[%s165 + $0x18] sm:$0xff]
      %v175 = vld [vmem:[%s165 + $0x20] sm:$0xff]
      %v176 = vld [vmem:[%s165 + $0x28] sm:$0x3]
      %v177 = vld [vmem:[%s165 + $0x30] sm:$0xff]
      %v178 = vld [vmem:[%s165 + $0x38] sm:$0xff]
      %v179 = vld [vmem:[%s165 + $0x40] sm:$0x3]
      %v180 = vld [vmem:[%s165 + $0x48] sm:$0xff]
      %v181 = vld [vmem:[%s165 + $0x50] sm:$0xff]
      %v182 = vld [vmem:[%s165 + $0x58] sm:$0x3]
      %v183 = vld [vmem:[%s165 + $0x60] sm:$0xff]
      %v184 = vld [vmem:[%s165 + $0x68] sm:$0xff]
      %v185 = vld [vmem:[%s165 + $0x70] sm:$0x3]
      %v186 = vld [vmem:[%s165 + $0x78] sm:$0xff]
      %v187 = vld [vmem:[%s165 + $0x80] sm:$0xff]
      %v188 = vld [vmem:[%s165 + $0x88] sm:$0x3]
      %v189 = vld [vmem:[%s165 + $0x90] sm:$0xff]
      %v190 = vld [vmem:[%s165 + $0x98] sm:$0xff]
      %v191 = vld [vmem:[%s165 + $0xa0] sm:$0x3]
      %v192 = vld [vmem:[%s165 + $0xa8] sm:$0xff]
      %v193 = vld [vmem:[%s165 + $0xb0] sm:$0xff]
      %v194 = vld [vmem:[%s165 + $0xb8] sm:$0x3]
      %v195 = vld [vmem:[%s165 + $0xc0] sm:$0xff]
      %v196 = vld [vmem:[%s165 + $0xc8] sm:$0xff]
      %v197 = vld [vmem:[%s165 + $0xd0] sm:$0x3]
      %v198 = vld [vmem:[%s165 + $0xd8] sm:$0xff]
      %v199 = vld [vmem:[%s165 + $0xe0] sm:$0xff]
      %v200 = vld [vmem:[%s165 + $0xe8] sm:$0x3]
      %v201 = vld [vmem:[%s165 + $0xf0] sm:$0xff]
      %v202 = vld [vmem:[%s165 + $0xf8] sm:$0xff]
      %v203 = vld [vmem:[%s165 + $0x100] sm:$0x3]
      %v204 = vld [vmem:[%s165 + $0x108] sm:$0xff]
      %v205 = vld [vmem:[%s165 + $0x110] sm:$0xff]
      %v206 = vld [vmem:[%s165 + $0x118] sm:$0x3]
      %v207 = vld [vmem:[%s165 + $0x120] sm:$0xff]
      %v208 = vld [vmem:[%s165 + $0x128] sm:$0xff]
      %v209 = vld [vmem:[%s165 + $0x130] sm:$0x3]
      %v210 = vld [vmem:[%s165 + $0x138] sm:$0xff]
      %v211 = vld [vmem:[%s165 + $0x140] sm:$0xff]
      %v212 = vld [vmem:[%s165 + $0x148] sm:$0x3]
      %v213 = vld [vmem:[%s165 + $0x150] sm:$0xff]
      %v214 = vld [vmem:[%s165 + $0x158] sm:$0xff]
      %v215 = vld [vmem:[%s165 + $0x160] sm:$0x3]
      %v216 = vld [vmem:[%s165 + $0x168] sm:$0xff]
      %v217 = vld [vmem:[%s165 + $0x170] sm:$0xff]
      %v218 = vld [vmem:[%s165 + $0x178] sm:$0x3]
      %v219 = vld [vmem:[%s165 + $0x180] sm:$0xff]
      %v220 = vld [vmem:[%s165 + $0x188] sm:$0xff]
      %v221 = vld [vmem:[%s165 + $0x190] sm:$0x3]
      %v222 = vld [vmem:[%s165 + $0x198] sm:$0xff]
      %v223 = vld [vmem:[%s165 + $0x1a0] sm:$0xff]
      %v224 = vld [vmem:[%s165 + $0x1a8] sm:$0x3]
      %v225 = vpack.c.bf16 %v171, %v171
      %v226 = vpack.c.bf16 %v172, %v172
      %v227 = vpack.c.bf16 %v173, %v173
      %v228 = vpack.c.bf16 %v174, %v174
      %v229 = vpack.c.bf16 %v175, %v175
      %v230 = vpack.c.bf16 %v176, %v176
      %v231 = vpack.c.bf16 %v177, %v177
      %v232 = vpack.c.bf16 %v178, %v178
      %v233 = vpack.c.bf16 %v179, %v179
      %v234 = vpack.c.bf16 %v180, %v180
      %v235 = vpack.c.bf16 %v181, %v181
      %v236 = vpack.c.bf16 %v182, %v182
      %v237 = vpack.c.bf16 %v183, %v183
      %v238 = vpack.c.bf16 %v184, %v184
      %v239 = vpack.c.bf16 %v185, %v185
      %v240 = vpack.c.bf16 %v186, %v186
      %v241 = vpack.c.bf16 %v187, %v187
      %v242 = vpack.c.bf16 %v188, %v188
      %v243 = vpack.c.bf16 %v189, %v189
      %v244 = vpack.c.bf16 %v190, %v190
      %v245 = vpack.c.bf16 %v191, %v191
      %v246 = vpack.c.bf16 %v192, %v192
      %v247 = vpack.c.bf16 %v193, %v193
      %v248 = vpack.c.bf16 %v194, %v194
      %v249 = vpack.c.bf16 %v195, %v195
      %v250 = vpack.c.bf16 %v196, %v196
      %v251 = vpack.c.bf16 %v197, %v197
      %v252 = vpack.c.bf16 %v198, %v198
      %v253 = vpack.c.bf16 %v199, %v199
      %v254 = vpack.c.bf16 %v200, %v200
      %v255 = vpack.c.bf16 %v201, %v201
      %v256 = vpack.c.bf16 %v202, %v202
      %v257 = vpack.c.bf16 %v203, %v203
      %v258 = vpack.c.bf16 %v204, %v204
      %v259 = vpack.c.bf16 %v205, %v205
      %v260 = vpack.c.bf16 %v206, %v206
      %v261 = vpack.c.bf16 %v207, %v207
      %v262 = vpack.c.bf16 %v208, %v208
      %v263 = vpack.c.bf16 %v209, %v209
      %v264 = vpack.c.bf16 %v210, %v210
      %v265 = vpack.c.bf16 %v211, %v211
      %v266 = vpack.c.bf16 %v212, %v212
      %v267 = vpack.c.bf16 %v213, %v213
      %v268 = vpack.c.bf16 %v214, %v214
      %v269 = vpack.c.bf16 %v215, %v215
      %v270 = vpack.c.bf16 %v216, %v216
      %v271 = vpack.c.bf16 %v217, %v217
      %v272 = vpack.c.bf16 %v218, %v218
      %v273 = vpack.c.bf16 %v219, %v219
      %v274 = vpack.c.bf16 %v220, %v220
      %v275 = vpack.c.bf16 %v221, %v221
      %v276 = vpack.c.bf16 %v222, %v222
      %v277 = vpack.c.bf16 %v223, %v223
      %v278 = vpack.c.bf16 %v224, %v224
      %v315 = vunpack.c.l.b16 %v225
      %v316 = vunpack.c.l.b16 %v226
      %v317 = vunpack.c.l.b16 %v228
      %v318 = vunpack.c.l.b16 %v229
      %v319 = vunpack.c.l.b16 %v231
      %v320 = vunpack.c.l.b16 %v232
      %v321 = vunpack.c.l.b16 %v234
      %v322 = vunpack.c.l.b16 %v235
      %v323 = vunpack.c.l.b16 %v237
      %v324 = vunpack.c.l.b16 %v238
      %v325 = vunpack.c.l.b16 %v240
      %v326 = vunpack.c.l.b16 %v241
      %v327 = vunpack.c.l.b16 %v243
      %v328 = vunpack.c.l.b16 %v244
      %v329 = vunpack.c.l.b16 %v246
      %v330 = vunpack.c.l.b16 %v247
      %v331 = vunpack.c.l.b16 %v249
      %v332 = vunpack.c.l.b16 %v250
      %v333 = vunpack.c.l.b16 %v252
      %v334 = vunpack.c.l.b16 %v253
      %v335 = vunpack.c.l.b16 %v255
      %v336 = vunpack.c.l.b16 %v256
      %v337 = vunpack.c.l.b16 %v258
      %v338 = vunpack.c.l.b16 %v259
      %v339 = vunpack.c.l.b16 %v261
      %v340 = vunpack.c.l.b16 %v262
      %v341 = vunpack.c.l.b16 %v264
      %v342 = vunpack.c.l.b16 %v265
      %v343 = vunpack.c.l.b16 %v267
      %v344 = vunpack.c.l.b16 %v268
      %v345 = vunpack.c.l.b16 %v270
      %v346 = vunpack.c.l.b16 %v271
      %v347 = vunpack.c.l.b16 %v273
      %v348 = vunpack.c.l.b16 %v274
      %v349 = vunpack.c.l.b16 %v276
      %v350 = vunpack.c.l.b16 %v277
      %v351 = vpack.c.b16 %v316, %v315
      %v352 = vpack.c.b16 %v318, %v317
      %v353 = vpack.c.b16 %v320, %v319
      %v354 = vpack.c.b16 %v322, %v321
      %v355 = vpack.c.b16 %v324, %v323
      %v356 = vpack.c.b16 %v326, %v325
      %v357 = vpack.c.b16 %v328, %v327
      %v358 = vpack.c.b16 %v330, %v329
      %v359 = vpack.c.b16 %v332, %v331
      %v360 = vpack.c.b16 %v334, %v333
      %v361 = vpack.c.b16 %v336, %v335
      %v362 = vpack.c.b16 %v338, %v337
      %v363 = vpack.c.b16 %v340, %v339
      %v364 = vpack.c.b16 %v342, %v341
      %v365 = vpack.c.b16 %v344, %v343
      %v366 = vpack.c.b16 %v346, %v345
      %v367 = vpack.c.b16 %v348, %v347
      %v368 = vpack.c.b16 %v350, %v349
      %v405 = vunpack.c.l.b16 %v227
      %v406 = vunpack.c.l.b16 %v230
      %v407 = vunpack.c.l.b16 %v233
      %v408 = vunpack.c.l.b16 %v236
      %v409 = vunpack.c.l.b16 %v239
      %v410 = vunpack.c.l.b16 %v242
      %v411 = vunpack.c.l.b16 %v245
      %v412 = vunpack.c.l.b16 %v248
      %v413 = vunpack.c.l.b16 %v251
      %v414 = vunpack.c.l.b16 %v254
      %v415 = vunpack.c.l.b16 %v257
      %v416 = vunpack.c.l.b16 %v260
      %v417 = vunpack.c.l.b16 %v263
      %v418 = vunpack.c.l.b16 %v266
      %v419 = vunpack.c.l.b16 %v269
      %v420 = vunpack.c.l.b16 %v272
      %v421 = vunpack.c.l.b16 %v275
      %v422 = vunpack.c.l.b16 %v278
      %v423 = vpack.c.b16 %v405, %v405
      %v424 = vpack.c.b16 %v406, %v406
      %v425 = vpack.c.b16 %v407, %v407
      %v426 = vpack.c.b16 %v408, %v408
      %v427 = vpack.c.b16 %v409, %v409
      %v428 = vpack.c.b16 %v410, %v410
      %v429 = vpack.c.b16 %v411, %v411
      %v430 = vpack.c.b16 %v412, %v412
      %v431 = vpack.c.b16 %v413, %v413
      %v432 = vpack.c.b16 %v414, %v414
      %v433 = vpack.c.b16 %v415, %v415
      %v434 = vpack.c.b16 %v416, %v416
      %v435 = vpack.c.b16 %v417, %v417
      %v436 = vpack.c.b16 %v418, %v418
      %v437 = vpack.c.b16 %v419, %v419
      %v438 = vpack.c.b16 %v420, %v420
      %v439 = vpack.c.b16 %v421, %v421
      %v440 = vpack.c.b16 %v422, %v422
      %vm441 = vsmask.f32 7424
      %v443 = vshrl.u32 %v351, 16
      %v445 = vshll.u32 %v351, 16
      %v447 = vrot.slane %v445, 1
      %v448 = vor.u32 %v443, %v447
      %v450 = vshll.u32 %v423, 16
      %v452 = vrot.slane %v450, 1
      %v453 = vsel %vm441, %v448, %v452
      %v455 = vshrl.u32 %v352, 16
      %v457 = vshll.u32 %v352, 16
      %v459 = vrot.slane %v457, 1
      %v460 = vor.u32 %v455, %v459
      %v462 = vshll.u32 %v424, 16
      %v464 = vrot.slane %v462, 1
      %v465 = vsel %vm441, %v460, %v464
      %v467 = vshrl.u32 %v353, 16
      %v469 = vshll.u32 %v353, 16
      %v471 = vrot.slane %v469, 1
      %v472 = vor.u32 %v467, %v471
      %v474 = vshll.u32 %v425, 16
      %v476 = vrot.slane %v474, 1
      %v477 = vsel %vm441, %v472, %v476
      %v479 = vshrl.u32 %v354, 16
      %v481 = vshll.u32 %v354, 16
      %v483 = vrot.slane %v481, 1
      %v484 = vor.u32 %v479, %v483
      %v486 = vshll.u32 %v426, 16
      %v488 = vrot.slane %v486, 1
      %v489 = vsel %vm441, %v484, %v488
      %v491 = vshrl.u32 %v355, 16
      %v493 = vshll.u32 %v355, 16
      %v495 = vrot.slane %v493, 1
      %v496 = vor.u32 %v491, %v495
      %v498 = vshll.u32 %v427, 16
      %v500 = vrot.slane %v498, 1
      %v501 = vsel %vm441, %v496, %v500
      %v503 = vshrl.u32 %v356, 16
      %v505 = vshll.u32 %v356, 16
      %v507 = vrot.slane %v505, 1
      %v508 = vor.u32 %v503, %v507
      %v510 = vshll.u32 %v428, 16
      %v512 = vrot.slane %v510, 1
      %v513 = vsel %vm441, %v508, %v512
      %v515 = vshrl.u32 %v357, 16
      %v517 = vshll.u32 %v357, 16
      %v519 = vrot.slane %v517, 1
      %v520 = vor.u32 %v515, %v519
      %v522 = vshll.u32 %v429, 16
      %v524 = vrot.slane %v522, 1
      %v525 = vsel %vm441, %v520, %v524
      %v527 = vshrl.u32 %v358, 16
      %v529 = vshll.u32 %v358, 16
      %v531 = vrot.slane %v529, 1
      %v532 = vor.u32 %v527, %v531
      %v534 = vshll.u32 %v430, 16
      %v536 = vrot.slane %v534, 1
      %v537 = vsel %vm441, %v532, %v536
      %v539 = vshrl.u32 %v359, 16
      %v541 = vshll.u32 %v359, 16
      %v543 = vrot.slane %v541, 1
      %v544 = vor.u32 %v539, %v543
      %v546 = vshll.u32 %v431, 16
      %v548 = vrot.slane %v546, 1
      %v549 = vsel %vm441, %v544, %v548
      %v551 = vshrl.u32 %v360, 16
      %v553 = vshll.u32 %v360, 16
      %v555 = vrot.slane %v553, 1
      %v556 = vor.u32 %v551, %v555
      %v558 = vshll.u32 %v432, 16
      %v560 = vrot.slane %v558, 1
      %v561 = vsel %vm441, %v556, %v560
      %v563 = vshrl.u32 %v361, 16
      %v565 = vshll.u32 %v361, 16
      %v567 = vrot.slane %v565, 1
      %v568 = vor.u32 %v563, %v567
      %v570 = vshll.u32 %v433, 16
      %v572 = vrot.slane %v570, 1
      %v573 = vsel %vm441, %v568, %v572
      %v575 = vshrl.u32 %v362, 16
      %v577 = vshll.u32 %v362, 16
      %v579 = vrot.slane %v577, 1
      %v580 = vor.u32 %v575, %v579
      %v582 = vshll.u32 %v434, 16
      %v584 = vrot.slane %v582, 1
      %v585 = vsel %vm441, %v580, %v584
      %v587 = vshrl.u32 %v363, 16
      %v589 = vshll.u32 %v363, 16
      %v591 = vrot.slane %v589, 1
      %v592 = vor.u32 %v587, %v591
      %v594 = vshll.u32 %v435, 16
      %v596 = vrot.slane %v594, 1
      %v597 = vsel %vm441, %v592, %v596
      %v599 = vshrl.u32 %v364, 16
      %v601 = vshll.u32 %v364, 16
      %v603 = vrot.slane %v601, 1
      %v604 = vor.u32 %v599, %v603
      %v606 = vshll.u32 %v436, 16
      %v608 = vrot.slane %v606, 1
      %v609 = vsel %vm441, %v604, %v608
      %v611 = vshrl.u32 %v365, 16
      %v613 = vshll.u32 %v365, 16
      %v615 = vrot.slane %v613, 1
      %v616 = vor.u32 %v611, %v615
      %v618 = vshll.u32 %v437, 16
      %v620 = vrot.slane %v618, 1
      %v621 = vsel %vm441, %v616, %v620
      %v623 = vshrl.u32 %v366, 16
      %v625 = vshll.u32 %v366, 16
      %v627 = vrot.slane %v625, 1
      %v628 = vor.u32 %v623, %v627
      %v630 = vshll.u32 %v438, 16
      %v632 = vrot.slane %v630, 1
      %v633 = vsel %vm441, %v628, %v632
      %v635 = vshrl.u32 %v367, 16
      %v637 = vshll.u32 %v367, 16
      %v639 = vrot.slane %v637, 1
      %v640 = vor.u32 %v635, %v639
      %v642 = vshll.u32 %v439, 16
      %v644 = vrot.slane %v642, 1
      %v645 = vsel %vm441, %v640, %v644
      %v647 = vshrl.u32 %v368, 16
      %v649 = vshll.u32 %v368, 16
      %v651 = vrot.slane %v649, 1
      %v652 = vor.u32 %v647, %v651
      %v654 = vshll.u32 %v440, 16
      %v656 = vrot.slane %v654, 1
      %v657 = vsel %vm441, %v652, %v656
      %vm676 = vcmask 1046528
      %v677 = vrot.slane %v351, 1
      %v678 = vrot.slane %v423, 1
      %v679 = vsel %vm676, %v677, %v678
      %v680 = vrot.slane %v352, 1
      %v681 = vrot.slane %v424, 1
      %v682 = vsel %vm676, %v680, %v681
      %v683 = vrot.slane %v353, 1
      %v684 = vrot.slane %v425, 1
      %v685 = vsel %vm676, %v683, %v684
      %v686 = vrot.slane %v354, 1
      %v687 = vrot.slane %v426, 1
      %v688 = vsel %vm676, %v686, %v687
      %v689 = vrot.slane %v355, 1
      %v690 = vrot.slane %v427, 1
      %v691 = vsel %vm676, %v689, %v690
      %v692 = vrot.slane %v356, 1
      %v693 = vrot.slane %v428, 1
      %v694 = vsel %vm676, %v692, %v693
      %v695 = vrot.slane %v357, 1
      %v696 = vrot.slane %v429, 1
      %v697 = vsel %vm676, %v695, %v696
      %v698 = vrot.slane %v358, 1
      %v699 = vrot.slane %v430, 1
      %v700 = vsel %vm676, %v698, %v699
      %v701 = vrot.slane %v359, 1
      %v702 = vrot.slane %v431, 1
      %v703 = vsel %vm676, %v701, %v702
      %v704 = vrot.slane %v360, 1
      %v705 = vrot.slane %v432, 1
      %v706 = vsel %vm676, %v704, %v705
      %v707 = vrot.slane %v361, 1
      %v708 = vrot.slane %v433, 1
      %v709 = vsel %vm676, %v707, %v708
      %v710 = vrot.slane %v362, 1
      %v711 = vrot.slane %v434, 1
      %v712 = vsel %vm676, %v710, %v711
      %v713 = vrot.slane %v363, 1
      %v714 = vrot.slane %v435, 1
      %v715 = vsel %vm676, %v713, %v714
      %v716 = vrot.slane %v364, 1
      %v717 = vrot.slane %v436, 1
      %v718 = vsel %vm676, %v716, %v717
      %v719 = vrot.slane %v365, 1
      %v720 = vrot.slane %v437, 1
      %v721 = vsel %vm676, %v719, %v720
      %v722 = vrot.slane %v366, 1
      %v723 = vrot.slane %v438, 1
      %v724 = vsel %vm676, %v722, %v723
      %v725 = vrot.slane %v367, 1
      %v726 = vrot.slane %v439, 1
      %v727 = vsel %vm676, %v725, %v726
      %v728 = vrot.slane %v368, 1
      %v729 = vrot.slane %v440, 1
      %v730 = vsel %vm676, %v728, %v729
      %v749 = vld [vmem:[%s1] sm:$0xf]
      %v750 = vld [vmem:[%s1 + $0x4] sm:$0xf]
      %v751 = vld [vmem:[%s1 + $0x8] sm:$0xf]
      %v752 = vld [vmem:[%s1 + $0xc] sm:$0xf]
      %v753 = vld [vmem:[%s1 + $0x10] sm:$0xf]
      %v754 = vld [vmem:[%s1 + $0x14] sm:$0xf]
      %v755 = vld [vmem:[%s1 + $0x18] sm:$0xf]
      %v756 = vld [vmem:[%s1 + $0x1c] sm:$0xf]
      %v757 = vld [vmem:[%s1 + $0x20] sm:$0xf]
      %v758 = vld [vmem:[%s1 + $0x24] sm:$0xf]
      %v759 = vld [vmem:[%s1 + $0x28] sm:$0xf]
      %v760 = vld [vmem:[%s1 + $0x2c] sm:$0xf]
      %v761 = vld [vmem:[%s1 + $0x30] sm:$0xf]
      %v762 = vld [vmem:[%s1 + $0x34] sm:$0xf]
      %v763 = vld [vmem:[%s1 + $0x38] sm:$0xf]
      %v764 = vld [vmem:[%s1 + $0x3c] sm:$0xf]
      %v765 = vld [vmem:[%s1 + $0x40] sm:$0xf]
      %v766 = vld [vmem:[%s1 + $0x44] sm:$0xf]
      %v767 = vld [vmem:[%s1 + $0x48] sm:$0xf]
      %v768 = vld [vmem:[%s1 + $0x4c] sm:$0xf]
      %v769 = vld [vmem:[%s1 + $0x50] sm:$0xf]
      %v770 = vld [vmem:[%s1 + $0x54] sm:$0xf]
      %v771 = vld [vmem:[%s1 + $0x58] sm:$0xf]
      %v772 = vld [vmem:[%s1 + $0x5c] sm:$0xf]
      %v773 = vld [vmem:[%s1 + $0x60] sm:$0xf]
      %v774 = vld [vmem:[%s1 + $0x64] sm:$0xf]
      %v775 = vld [vmem:[%s1 + $0x68] sm:$0xf]
      %v776 = vld [vmem:[%s1 + $0x6c] sm:$0xf]
      %v777 = vld [vmem:[%s1 + $0x70] sm:$0xf]
      %v778 = vld [vmem:[%s1 + $0x74] sm:$0xf]
      %v779 = vld [vmem:[%s1 + $0x78] sm:$0xf]
      %v780 = vld [vmem:[%s1 + $0x7c] sm:$0xf]
      %v781 = vld [vmem:[%s1 + $0x80] sm:$0xf]
      %v782 = vld [vmem:[%s1 + $0x84] sm:$0xf]
      %v783 = vld [vmem:[%s1 + $0x88] sm:$0xf]
      %v784 = vld [vmem:[%s1 + $0x8c] sm:$0xf]
      %v785 = vld [vmem:[%s1 + $0x90] sm:$0xf]
      %v786 = vld [vmem:[%s1 + $0x94] sm:$0xf]
      %v787 = vld [vmem:[%s1 + $0x98] sm:$0xf]
      %v788 = vld [vmem:[%s1 + $0x9c] sm:$0xf]
      %v789 = vld [vmem:[%s1 + $0xa0] sm:$0xf]
      %v790 = vld [vmem:[%s1 + $0xa4] sm:$0xf]
      %v791 = vld [vmem:[%s1 + $0xa8] sm:$0xf]
      %v792 = vld [vmem:[%s1 + $0xac] sm:$0xf]
      %v793 = vld [vmem:[%s1 + $0xb0] sm:$0xf]
      %v794 = vld [vmem:[%s1 + $0xb4] sm:$0xf]
      %v795 = vld [vmem:[%s1 + $0xb8] sm:$0xf]
      %v796 = vld [vmem:[%s1 + $0xbc] sm:$0xf]
      %s797 = scalar_lea.vmem %s1, 192
      %v798 = vld [vmem:[%s797] sm:$0xf]
      %v799 = vld [vmem:[%s797 + $0x4] sm:$0xf]
      %v800 = vld [vmem:[%s797 + $0x8] sm:$0xf]
      %v801 = vld [vmem:[%s797 + $0xc] sm:$0xf]
      %v802 = vld [vmem:[%s797 + $0x10] sm:$0xf]
      %v803 = vld [vmem:[%s797 + $0x14] sm:$0xf]
      %v804 = vld [vmem:[%s797 + $0x18] sm:$0xf]
      %v805 = vld [vmem:[%s797 + $0x1c] sm:$0xf]
      %v806 = vld [vmem:[%s797 + $0x20] sm:$0xf]
      %v807 = vld [vmem:[%s797 + $0x24] sm:$0xf]
      %v808 = vld [vmem:[%s797 + $0x28] sm:$0xf]
      %v809 = vld [vmem:[%s797 + $0x2c] sm:$0xf]
      %v810 = vld [vmem:[%s797 + $0x30] sm:$0xf]
      %v811 = vld [vmem:[%s797 + $0x34] sm:$0xf]
      %v812 = vld [vmem:[%s797 + $0x38] sm:$0xf]
      %v813 = vld [vmem:[%s797 + $0x3c] sm:$0xf]
      %v814 = vld [vmem:[%s797 + $0x40] sm:$0xf]
      %v815 = vld [vmem:[%s797 + $0x44] sm:$0xf]
      %v816 = vld [vmem:[%s797 + $0x48] sm:$0xf]
      %v817 = vld [vmem:[%s797 + $0x4c] sm:$0xf]
      %v818 = vld [vmem:[%s797 + $0x50] sm:$0xf]
      %v819 = vld [vmem:[%s797 + $0x54] sm:$0xf]
      %v820 = vld [vmem:[%s797 + $0x58] sm:$0xf]
      %v821 = vld [vmem:[%s797 + $0x5c] sm:$0xf]
      %v822 = vld [vmem:[%s797 + $0x60] sm:$0xf]
      %v823 = vld [vmem:[%s797 + $0x64] sm:$0xf]
      %v824 = vld [vmem:[%s797 + $0x68] sm:$0xf]
      %v825 = vld [vmem:[%s797 + $0x6c] sm:$0xf]
      %v826 = vld [vmem:[%s797 + $0x70] sm:$0xf]
      %v827 = vld [vmem:[%s797 + $0x74] sm:$0xf]
      %v828 = vld [vmem:[%s797 + $0x78] sm:$0xf]
      %v829 = vld [vmem:[%s797 + $0x7c] sm:$0xf]
      %v830 = vld [vmem:[%s797 + $0x80] sm:$0xf]
      %v831 = vld [vmem:[%s797 + $0x84] sm:$0xf]
      %v832 = vld [vmem:[%s797 + $0x88] sm:$0xf]
      %v833 = vld [vmem:[%s797 + $0x8c] sm:$0xf]
      %v834 = vld [vmem:[%s797 + $0x90] sm:$0xf]
      %v835 = vld [vmem:[%s797 + $0x94] sm:$0xf]
      %v836 = vld [vmem:[%s797 + $0x98] sm:$0xf]
      %v837 = vld [vmem:[%s797 + $0x9c] sm:$0xf]
      %v838 = vld [vmem:[%s797 + $0xa0] sm:$0xf]
      %v839 = vld [vmem:[%s797 + $0xa4] sm:$0xf]
      %v840 = vld [vmem:[%s797 + $0xa8] sm:$0xf]
      %v841 = vld [vmem:[%s797 + $0xac] sm:$0xf]
      %v842 = vld [vmem:[%s797 + $0xb0] sm:$0xf]
      %v843 = vld [vmem:[%s797 + $0xb4] sm:$0xf]
      %v844 = vld [vmem:[%s797 + $0xb8] sm:$0xf]
      %v845 = vld [vmem:[%s797 + $0xbc] sm:$0xf]
      %v894 = vunpack.c.l.b16 %v798
      %v895 = vunpack.c.l.b16 %v799
      %v896 = vunpack.c.l.b16 %v800
      %v897 = vunpack.c.l.b16 %v801
      %v898 = vunpack.c.l.b16 %v802
      %v899 = vunpack.c.l.b16 %v803
      %v900 = vunpack.c.l.b16 %v804
      %v901 = vunpack.c.l.b16 %v805
      %v902 = vunpack.c.l.b16 %v806
      %v903 = vunpack.c.l.b16 %v807
      %v904 = vunpack.c.l.b16 %v808
      %v905 = vunpack.c.l.b16 %v809
      %v906 = vunpack.c.l.b16 %v810
      %v907 = vunpack.c.l.b16 %v811
      %v908 = vunpack.c.l.b16 %v812
      %v909 = vunpack.c.l.b16 %v813
      %v910 = vunpack.c.l.b16 %v814
      %v911 = vunpack.c.l.b16 %v815
      %v912 = vunpack.c.l.b16 %v816
      %v913 = vunpack.c.l.b16 %v817
      %v914 = vunpack.c.l.b16 %v818
      %v915 = vunpack.c.l.b16 %v819
      %v916 = vunpack.c.l.b16 %v820
      %v917 = vunpack.c.l.b16 %v821
      %v918 = vunpack.c.l.b16 %v822
      %v919 = vunpack.c.l.b16 %v823
      %v920 = vunpack.c.l.b16 %v824
      %v921 = vunpack.c.l.b16 %v825
      %v922 = vunpack.c.l.b16 %v826
      %v923 = vunpack.c.l.b16 %v827
      %v924 = vunpack.c.l.b16 %v828
      %v925 = vunpack.c.l.b16 %v829
      %v926 = vunpack.c.l.b16 %v830
      %v927 = vunpack.c.l.b16 %v831
      %v928 = vunpack.c.l.b16 %v832
      %v929 = vunpack.c.l.b16 %v833
      %v930 = vunpack.c.l.b16 %v834
      %v931 = vunpack.c.l.b16 %v835
      %v932 = vunpack.c.l.b16 %v836
      %v933 = vunpack.c.l.b16 %v837
      %v934 = vunpack.c.l.b16 %v838
      %v935 = vunpack.c.l.b16 %v839
      %v936 = vunpack.c.l.b16 %v840
      %v937 = vunpack.c.l.b16 %v841
      %v938 = vunpack.c.l.b16 %v842
      %v939 = vunpack.c.l.b16 %v843
      %v940 = vunpack.c.l.b16 %v844
      %v941 = vunpack.c.l.b16 %v845
      %v942 = vpack.c.b16 %v895, %v894
      %v943 = vpack.c.b16 %v897, %v896
      %v944 = vpack.c.b16 %v899, %v898
      %v945 = vpack.c.b16 %v901, %v900
      %v946 = vpack.c.b16 %v903, %v902
      %v947 = vpack.c.b16 %v905, %v904
      %v948 = vpack.c.b16 %v907, %v906
      %v949 = vpack.c.b16 %v909, %v908
      %v950 = vpack.c.b16 %v911, %v910
      %v951 = vpack.c.b16 %v913, %v912
      %v952 = vpack.c.b16 %v915, %v914
      %v953 = vpack.c.b16 %v917, %v916
      %v954 = vpack.c.b16 %v919, %v918
      %v955 = vpack.c.b16 %v921, %v920
      %v956 = vpack.c.b16 %v923, %v922
      %v957 = vpack.c.b16 %v925, %v924
      %v958 = vpack.c.b16 %v927, %v926
      %v959 = vpack.c.b16 %v929, %v928
      %v960 = vpack.c.b16 %v931, %v930
      %v961 = vpack.c.b16 %v933, %v932
      %v962 = vpack.c.b16 %v935, %v934
      %v963 = vpack.c.b16 %v937, %v936
      %v964 = vpack.c.b16 %v939, %v938
      %v965 = vpack.c.b16 %v941, %v940
      %990 = vmatpush.bf16.msra.mxu0 %v949
      %991 = vmatpush.bf16.msra.mxu0 %v948
      %992 = vmatpush.bf16.msra.mxu0 %v947
      %993 = vmatpush.bf16.msra.mxu0 %v946
      %994 = vmatpush.bf16.msra.mxu0 %v945
      %995 = vmatpush.bf16.msra.mxu0 %v944
      %996 = vmatpush.bf16.msra.mxu0 %v943
      %997 = vmatpush.bf16.msra.mxu0 %v942
      %998 = vmatmul.bf16.gmra.mxu0 %v352
      %v999 = vpop.f32.mrf.mxu0
      %v1000 = vadd.f32 0.0, %v999
      %v1001 = vpop.f32.mrf.mxu0
      %v1002 = vadd.f32 0.0, %v1001
      %1003 = vmatmul.bf16.gmra.mxu0 %v353
      %v1004 = vpop.f32.mrf.mxu0
      %v1005 = vadd.f32 0.0, %v1004
      %v1006 = vpop.f32.mrf.mxu0
      %v1007 = vadd.f32 0.0, %v1006
      %1008 = vmatmul.bf16.gmra.mxu0 %v354
      %v1009 = vpop.f32.mrf.mxu0
      %v1010 = vadd.f32 0.0, %v1009
      %v1011 = vpop.f32.mrf.mxu0
      %v1012 = vadd.f32 0.0, %v1011
      %1013 = vmatmul.bf16.gmra.mxu0 %v355
      %v1014 = vpop.f32.mrf.mxu0
      %v1015 = vadd.f32 0.0, %v1014
      %v1016 = vpop.f32.mrf.mxu0
      %v1017 = vadd.f32 0.0, %v1016
      %1018 = vmatmul.bf16.gmra.mxu0 %v356
      %v1019 = vpop.f32.mrf.mxu0
      %v1020 = vadd.f32 0.0, %v1019
      %v1021 = vpop.f32.mrf.mxu0
      %v1022 = vadd.f32 0.0, %v1021
      %1023 = vmatmul.bf16.gmra.mxu0 %v357
      %v1024 = vpop.f32.mrf.mxu0
      %v1025 = vadd.f32 0.0, %v1024
      %v1026 = vpop.f32.mrf.mxu0
      %v1027 = vadd.f32 0.0, %v1026
      %1028 = vmatmul.bf16.gmra.mxu0 %v358
      %v1029 = vpop.f32.mrf.mxu0
      %v1030 = vadd.f32 0.0, %v1029
      %v1031 = vpop.f32.mrf.mxu0
      %v1032 = vadd.f32 0.0, %v1031
      %1033 = vmatmul.bf16.gmra.mxu0 %v359
      %v1034 = vpop.f32.mrf.mxu0
      %v1035 = vadd.f32 0.0, %v1034
      %v1036 = vpop.f32.mrf.mxu0
      %v1037 = vadd.f32 0.0, %v1036
      %1038 = vmatmul.bf16.gmra.mxu0 %v360
      %v1039 = vpop.f32.mrf.mxu0
      %v1040 = vadd.f32 0.0, %v1039
      %v1041 = vpop.f32.mrf.mxu0
      %v1042 = vadd.f32 0.0, %v1041
      %1043 = vmatmul.bf16.gmra.mxu0 %v361
      %v1044 = vpop.f32.mrf.mxu0
      %v1045 = vadd.f32 0.0, %v1044
      %v1046 = vpop.f32.mrf.mxu0
      %v1047 = vadd.f32 0.0, %v1046
      %1048 = vmatmul.bf16.gmra.mxu0 %v362
      %v1049 = vpop.f32.mrf.mxu0
      %v1050 = vadd.f32 0.0, %v1049
      %v1051 = vpop.f32.mrf.mxu0
      %v1052 = vadd.f32 0.0, %v1051
      %1053 = vmatmul.bf16.gmra.mxu0 %v363
      %v1054 = vpop.f32.mrf.mxu0
      %v1055 = vadd.f32 0.0, %v1054
      %v1056 = vpop.f32.mrf.mxu0
      %v1057 = vadd.f32 0.0, %v1056
      %1058 = vmatmul.bf16.gmra.mxu0 %v364
      %v1059 = vpop.f32.mrf.mxu0
      %v1060 = vadd.f32 0.0, %v1059
      %v1061 = vpop.f32.mrf.mxu0
      %v1062 = vadd.f32 0.0, %v1061
      %1063 = vmatmul.bf16.gmra.mxu0 %v365
      %v1064 = vpop.f32.mrf.mxu0
      %v1065 = vadd.f32 0.0, %v1064
      %v1066 = vpop.f32.mrf.mxu0
      %v1067 = vadd.f32 0.0, %v1066
      %1068 = vmatmul.bf16.gmra.mxu0 %v366
      %v1069 = vpop.f32.mrf.mxu0
      %v1070 = vadd.f32 0.0, %v1069
      %v1071 = vpop.f32.mrf.mxu0
      %v1072 = vadd.f32 0.0, %v1071
      %1073 = vmatmul.bf16.gmra.mxu0 %v367
      %v1074 = vpop.f32.mrf.mxu0
      %v1075 = vadd.f32 0.0, %v1074
      %v1076 = vpop.f32.mrf.mxu0
      %v1077 = vadd.f32 0.0, %v1076
      %1078 = vdwg.mxu0
      %1079 = vmatpush.bf16.msra.mxu0 %v957
      %1080 = vmatpush.bf16.msra.mxu0 %v956
      %1081 = vmatpush.bf16.msra.mxu0 %v955
      %1082 = vmatpush.bf16.msra.mxu0 %v954
      %1083 = vmatpush.bf16.msra.mxu0 %v953
      %1084 = vmatpush.bf16.msra.mxu0 %v952
      %1085 = vmatpush.bf16.msra.mxu0 %v951
      %1086 = vmatpush.bf16.msra.mxu0 %v950
      %1087 = vmatmul.bf16.gmra.mxu0 %v465
      %v1088 = vpop.f32.mrf.mxu0
      %v1089 = vadd.f32 %v1000, %v1088
      %v1090 = vpop.f32.mrf.mxu0
      %v1091 = vadd.f32 %v1002, %v1090
      %1092 = vmatmul.bf16.gmra.mxu0 %v477
      %v1093 = vpop.f32.mrf.mxu0
      %v1094 = vadd.f32 %v1005, %v1093
      %v1095 = vpop.f32.mrf.mxu0
      %v1096 = vadd.f32 %v1007, %v1095
      %1097 = vmatmul.bf16.gmra.mxu0 %v489
      %v1098 = vpop.f32.mrf.mxu0
      %v1099 = vadd.f32 %v1010, %v1098
      %v1100 = vpop.f32.mrf.mxu0
      %v1101 = vadd.f32 %v1012, %v1100
      %1102 = vmatmul.bf16.gmra.mxu0 %v501
      %v1103 = vpop.f32.mrf.mxu0
      %v1104 = vadd.f32 %v1015, %v1103
      %v1105 = vpop.f32.mrf.mxu0
      %v1106 = vadd.f32 %v1017, %v1105
      %1107 = vmatmul.bf16.gmra.mxu0 %v513
      %v1108 = vpop.f32.mrf.mxu0
      %v1109 = vadd.f32 %v1020, %v1108
      %v1110 = vpop.f32.mrf.mxu0
      %v1111 = vadd.f32 %v1022, %v1110
      %1112 = vmatmul.bf16.gmra.mxu0 %v525
      %v1113 = vpop.f32.mrf.mxu0
      %v1114 = vadd.f32 %v1025, %v1113
      %v1115 = vpop.f32.mrf.mxu0
      %v1116 = vadd.f32 %v1027, %v1115
      %1117 = vmatmul.bf16.gmra.mxu0 %v537
      %v1118 = vpop.f32.mrf.mxu0
      %v1119 = vadd.f32 %v1030, %v1118
      %v1120 = vpop.f32.mrf.mxu0
      %v1121 = vadd.f32 %v1032, %v1120
      %1122 = vmatmul.bf16.gmra.mxu0 %v549
      %v1123 = vpop.f32.mrf.mxu0
      %v1124 = vadd.f32 %v1035, %v1123
      %v1125 = vpop.f32.mrf.mxu0
      %v1126 = vadd.f32 %v1037, %v1125
      %1127 = vmatmul.bf16.gmra.mxu0 %v561
      %v1128 = vpop.f32.mrf.mxu0
      %v1129 = vadd.f32 %v1040, %v1128
      %v1130 = vpop.f32.mrf.mxu0
      %v1131 = vadd.f32 %v1042, %v1130
      %1132 = vmatmul.bf16.gmra.mxu0 %v573
      %v1133 = vpop.f32.mrf.mxu0
      %v1134 = vadd.f32 %v1045, %v1133
      %v1135 = vpop.f32.mrf.mxu0
      %v1136 = vadd.f32 %v1047, %v1135
      %1137 = vmatmul.bf16.gmra.mxu0 %v585
      %v1138 = vpop.f32.mrf.mxu0
      %v1139 = vadd.f32 %v1050, %v1138
      %v1140 = vpop.f32.mrf.mxu0
      %v1141 = vadd.f32 %v1052, %v1140
      %1142 = vmatmul.bf16.gmra.mxu0 %v597
      %v1143 = vpop.f32.mrf.mxu0
      %v1144 = vadd.f32 %v1055, %v1143
      %v1145 = vpop.f32.mrf.mxu0
      %v1146 = vadd.f32 %v1057, %v1145
      %1147 = vmatmul.bf16.gmra.mxu0 %v609
      %v1148 = vpop.f32.mrf.mxu0
      %v1149 = vadd.f32 %v1060, %v1148
      %v1150 = vpop.f32.mrf.mxu0
      %v1151 = vadd.f32 %v1062, %v1150
      %1152 = vmatmul.bf16.gmra.mxu0 %v621
      %v1153 = vpop.f32.mrf.mxu0
      %v1154 = vadd.f32 %v1065, %v1153
      %v1155 = vpop.f32.mrf.mxu0
      %v1156 = vadd.f32 %v1067, %v1155
      %1157 = vmatmul.bf16.gmra.mxu0 %v633
      %v1158 = vpop.f32.mrf.mxu0
      %v1159 = vadd.f32 %v1070, %v1158
      %v1160 = vpop.f32.mrf.mxu0
      %v1161 = vadd.f32 %v1072, %v1160
      %1162 = vmatmul.bf16.gmra.mxu0 %v645
      %v1163 = vpop.f32.mrf.mxu0
      %v1164 = vadd.f32 %v1075, %v1163
      %v1165 = vpop.f32.mrf.mxu0
      %v1166 = vadd.f32 %v1077, %v1165
      %1167 = vdwg.mxu0
      %1168 = vmatpush.bf16.msra.mxu0 %v965
      %1169 = vmatpush.bf16.msra.mxu0 %v964
      %1170 = vmatpush.bf16.msra.mxu0 %v963
      %1171 = vmatpush.bf16.msra.mxu0 %v962
      %1172 = vmatpush.bf16.msra.mxu0 %v961
      %1173 = vmatpush.bf16.msra.mxu0 %v960
      %1174 = vmatpush.bf16.msra.mxu0 %v959
      %1175 = vmatpush.bf16.msra.mxu0 %v958
      %1176 = vmatmul.bf16.gmra.mxu0 %v682
      %v1177 = vpop.f32.mrf.mxu0
      %v1178 = vadd.f32 %v1089, %v1177
      %v1179 = vpop.f32.mrf.mxu0
      %v1180 = vadd.f32 %v1091, %v1179
      %1181 = vmatmul.bf16.gmra.mxu0 %v685
      %v1182 = vpop.f32.mrf.mxu0
      %v1183 = vadd.f32 %v1094, %v1182
      %v1184 = vpop.f32.mrf.mxu0
      %v1185 = vadd.f32 %v1096, %v1184
      %1186 = vmatmul.bf16.gmra.mxu0 %v688
      %v1187 = vpop.f32.mrf.mxu0
      %v1188 = vadd.f32 %v1099, %v1187
      %v1189 = vpop.f32.mrf.mxu0
      %v1190 = vadd.f32 %v1101, %v1189
      %1191 = vmatmul.bf16.gmra.mxu0 %v691
      %v1192 = vpop.f32.mrf.mxu0
      %v1193 = vadd.f32 %v1104, %v1192
      %v1194 = vpop.f32.mrf.mxu0
      %v1195 = vadd.f32 %v1106, %v1194
      %1196 = vmatmul.bf16.gmra.mxu0 %v694
      %v1197 = vpop.f32.mrf.mxu0
      %v1198 = vadd.f32 %v1109, %v1197
      %v1199 = vpop.f32.mrf.mxu0
      %v1200 = vadd.f32 %v1111, %v1199
      %1201 = vmatmul.bf16.gmra.mxu0 %v697
      %v1202 = vpop.f32.mrf.mxu0
      %v1203 = vadd.f32 %v1114, %v1202
      %v1204 = vpop.f32.mrf.mxu0
      %v1205 = vadd.f32 %v1116, %v1204
      %1206 = vmatmul.bf16.gmra.mxu0 %v700
      %v1207 = vpop.f32.mrf.mxu0
      %v1208 = vadd.f32 %v1119, %v1207
      %v1209 = vpop.f32.mrf.mxu0
      %v1210 = vadd.f32 %v1121, %v1209
      %1211 = vmatmul.bf16.gmra.mxu0 %v703
      %v1212 = vpop.f32.mrf.mxu0
      %v1213 = vadd.f32 %v1124, %v1212
      %v1214 = vpop.f32.mrf.mxu0
      %v1215 = vadd.f32 %v1126, %v1214
      %1216 = vmatmul.bf16.gmra.mxu0 %v706
      %v1217 = vpop.f32.mrf.mxu0
      %v1218 = vadd.f32 %v1129, %v1217
      %v1219 = vpop.f32.mrf.mxu0
      %v1220 = vadd.f32 %v1131, %v1219
      %1221 = vmatmul.bf16.gmra.mxu0 %v709
      %v1222 = vpop.f32.mrf.mxu0
      %v1223 = vadd.f32 %v1134, %v1222
      %v1224 = vpop.f32.mrf.mxu0
      %v1225 = vadd.f32 %v1136, %v1224
      %1226 = vmatmul.bf16.gmra.mxu0 %v712
      %v1227 = vpop.f32.mrf.mxu0
      %v1228 = vadd.f32 %v1139, %v1227
      %v1229 = vpop.f32.mrf.mxu0
      %v1230 = vadd.f32 %v1141, %v1229
      %1231 = vmatmul.bf16.gmra.mxu0 %v715
      %v1232 = vpop.f32.mrf.mxu0
      %v1233 = vadd.f32 %v1144, %v1232
      %v1234 = vpop.f32.mrf.mxu0
      %v1235 = vadd.f32 %v1146, %v1234
      %1236 = vmatmul.bf16.gmra.mxu0 %v718
      %v1237 = vpop.f32.mrf.mxu0
      %v1238 = vadd.f32 %v1149, %v1237
      %v1239 = vpop.f32.mrf.mxu0
      %v1240 = vadd.f32 %v1151, %v1239
      %1241 = vmatmul.bf16.gmra.mxu0 %v721
      %v1242 = vpop.f32.mrf.mxu0
      %v1243 = vadd.f32 %v1154, %v1242
      %v1244 = vpop.f32.mrf.mxu0
      %v1245 = vadd.f32 %v1156, %v1244
      %1246 = vmatmul.bf16.gmra.mxu0 %v724
      %v1247 = vpop.f32.mrf.mxu0
      %v1248 = vadd.f32 %v1159, %v1247
      %v1249 = vpop.f32.mrf.mxu0
      %v1250 = vadd.f32 %v1161, %v1249
      %1251 = vmatmul.bf16.gmra.mxu0 %v727
      %v1252 = vpop.f32.mrf.mxu0
      %v1253 = vadd.f32 %v1164, %v1252
      %v1254 = vpop.f32.mrf.mxu0
      %v1255 = vadd.f32 %v1166, %v1254
      %1256 = vdwg.mxu0
      %v1305 = vunpack.c.l.b16 %v749
      %v1306 = vunpack.c.l.b16 %v750
      %v1307 = vunpack.c.l.b16 %v751
      %v1308 = vunpack.c.l.b16 %v752
      %v1309 = vunpack.c.l.b16 %v753
      %v1310 = vunpack.c.l.b16 %v754
      %v1311 = vunpack.c.l.b16 %v755
      %v1312 = vunpack.c.l.b16 %v756
      %v1313 = vunpack.c.l.b16 %v757
      %v1314 = vunpack.c.l.b16 %v758
      %v1315 = vunpack.c.l.b16 %v759
      %v1316 = vunpack.c.l.b16 %v760
      %v1317 = vunpack.c.l.b16 %v761
      %v1318 = vunpack.c.l.b16 %v762
      %v1319 = vunpack.c.l.b16 %v763
      %v1320 = vunpack.c.l.b16 %v764
      %v1321 = vunpack.c.l.b16 %v765
      %v1322 = vunpack.c.l.b16 %v766
      %v1323 = vunpack.c.l.b16 %v767
      %v1324 = vunpack.c.l.b16 %v768
      %v1325 = vunpack.c.l.b16 %v769
      %v1326 = vunpack.c.l.b16 %v770
      %v1327 = vunpack.c.l.b16 %v771
      %v1328 = vunpack.c.l.b16 %v772
      %v1329 = vunpack.c.l.b16 %v773
      %v1330 = vunpack.c.l.b16 %v774
      %v1331 = vunpack.c.l.b16 %v775
      %v1332 = vunpack.c.l.b16 %v776
      %v1333 = vunpack.c.l.b16 %v777
      %v1334 = vunpack.c.l.b16 %v778
      %v1335 = vunpack.c.l.b16 %v779
      %v1336 = vunpack.c.l.b16 %v780
      %v1337 = vunpack.c.l.b16 %v781
      %v1338 = vunpack.c.l.b16 %v782
      %v1339 = vunpack.c.l.b16 %v783
      %v1340 = vunpack.c.l.b16 %v784
      %v1341 = vunpack.c.l.b16 %v785
      %v1342 = vunpack.c.l.b16 %v786
      %v1343 = vunpack.c.l.b16 %v787
      %v1344 = vunpack.c.l.b16 %v788
      %v1345 = vunpack.c.l.b16 %v789
      %v1346 = vunpack.c.l.b16 %v790
      %v1347 = vunpack.c.l.b16 %v791
      %v1348 = vunpack.c.l.b16 %v792
      %v1349 = vunpack.c.l.b16 %v793
      %v1350 = vunpack.c.l.b16 %v794
      %v1351 = vunpack.c.l.b16 %v795
      %v1352 = vunpack.c.l.b16 %v796
      %v1353 = vpack.c.b16 %v1306, %v1305
      %v1354 = vpack.c.b16 %v1308, %v1307
      %v1355 = vpack.c.b16 %v1310, %v1309
      %v1356 = vpack.c.b16 %v1312, %v1311
      %v1357 = vpack.c.b16 %v1314, %v1313
      %v1358 = vpack.c.b16 %v1316, %v1315
      %v1359 = vpack.c.b16 %v1318, %v1317
      %v1360 = vpack.c.b16 %v1320, %v1319
      %v1361 = vpack.c.b16 %v1322, %v1321
      %v1362 = vpack.c.b16 %v1324, %v1323
      %v1363 = vpack.c.b16 %v1326, %v1325
      %v1364 = vpack.c.b16 %v1328, %v1327
      %v1365 = vpack.c.b16 %v1330, %v1329
      %v1366 = vpack.c.b16 %v1332, %v1331
      %v1367 = vpack.c.b16 %v1334, %v1333
      %v1368 = vpack.c.b16 %v1336, %v1335
      %v1369 = vpack.c.b16 %v1338, %v1337
      %v1370 = vpack.c.b16 %v1340, %v1339
      %v1371 = vpack.c.b16 %v1342, %v1341
      %v1372 = vpack.c.b16 %v1344, %v1343
      %v1373 = vpack.c.b16 %v1346, %v1345
      %v1374 = vpack.c.b16 %v1348, %v1347
      %v1375 = vpack.c.b16 %v1350, %v1349
      %v1376 = vpack.c.b16 %v1352, %v1351
      %1401 = vmatpush.bf16.msra.mxu0 %v1360
      %1402 = vmatpush.bf16.msra.mxu0 %v1359
      %1403 = vmatpush.bf16.msra.mxu0 %v1358
      %1404 = vmatpush.bf16.msra.mxu0 %v1357
      %1405 = vmatpush.bf16.msra.mxu0 %v1356
      %1406 = vmatpush.bf16.msra.mxu0 %v1355
      %1407 = vmatpush.bf16.msra.mxu0 %v1354
      %1408 = vmatpush.bf16.msra.mxu0 %v1353
      %1409 = vmatmul.bf16.gmra.mxu0 %v351
      %v1410 = vpop.f32.mrf.mxu0
      %v1411 = vadd.f32 %v1178, %v1410
      %v1412 = vpop.f32.mrf.mxu0
      %v1413 = vadd.f32 %v1180, %v1412
      %1414 = vmatmul.bf16.gmra.mxu0 %v352
      %v1415 = vpop.f32.mrf.mxu0
      %v1416 = vadd.f32 %v1183, %v1415
      %v1417 = vpop.f32.mrf.mxu0
      %v1418 = vadd.f32 %v1185, %v1417
      %1419 = vmatmul.bf16.gmra.mxu0 %v353
      %v1420 = vpop.f32.mrf.mxu0
      %v1421 = vadd.f32 %v1188, %v1420
      %v1422 = vpop.f32.mrf.mxu0
      %v1423 = vadd.f32 %v1190, %v1422
      %1424 = vmatmul.bf16.gmra.mxu0 %v354
      %v1425 = vpop.f32.mrf.mxu0
      %v1426 = vadd.f32 %v1193, %v1425
      %v1427 = vpop.f32.mrf.mxu0
      %v1428 = vadd.f32 %v1195, %v1427
      %1429 = vmatmul.bf16.gmra.mxu0 %v355
      %v1430 = vpop.f32.mrf.mxu0
      %v1431 = vadd.f32 %v1198, %v1430
      %v1432 = vpop.f32.mrf.mxu0
      %v1433 = vadd.f32 %v1200, %v1432
      %1434 = vmatmul.bf16.gmra.mxu0 %v356
      %v1435 = vpop.f32.mrf.mxu0
      %v1436 = vadd.f32 %v1203, %v1435
      %v1437 = vpop.f32.mrf.mxu0
      %v1438 = vadd.f32 %v1205, %v1437
      %1439 = vmatmul.bf16.gmra.mxu0 %v357
      %v1440 = vpop.f32.mrf.mxu0
      %v1441 = vadd.f32 %v1208, %v1440
      %v1442 = vpop.f32.mrf.mxu0
      %v1443 = vadd.f32 %v1210, %v1442
      %1444 = vmatmul.bf16.gmra.mxu0 %v358
      %v1445 = vpop.f32.mrf.mxu0
      %v1446 = vadd.f32 %v1213, %v1445
      %v1447 = vpop.f32.mrf.mxu0
      %v1448 = vadd.f32 %v1215, %v1447
      %1449 = vmatmul.bf16.gmra.mxu0 %v359
      %v1450 = vpop.f32.mrf.mxu0
      %v1451 = vadd.f32 %v1218, %v1450
      %v1452 = vpop.f32.mrf.mxu0
      %v1453 = vadd.f32 %v1220, %v1452
      %1454 = vmatmul.bf16.gmra.mxu0 %v360
      %v1455 = vpop.f32.mrf.mxu0
      %v1456 = vadd.f32 %v1223, %v1455
      %v1457 = vpop.f32.mrf.mxu0
      %v1458 = vadd.f32 %v1225, %v1457
      %1459 = vmatmul.bf16.gmra.mxu0 %v361
      %v1460 = vpop.f32.mrf.mxu0
      %v1461 = vadd.f32 %v1228, %v1460
      %v1462 = vpop.f32.mrf.mxu0
      %v1463 = vadd.f32 %v1230, %v1462
      %1464 = vmatmul.bf16.gmra.mxu0 %v362
      %v1465 = vpop.f32.mrf.mxu0
      %v1466 = vadd.f32 %v1233, %v1465
      %v1467 = vpop.f32.mrf.mxu0
      %v1468 = vadd.f32 %v1235, %v1467
      %1469 = vmatmul.bf16.gmra.mxu0 %v363
      %v1470 = vpop.f32.mrf.mxu0
      %v1471 = vadd.f32 %v1238, %v1470
      %v1472 = vpop.f32.mrf.mxu0
      %v1473 = vadd.f32 %v1240, %v1472
      %1474 = vmatmul.bf16.gmra.mxu0 %v364
      %v1475 = vpop.f32.mrf.mxu0
      %v1476 = vadd.f32 %v1243, %v1475
      %v1477 = vpop.f32.mrf.mxu0
      %v1478 = vadd.f32 %v1245, %v1477
      %1479 = vmatmul.bf16.gmra.mxu0 %v365
      %v1480 = vpop.f32.mrf.mxu0
      %v1481 = vadd.f32 %v1248, %v1480
      %v1482 = vpop.f32.mrf.mxu0
      %v1483 = vadd.f32 %v1250, %v1482
      %1484 = vmatmul.bf16.gmra.mxu0 %v366
      %v1485 = vpop.f32.mrf.mxu0
      %v1486 = vadd.f32 %v1253, %v1485
      %v1487 = vpop.f32.mrf.mxu0
      %v1488 = vadd.f32 %v1255, %v1487
      %1489 = vdwg.mxu0
      %1490 = vmatpush.bf16.msra.mxu0 %v1368
      %1491 = vmatpush.bf16.msra.mxu0 %v1367
      %1492 = vmatpush.bf16.msra.mxu0 %v1366
      %1493 = vmatpush.bf16.msra.mxu0 %v1365
      %1494 = vmatpush.bf16.msra.mxu0 %v1364
      %1495 = vmatpush.bf16.msra.mxu0 %v1363
      %1496 = vmatpush.bf16.msra.mxu0 %v1362
      %1497 = vmatpush.bf16.msra.mxu0 %v1361
      %1498 = vmatmul.bf16.gmra.mxu0 %v453
      %v1499 = vpop.f32.mrf.mxu0
      %v1500 = vadd.f32 %v1411, %v1499
      %v1501 = vpop.f32.mrf.mxu0
      %v1502 = vadd.f32 %v1413, %v1501
      %1503 = vmatmul.bf16.gmra.mxu0 %v465
      %v1504 = vpop.f32.mrf.mxu0
      %v1505 = vadd.f32 %v1416, %v1504
      %v1506 = vpop.f32.mrf.mxu0
      %v1507 = vadd.f32 %v1418, %v1506
      %1508 = vmatmul.bf16.gmra.mxu0 %v477
      %v1509 = vpop.f32.mrf.mxu0
      %v1510 = vadd.f32 %v1421, %v1509
      %v1511 = vpop.f32.mrf.mxu0
      %v1512 = vadd.f32 %v1423, %v1511
      %1513 = vmatmul.bf16.gmra.mxu0 %v489
      %v1514 = vpop.f32.mrf.mxu0
      %v1515 = vadd.f32 %v1426, %v1514
      %v1516 = vpop.f32.mrf.mxu0
      %v1517 = vadd.f32 %v1428, %v1516
      %1518 = vmatmul.bf16.gmra.mxu0 %v501
      %v1519 = vpop.f32.mrf.mxu0
      %v1520 = vadd.f32 %v1431, %v1519
      %v1521 = vpop.f32.mrf.mxu0
      %v1522 = vadd.f32 %v1433, %v1521
      %1523 = vmatmul.bf16.gmra.mxu0 %v513
      %v1524 = vpop.f32.mrf.mxu0
      %v1525 = vadd.f32 %v1436, %v1524
      %v1526 = vpop.f32.mrf.mxu0
      %v1527 = vadd.f32 %v1438, %v1526
      %1528 = vmatmul.bf16.gmra.mxu0 %v525
      %v1529 = vpop.f32.mrf.mxu0
      %v1530 = vadd.f32 %v1441, %v1529
      %v1531 = vpop.f32.mrf.mxu0
      %v1532 = vadd.f32 %v1443, %v1531
      %1533 = vmatmul.bf16.gmra.mxu0 %v537
      %v1534 = vpop.f32.mrf.mxu0
      %v1535 = vadd.f32 %v1446, %v1534
      %v1536 = vpop.f32.mrf.mxu0
      %v1537 = vadd.f32 %v1448, %v1536
      %1538 = vmatmul.bf16.gmra.mxu0 %v549
      %v1539 = vpop.f32.mrf.mxu0
      %v1540 = vadd.f32 %v1451, %v1539
      %v1541 = vpop.f32.mrf.mxu0
      %v1542 = vadd.f32 %v1453, %v1541
      %1543 = vmatmul.bf16.gmra.mxu0 %v561
      %v1544 = vpop.f32.mrf.mxu0
      %v1545 = vadd.f32 %v1456, %v1544
      %v1546 = vpop.f32.mrf.mxu0
      %v1547 = vadd.f32 %v1458, %v1546
      %1548 = vmatmul.bf16.gmra.mxu0 %v573
      %v1549 = vpop.f32.mrf.mxu0
      %v1550 = vadd.f32 %v1461, %v1549
      %v1551 = vpop.f32.mrf.mxu0
      %v1552 = vadd.f32 %v1463, %v1551
      %1553 = vmatmul.bf16.gmra.mxu0 %v585
      %v1554 = vpop.f32.mrf.mxu0
      %v1555 = vadd.f32 %v1466, %v1554
      %v1556 = vpop.f32.mrf.mxu0
      %v1557 = vadd.f32 %v1468, %v1556
      %1558 = vmatmul.bf16.gmra.mxu0 %v597
      %v1559 = vpop.f32.mrf.mxu0
      %v1560 = vadd.f32 %v1471, %v1559
      %v1561 = vpop.f32.mrf.mxu0
      %v1562 = vadd.f32 %v1473, %v1561
      %1563 = vmatmul.bf16.gmra.mxu0 %v609
      %v1564 = vpop.f32.mrf.mxu0
      %v1565 = vadd.f32 %v1476, %v1564
      %v1566 = vpop.f32.mrf.mxu0
      %v1567 = vadd.f32 %v1478, %v1566
      %1568 = vmatmul.bf16.gmra.mxu0 %v621
      %v1569 = vpop.f32.mrf.mxu0
      %v1570 = vadd.f32 %v1481, %v1569
      %v1571 = vpop.f32.mrf.mxu0
      %v1572 = vadd.f32 %v1483, %v1571
      %1573 = vmatmul.bf16.gmra.mxu0 %v633
      %v1574 = vpop.f32.mrf.mxu0
      %v1575 = vadd.f32 %v1486, %v1574
      %v1576 = vpop.f32.mrf.mxu0
      %v1577 = vadd.f32 %v1488, %v1576
      %1578 = vdwg.mxu0
      %1579 = vmatpush.bf16.msra.mxu0 %v1376
      %1580 = vmatpush.bf16.msra.mxu0 %v1375
      %1581 = vmatpush.bf16.msra.mxu0 %v1374
      %1582 = vmatpush.bf16.msra.mxu0 %v1373
      %1583 = vmatpush.bf16.msra.mxu0 %v1372
      %1584 = vmatpush.bf16.msra.mxu0 %v1371
      %1585 = vmatpush.bf16.msra.mxu0 %v1370
      %1586 = vmatpush.bf16.msra.mxu0 %v1369
      %1587 = vmatmul.bf16.gmra.mxu0 %v679
      %v1588 = vpop.f32.mrf.mxu0
      %v1589 = vadd.f32 %v1500, %v1588
      %v1590 = vpop.f32.mrf.mxu0
      %v1591 = vadd.f32 %v1502, %v1590
      %1592 = vmatmul.bf16.gmra.mxu0 %v682
      %v1593 = vpop.f32.mrf.mxu0
      %v1594 = vadd.f32 %v1505, %v1593
      %v1595 = vpop.f32.mrf.mxu0
      %v1596 = vadd.f32 %v1507, %v1595
      %1597 = vmatmul.bf16.gmra.mxu0 %v685
      %v1598 = vpop.f32.mrf.mxu0
      %v1599 = vadd.f32 %v1510, %v1598
      %v1600 = vpop.f32.mrf.mxu0
      %v1601 = vadd.f32 %v1512, %v1600
      %1602 = vmatmul.bf16.gmra.mxu0 %v688
      %v1603 = vpop.f32.mrf.mxu0
      %v1604 = vadd.f32 %v1515, %v1603
      %v1605 = vpop.f32.mrf.mxu0
      %v1606 = vadd.f32 %v1517, %v1605
      %1607 = vmatmul.bf16.gmra.mxu0 %v691
      %v1608 = vpop.f32.mrf.mxu0
      %v1609 = vadd.f32 %v1520, %v1608
      %v1610 = vpop.f32.mrf.mxu0
      %v1611 = vadd.f32 %v1522, %v1610
      %1612 = vmatmul.bf16.gmra.mxu0 %v694
      %v1613 = vpop.f32.mrf.mxu0
      %v1614 = vadd.f32 %v1525, %v1613
      %v1615 = vpop.f32.mrf.mxu0
      %v1616 = vadd.f32 %v1527, %v1615
      %1617 = vmatmul.bf16.gmra.mxu0 %v697
      %v1618 = vpop.f32.mrf.mxu0
      %v1619 = vadd.f32 %v1530, %v1618
      %v1620 = vpop.f32.mrf.mxu0
      %v1621 = vadd.f32 %v1532, %v1620
      %1622 = vmatmul.bf16.gmra.mxu0 %v700
      %v1623 = vpop.f32.mrf.mxu0
      %v1624 = vadd.f32 %v1535, %v1623
      %v1625 = vpop.f32.mrf.mxu0
      %v1626 = vadd.f32 %v1537, %v1625
      %1627 = vmatmul.bf16.gmra.mxu0 %v703
      %v1628 = vpop.f32.mrf.mxu0
      %v1629 = vadd.f32 %v1540, %v1628
      %v1630 = vpop.f32.mrf.mxu0
      %v1631 = vadd.f32 %v1542, %v1630
      %1632 = vmatmul.bf16.gmra.mxu0 %v706
      %v1633 = vpop.f32.mrf.mxu0
      %v1634 = vadd.f32 %v1545, %v1633
      %v1635 = vpop.f32.mrf.mxu0
      %v1636 = vadd.f32 %v1547, %v1635
      %1637 = vmatmul.bf16.gmra.mxu0 %v709
      %v1638 = vpop.f32.mrf.mxu0
      %v1639 = vadd.f32 %v1550, %v1638
      %v1640 = vpop.f32.mrf.mxu0
      %v1641 = vadd.f32 %v1552, %v1640
      %1642 = vmatmul.bf16.gmra.mxu0 %v712
      %v1643 = vpop.f32.mrf.mxu0
      %v1644 = vadd.f32 %v1555, %v1643
      %v1645 = vpop.f32.mrf.mxu0
      %v1646 = vadd.f32 %v1557, %v1645
      %1647 = vmatmul.bf16.gmra.mxu0 %v715
      %v1648 = vpop.f32.mrf.mxu0
      %v1649 = vadd.f32 %v1560, %v1648
      %v1650 = vpop.f32.mrf.mxu0
      %v1651 = vadd.f32 %v1562, %v1650
      %1652 = vmatmul.bf16.gmra.mxu0 %v718
      %v1653 = vpop.f32.mrf.mxu0
      %v1654 = vadd.f32 %v1565, %v1653
      %v1655 = vpop.f32.mrf.mxu0
      %v1656 = vadd.f32 %v1567, %v1655
      %1657 = vmatmul.bf16.gmra.mxu0 %v721
      %v1658 = vpop.f32.mrf.mxu0
      %v1659 = vadd.f32 %v1570, %v1658
      %v1660 = vpop.f32.mrf.mxu0
      %v1661 = vadd.f32 %v1572, %v1660
      %1662 = vmatmul.bf16.gmra.mxu0 %v724
      %v1663 = vpop.f32.mrf.mxu0
      %v1664 = vadd.f32 %v1575, %v1663
      %v1665 = vpop.f32.mrf.mxu0
      %v1666 = vadd.f32 %v1577, %v1665
      %1667 = vdwg.mxu0
      %s1668 = scalar_lea.vmem %s1, 384
      %v1669 = vld [vmem:[%s1668] sm:$0xf]
      %v1670 = vld [vmem:[%s1668 + $0x4] sm:$0xf]
      %v1671 = vld [vmem:[%s1668 + $0x8] sm:$0xf]
      %v1672 = vld [vmem:[%s1668 + $0xc] sm:$0xf]
      %v1673 = vld [vmem:[%s1668 + $0x10] sm:$0xf]
      %v1674 = vld [vmem:[%s1668 + $0x14] sm:$0xf]
      %v1675 = vld [vmem:[%s1668 + $0x18] sm:$0xf]
      %v1676 = vld [vmem:[%s1668 + $0x1c] sm:$0xf]
      %v1677 = vld [vmem:[%s1668 + $0x20] sm:$0xf]
      %v1678 = vld [vmem:[%s1668 + $0x24] sm:$0xf]
      %v1679 = vld [vmem:[%s1668 + $0x28] sm:$0xf]
      %v1680 = vld [vmem:[%s1668 + $0x2c] sm:$0xf]
      %v1681 = vld [vmem:[%s1668 + $0x30] sm:$0xf]
      %v1682 = vld [vmem:[%s1668 + $0x34] sm:$0xf]
      %v1683 = vld [vmem:[%s1668 + $0x38] sm:$0xf]
      %v1684 = vld [vmem:[%s1668 + $0x3c] sm:$0xf]
      %v1685 = vld [vmem:[%s1668 + $0x40] sm:$0xf]
      %v1686 = vld [vmem:[%s1668 + $0x44] sm:$0xf]
      %v1687 = vld [vmem:[%s1668 + $0x48] sm:$0xf]
      %v1688 = vld [vmem:[%s1668 + $0x4c] sm:$0xf]
      %v1689 = vld [vmem:[%s1668 + $0x50] sm:$0xf]
      %v1690 = vld [vmem:[%s1668 + $0x54] sm:$0xf]
      %v1691 = vld [vmem:[%s1668 + $0x58] sm:$0xf]
      %v1692 = vld [vmem:[%s1668 + $0x5c] sm:$0xf]
      %v1693 = vld [vmem:[%s1668 + $0x60] sm:$0xf]
      %v1694 = vld [vmem:[%s1668 + $0x64] sm:$0xf]
      %v1695 = vld [vmem:[%s1668 + $0x68] sm:$0xf]
      %v1696 = vld [vmem:[%s1668 + $0x6c] sm:$0xf]
      %v1697 = vld [vmem:[%s1668 + $0x70] sm:$0xf]
      %v1698 = vld [vmem:[%s1668 + $0x74] sm:$0xf]
      %v1699 = vld [vmem:[%s1668 + $0x78] sm:$0xf]
      %v1700 = vld [vmem:[%s1668 + $0x7c] sm:$0xf]
      %v1701 = vld [vmem:[%s1668 + $0x80] sm:$0xf]
      %v1702 = vld [vmem:[%s1668 + $0x84] sm:$0xf]
      %v1703 = vld [vmem:[%s1668 + $0x88] sm:$0xf]
      %v1704 = vld [vmem:[%s1668 + $0x8c] sm:$0xf]
      %v1705 = vld [vmem:[%s1668 + $0x90] sm:$0xf]
      %v1706 = vld [vmem:[%s1668 + $0x94] sm:$0xf]
      %v1707 = vld [vmem:[%s1668 + $0x98] sm:$0xf]
      %v1708 = vld [vmem:[%s1668 + $0x9c] sm:$0xf]
      %v1709 = vld [vmem:[%s1668 + $0xa0] sm:$0xf]
      %v1710 = vld [vmem:[%s1668 + $0xa4] sm:$0xf]
      %v1711 = vld [vmem:[%s1668 + $0xa8] sm:$0xf]
      %v1712 = vld [vmem:[%s1668 + $0xac] sm:$0xf]
      %v1713 = vld [vmem:[%s1668 + $0xb0] sm:$0xf]
      %v1714 = vld [vmem:[%s1668 + $0xb4] sm:$0xf]
      %v1715 = vld [vmem:[%s1668 + $0xb8] sm:$0xf]
      %v1716 = vld [vmem:[%s1668 + $0xbc] sm:$0xf]
      %v1765 = vunpack.c.l.b16 %v1669
      %v1766 = vunpack.c.l.b16 %v1670
      %v1767 = vunpack.c.l.b16 %v1671
      %v1768 = vunpack.c.l.b16 %v1672
      %v1769 = vunpack.c.l.b16 %v1673
      %v1770 = vunpack.c.l.b16 %v1674
      %v1771 = vunpack.c.l.b16 %v1675
      %v1772 = vunpack.c.l.b16 %v1676
      %v1773 = vunpack.c.l.b16 %v1677
      %v1774 = vunpack.c.l.b16 %v1678
      %v1775 = vunpack.c.l.b16 %v1679
      %v1776 = vunpack.c.l.b16 %v1680
      %v1777 = vunpack.c.l.b16 %v1681
      %v1778 = vunpack.c.l.b16 %v1682
      %v1779 = vunpack.c.l.b16 %v1683
      %v1780 = vunpack.c.l.b16 %v1684
      %v1781 = vunpack.c.l.b16 %v1685
      %v1782 = vunpack.c.l.b16 %v1686
      %v1783 = vunpack.c.l.b16 %v1687
      %v1784 = vunpack.c.l.b16 %v1688
      %v1785 = vunpack.c.l.b16 %v1689
      %v1786 = vunpack.c.l.b16 %v1690
      %v1787 = vunpack.c.l.b16 %v1691
      %v1788 = vunpack.c.l.b16 %v1692
      %v1789 = vunpack.c.l.b16 %v1693
      %v1790 = vunpack.c.l.b16 %v1694
      %v1791 = vunpack.c.l.b16 %v1695
      %v1792 = vunpack.c.l.b16 %v1696
      %v1793 = vunpack.c.l.b16 %v1697
      %v1794 = vunpack.c.l.b16 %v1698
      %v1795 = vunpack.c.l.b16 %v1699
      %v1796 = vunpack.c.l.b16 %v1700
      %v1797 = vunpack.c.l.b16 %v1701
      %v1798 = vunpack.c.l.b16 %v1702
      %v1799 = vunpack.c.l.b16 %v1703
      %v1800 = vunpack.c.l.b16 %v1704
      %v1801 = vunpack.c.l.b16 %v1705
      %v1802 = vunpack.c.l.b16 %v1706
      %v1803 = vunpack.c.l.b16 %v1707
      %v1804 = vunpack.c.l.b16 %v1708
      %v1805 = vunpack.c.l.b16 %v1709
      %v1806 = vunpack.c.l.b16 %v1710
      %v1807 = vunpack.c.l.b16 %v1711
      %v1808 = vunpack.c.l.b16 %v1712
      %v1809 = vunpack.c.l.b16 %v1713
      %v1810 = vunpack.c.l.b16 %v1714
      %v1811 = vunpack.c.l.b16 %v1715
      %v1812 = vunpack.c.l.b16 %v1716
      %v1813 = vpack.c.b16 %v1766, %v1765
      %v1814 = vpack.c.b16 %v1768, %v1767
      %v1815 = vpack.c.b16 %v1770, %v1769
      %v1816 = vpack.c.b16 %v1772, %v1771
      %v1817 = vpack.c.b16 %v1774, %v1773
      %v1818 = vpack.c.b16 %v1776, %v1775
      %v1819 = vpack.c.b16 %v1778, %v1777
      %v1820 = vpack.c.b16 %v1780, %v1779
      %v1821 = vpack.c.b16 %v1782, %v1781
      %v1822 = vpack.c.b16 %v1784, %v1783
      %v1823 = vpack.c.b16 %v1786, %v1785
      %v1824 = vpack.c.b16 %v1788, %v1787
      %v1825 = vpack.c.b16 %v1790, %v1789
      %v1826 = vpack.c.b16 %v1792, %v1791
      %v1827 = vpack.c.b16 %v1794, %v1793
      %v1828 = vpack.c.b16 %v1796, %v1795
      %v1829 = vpack.c.b16 %v1798, %v1797
      %v1830 = vpack.c.b16 %v1800, %v1799
      %v1831 = vpack.c.b16 %v1802, %v1801
      %v1832 = vpack.c.b16 %v1804, %v1803
      %v1833 = vpack.c.b16 %v1806, %v1805
      %v1834 = vpack.c.b16 %v1808, %v1807
      %v1835 = vpack.c.b16 %v1810, %v1809
      %v1836 = vpack.c.b16 %v1812, %v1811
      %1861 = vmatpush.bf16.msra.mxu0 %v1820
      %1862 = vmatpush.bf16.msra.mxu0 %v1819
      %1863 = vmatpush.bf16.msra.mxu0 %v1818
      %1864 = vmatpush.bf16.msra.mxu0 %v1817
      %1865 = vmatpush.bf16.msra.mxu0 %v1816
      %1866 = vmatpush.bf16.msra.mxu0 %v1815
      %1867 = vmatpush.bf16.msra.mxu0 %v1814
      %1868 = vmatpush.bf16.msra.mxu0 %v1813
      %1869 = vmatmul.bf16.gmra.mxu0 %v353
      %v1870 = vpop.f32.mrf.mxu0
      %v1871 = vadd.f32 0.0, %v1870
      %v1872 = vpop.f32.mrf.mxu0
      %v1873 = vadd.f32 0.0, %v1872
      %1874 = vmatmul.bf16.gmra.mxu0 %v354
      %v1875 = vpop.f32.mrf.mxu0
      %v1876 = vadd.f32 0.0, %v1875
      %v1877 = vpop.f32.mrf.mxu0
      %v1878 = vadd.f32 0.0, %v1877
      %1879 = vmatmul.bf16.gmra.mxu0 %v355
      %v1880 = vpop.f32.mrf.mxu0
      %v1881 = vadd.f32 0.0, %v1880
      %v1882 = vpop.f32.mrf.mxu0
      %v1883 = vadd.f32 0.0, %v1882
      %1884 = vmatmul.bf16.gmra.mxu0 %v356
      %v1885 = vpop.f32.mrf.mxu0
      %v1886 = vadd.f32 0.0, %v1885
      %v1887 = vpop.f32.mrf.mxu0
      %v1888 = vadd.f32 0.0, %v1887
      %1889 = vmatmul.bf16.gmra.mxu0 %v357
      %v1890 = vpop.f32.mrf.mxu0
      %v1891 = vadd.f32 0.0, %v1890
      %v1892 = vpop.f32.mrf.mxu0
      %v1893 = vadd.f32 0.0, %v1892
      %1894 = vmatmul.bf16.gmra.mxu0 %v358
      %v1895 = vpop.f32.mrf.mxu0
      %v1896 = vadd.f32 0.0, %v1895
      %v1897 = vpop.f32.mrf.mxu0
      %v1898 = vadd.f32 0.0, %v1897
      %1899 = vmatmul.bf16.gmra.mxu0 %v359
      %v1900 = vpop.f32.mrf.mxu0
      %v1901 = vadd.f32 0.0, %v1900
      %v1902 = vpop.f32.mrf.mxu0
      %v1903 = vadd.f32 0.0, %v1902
      %1904 = vmatmul.bf16.gmra.mxu0 %v360
      %v1905 = vpop.f32.mrf.mxu0
      %v1906 = vadd.f32 0.0, %v1905
      %v1907 = vpop.f32.mrf.mxu0
      %v1908 = vadd.f32 0.0, %v1907
      %1909 = vmatmul.bf16.gmra.mxu0 %v361
      %v1910 = vpop.f32.mrf.mxu0
      %v1911 = vadd.f32 0.0, %v1910
      %v1912 = vpop.f32.mrf.mxu0
      %v1913 = vadd.f32 0.0, %v1912
      %1914 = vmatmul.bf16.gmra.mxu0 %v362
      %v1915 = vpop.f32.mrf.mxu0
      %v1916 = vadd.f32 0.0, %v1915
      %v1917 = vpop.f32.mrf.mxu0
      %v1918 = vadd.f32 0.0, %v1917
      %1919 = vmatmul.bf16.gmra.mxu0 %v363
      %v1920 = vpop.f32.mrf.mxu0
      %v1921 = vadd.f32 0.0, %v1920
      %v1922 = vpop.f32.mrf.mxu0
      %v1923 = vadd.f32 0.0, %v1922
      %1924 = vmatmul.bf16.gmra.mxu0 %v364
      %v1925 = vpop.f32.mrf.mxu0
      %v1926 = vadd.f32 0.0, %v1925
      %v1927 = vpop.f32.mrf.mxu0
      %v1928 = vadd.f32 0.0, %v1927
      %1929 = vmatmul.bf16.gmra.mxu0 %v365
      %v1930 = vpop.f32.mrf.mxu0
      %v1931 = vadd.f32 0.0, %v1930
      %v1932 = vpop.f32.mrf.mxu0
      %v1933 = vadd.f32 0.0, %v1932
      %1934 = vmatmul.bf16.gmra.mxu0 %v366
      %v1935 = vpop.f32.mrf.mxu0
      %v1936 = vadd.f32 0.0, %v1935
      %v1937 = vpop.f32.mrf.mxu0
      %v1938 = vadd.f32 0.0, %v1937
      %1939 = vmatmul.bf16.gmra.mxu0 %v367
      %v1940 = vpop.f32.mrf.mxu0
      %v1941 = vadd.f32 0.0, %v1940
      %v1942 = vpop.f32.mrf.mxu0
      %v1943 = vadd.f32 0.0, %v1942
      %1944 = vmatmul.bf16.gmra.mxu0 %v368
      %v1945 = vpop.f32.mrf.mxu0
      %v1946 = vadd.f32 0.0, %v1945
      %v1947 = vpop.f32.mrf.mxu0
      %v1948 = vadd.f32 0.0, %v1947
      %1949 = vdwg.mxu0
      %1950 = vmatpush.bf16.msra.mxu0 %v1828
      %1951 = vmatpush.bf16.msra.mxu0 %v1827
      %1952 = vmatpush.bf16.msra.mxu0 %v1826
      %1953 = vmatpush.bf16.msra.mxu0 %v1825
      %1954 = vmatpush.bf16.msra.mxu0 %v1824
      %1955 = vmatpush.bf16.msra.mxu0 %v1823
      %1956 = vmatpush.bf16.msra.mxu0 %v1822
      %1957 = vmatpush.bf16.msra.mxu0 %v1821
      %1958 = vmatmul.bf16.gmra.mxu0 %v477
      %v1959 = vpop.f32.mrf.mxu0
      %v1960 = vadd.f32 %v1871, %v1959
      %v1961 = vpop.f32.mrf.mxu0
      %v1962 = vadd.f32 %v1873, %v1961
      %1963 = vmatmul.bf16.gmra.mxu0 %v489
      %v1964 = vpop.f32.mrf.mxu0
      %v1965 = vadd.f32 %v1876, %v1964
      %v1966 = vpop.f32.mrf.mxu0
      %v1967 = vadd.f32 %v1878, %v1966
      %1968 = vmatmul.bf16.gmra.mxu0 %v501
      %v1969 = vpop.f32.mrf.mxu0
      %v1970 = vadd.f32 %v1881, %v1969
      %v1971 = vpop.f32.mrf.mxu0
      %v1972 = vadd.f32 %v1883, %v1971
      %1973 = vmatmul.bf16.gmra.mxu0 %v513
      %v1974 = vpop.f32.mrf.mxu0
      %v1975 = vadd.f32 %v1886, %v1974
      %v1976 = vpop.f32.mrf.mxu0
      %v1977 = vadd.f32 %v1888, %v1976
      %1978 = vmatmul.bf16.gmra.mxu0 %v525
      %v1979 = vpop.f32.mrf.mxu0
      %v1980 = vadd.f32 %v1891, %v1979
      %v1981 = vpop.f32.mrf.mxu0
      %v1982 = vadd.f32 %v1893, %v1981
      %1983 = vmatmul.bf16.gmra.mxu0 %v537
      %v1984 = vpop.f32.mrf.mxu0
      %v1985 = vadd.f32 %v1896, %v1984
      %v1986 = vpop.f32.mrf.mxu0
      %v1987 = vadd.f32 %v1898, %v1986
      %1988 = vmatmul.bf16.gmra.mxu0 %v549
      %v1989 = vpop.f32.mrf.mxu0
      %v1990 = vadd.f32 %v1901, %v1989
      %v1991 = vpop.f32.mrf.mxu0
      %v1992 = vadd.f32 %v1903, %v1991
      %1993 = vmatmul.bf16.gmra.mxu0 %v561
      %v1994 = vpop.f32.mrf.mxu0
      %v1995 = vadd.f32 %v1906, %v1994
      %v1996 = vpop.f32.mrf.mxu0
      %v1997 = vadd.f32 %v1908, %v1996
      %1998 = vmatmul.bf16.gmra.mxu0 %v573
      %v1999 = vpop.f32.mrf.mxu0
      %v2000 = vadd.f32 %v1911, %v1999
      %v2001 = vpop.f32.mrf.mxu0
      %v2002 = vadd.f32 %v1913, %v2001
      %2003 = vmatmul.bf16.gmra.mxu0 %v585
      %v2004 = vpop.f32.mrf.mxu0
      %v2005 = vadd.f32 %v1916, %v2004
      %v2006 = vpop.f32.mrf.mxu0
      %v2007 = vadd.f32 %v1918, %v2006
      %2008 = vmatmul.bf16.gmra.mxu0 %v597
      %v2009 = vpop.f32.mrf.mxu0
      %v2010 = vadd.f32 %v1921, %v2009
      %v2011 = vpop.f32.mrf.mxu0
      %v2012 = vadd.f32 %v1923, %v2011
      %2013 = vmatmul.bf16.gmra.mxu0 %v609
      %v2014 = vpop.f32.mrf.mxu0
      %v2015 = vadd.f32 %v1926, %v2014
      %v2016 = vpop.f32.mrf.mxu0
      %v2017 = vadd.f32 %v1928, %v2016
      %2018 = vmatmul.bf16.gmra.mxu0 %v621
      %v2019 = vpop.f32.mrf.mxu0
      %v2020 = vadd.f32 %v1931, %v2019
      %v2021 = vpop.f32.mrf.mxu0
      %v2022 = vadd.f32 %v1933, %v2021
      %2023 = vmatmul.bf16.gmra.mxu0 %v633
      %v2024 = vpop.f32.mrf.mxu0
      %v2025 = vadd.f32 %v1936, %v2024
      %v2026 = vpop.f32.mrf.mxu0
      %v2027 = vadd.f32 %v1938, %v2026
      %2028 = vmatmul.bf16.gmra.mxu0 %v645
      %v2029 = vpop.f32.mrf.mxu0
      %v2030 = vadd.f32 %v1941, %v2029
      %v2031 = vpop.f32.mrf.mxu0
      %v2032 = vadd.f32 %v1943, %v2031
      %2033 = vmatmul.bf16.gmra.mxu0 %v657
      %v2034 = vpop.f32.mrf.mxu0
      %v2035 = vadd.f32 %v1946, %v2034
      %v2036 = vpop.f32.mrf.mxu0
      %v2037 = vadd.f32 %v1948, %v2036
      %2038 = vdwg.mxu0
      %2039 = vmatpush.bf16.msra.mxu0 %v1836
      %2040 = vmatpush.bf16.msra.mxu0 %v1835
      %2041 = vmatpush.bf16.msra.mxu0 %v1834
      %2042 = vmatpush.bf16.msra.mxu0 %v1833
      %2043 = vmatpush.bf16.msra.mxu0 %v1832
      %2044 = vmatpush.bf16.msra.mxu0 %v1831
      %2045 = vmatpush.bf16.msra.mxu0 %v1830
      %2046 = vmatpush.bf16.msra.mxu0 %v1829
      %2047 = vmatmul.bf16.gmra.mxu0 %v685
      %v2048 = vpop.f32.mrf.mxu0
      %v2049 = vadd.f32 %v1960, %v2048
      %v2050 = vpop.f32.mrf.mxu0
      %v2051 = vadd.f32 %v1962, %v2050
      %2052 = vmatmul.bf16.gmra.mxu0 %v688
      %v2053 = vpop.f32.mrf.mxu0
      %v2054 = vadd.f32 %v1965, %v2053
      %v2055 = vpop.f32.mrf.mxu0
      %v2056 = vadd.f32 %v1967, %v2055
      %2057 = vmatmul.bf16.gmra.mxu0 %v691
      %v2058 = vpop.f32.mrf.mxu0
      %v2059 = vadd.f32 %v1970, %v2058
      %v2060 = vpop.f32.mrf.mxu0
      %v2061 = vadd.f32 %v1972, %v2060
      %2062 = vmatmul.bf16.gmra.mxu0 %v694
      %v2063 = vpop.f32.mrf.mxu0
      %v2064 = vadd.f32 %v1975, %v2063
      %v2065 = vpop.f32.mrf.mxu0
      %v2066 = vadd.f32 %v1977, %v2065
      %2067 = vmatmul.bf16.gmra.mxu0 %v697
      %v2068 = vpop.f32.mrf.mxu0
      %v2069 = vadd.f32 %v1980, %v2068
      %v2070 = vpop.f32.mrf.mxu0
      %v2071 = vadd.f32 %v1982, %v2070
      %2072 = vmatmul.bf16.gmra.mxu0 %v700
      %v2073 = vpop.f32.mrf.mxu0
      %v2074 = vadd.f32 %v1985, %v2073
      %v2075 = vpop.f32.mrf.mxu0
      %v2076 = vadd.f32 %v1987, %v2075
      %2077 = vmatmul.bf16.gmra.mxu0 %v703
      %v2078 = vpop.f32.mrf.mxu0
      %v2079 = vadd.f32 %v1990, %v2078
      %v2080 = vpop.f32.mrf.mxu0
      %v2081 = vadd.f32 %v1992, %v2080
      %2082 = vmatmul.bf16.gmra.mxu0 %v706
      %v2083 = vpop.f32.mrf.mxu0
      %v2084 = vadd.f32 %v1995, %v2083
      %v2085 = vpop.f32.mrf.mxu0
      %v2086 = vadd.f32 %v1997, %v2085
      %2087 = vmatmul.bf16.gmra.mxu0 %v709
      %v2088 = vpop.f32.mrf.mxu0
      %v2089 = vadd.f32 %v2000, %v2088
      %v2090 = vpop.f32.mrf.mxu0
      %v2091 = vadd.f32 %v2002, %v2090
      %2092 = vmatmul.bf16.gmra.mxu0 %v712
      %v2093 = vpop.f32.mrf.mxu0
      %v2094 = vadd.f32 %v2005, %v2093
      %v2095 = vpop.f32.mrf.mxu0
      %v2096 = vadd.f32 %v2007, %v2095
      %2097 = vmatmul.bf16.gmra.mxu0 %v715
      %v2098 = vpop.f32.mrf.mxu0
      %v2099 = vadd.f32 %v2010, %v2098
      %v2100 = vpop.f32.mrf.mxu0
      %v2101 = vadd.f32 %v2012, %v2100
      %2102 = vmatmul.bf16.gmra.mxu0 %v718
      %v2103 = vpop.f32.mrf.mxu0
      %v2104 = vadd.f32 %v2015, %v2103
      %v2105 = vpop.f32.mrf.mxu0
      %v2106 = vadd.f32 %v2017, %v2105
      %2107 = vmatmul.bf16.gmra.mxu0 %v721
      %v2108 = vpop.f32.mrf.mxu0
      %v2109 = vadd.f32 %v2020, %v2108
      %v2110 = vpop.f32.mrf.mxu0
      %v2111 = vadd.f32 %v2022, %v2110
      %2112 = vmatmul.bf16.gmra.mxu0 %v724
      %v2113 = vpop.f32.mrf.mxu0
      %v2114 = vadd.f32 %v2025, %v2113
      %v2115 = vpop.f32.mrf.mxu0
      %v2116 = vadd.f32 %v2027, %v2115
      %2117 = vmatmul.bf16.gmra.mxu0 %v727
      %v2118 = vpop.f32.mrf.mxu0
      %v2119 = vadd.f32 %v2030, %v2118
      %v2120 = vpop.f32.mrf.mxu0
      %v2121 = vadd.f32 %v2032, %v2120
      %2122 = vmatmul.bf16.gmra.mxu0 %v730
      %v2123 = vpop.f32.mrf.mxu0
      %v2124 = vadd.f32 %v2035, %v2123
      %v2125 = vpop.f32.mrf.mxu0
      %v2126 = vadd.f32 %v2037, %v2125
      %2127 = vdwg.mxu0
      %v2128 = vadd.f32 %v1589, %v2049
      %v2129 = vadd.f32 %v1591, %v2051
      %v2130 = vadd.f32 %v1594, %v2054
      %v2131 = vadd.f32 %v1596, %v2056
      %v2132 = vadd.f32 %v1599, %v2059
      %v2133 = vadd.f32 %v1601, %v2061
      %v2134 = vadd.f32 %v1604, %v2064
      %v2135 = vadd.f32 %v1606, %v2066
      %v2136 = vadd.f32 %v1609, %v2069
      %v2137 = vadd.f32 %v1611, %v2071
      %v2138 = vadd.f32 %v1614, %v2074
      %v2139 = vadd.f32 %v1616, %v2076
      %v2140 = vadd.f32 %v1619, %v2079
      %v2141 = vadd.f32 %v1621, %v2081
      %v2142 = vadd.f32 %v1624, %v2084
      %v2143 = vadd.f32 %v1626, %v2086
      %v2144 = vadd.f32 %v1629, %v2089
      %v2145 = vadd.f32 %v1631, %v2091
      %v2146 = vadd.f32 %v1634, %v2094
      %v2147 = vadd.f32 %v1636, %v2096
      %v2148 = vadd.f32 %v1639, %v2099
      %v2149 = vadd.f32 %v1641, %v2101
      %v2150 = vadd.f32 %v1644, %v2104
      %v2151 = vadd.f32 %v1646, %v2106
      %v2152 = vadd.f32 %v1649, %v2109
      %v2153 = vadd.f32 %v1651, %v2111
      %v2154 = vadd.f32 %v1654, %v2114
      %v2155 = vadd.f32 %v1656, %v2116
      %v2156 = vadd.f32 %v1659, %v2119
      %v2157 = vadd.f32 %v1661, %v2121
      %v2158 = vadd.f32 %v1664, %v2124
      %v2159 = vadd.f32 %v1666, %v2126
      %v2160 = vadd.f32 %v2128, %v2129
      %v2161 = vadd.f32 %v2160, %v2130
      %v2162 = vadd.f32 %v2161, %v2131
      %v2163 = vadd.f32 %v2162, %v2132
      %v2164 = vadd.f32 %v2163, %v2133
      %v2165 = vadd.f32 %v2164, %v2134
      %v2166 = vadd.f32 %v2165, %v2135
      %v2167 = vadd.f32 %v2166, %v2136
      %v2168 = vadd.f32 %v2167, %v2137
      %v2169 = vadd.f32 %v2168, %v2138
      %v2170 = vadd.f32 %v2169, %v2139
      %v2171 = vadd.f32 %v2170, %v2140
      %v2172 = vadd.f32 %v2171, %v2141
      %v2173 = vadd.f32 %v2172, %v2142
      %v2174 = vadd.f32 %v2173, %v2143
      %v2175 = vadd.f32 %v2174, %v2144
      %v2176 = vadd.f32 %v2175, %v2145
      %v2177 = vadd.f32 %v2176, %v2146
      %v2178 = vadd.f32 %v2177, %v2147
      %v2179 = vadd.f32 %v2178, %v2148
      %v2180 = vadd.f32 %v2179, %v2149
      %v2181 = vadd.f32 %v2180, %v2150
      %v2182 = vadd.f32 %v2181, %v2151
      %v2183 = vadd.f32 %v2182, %v2152
      %v2184 = vadd.f32 %v2183, %v2153
      %v2185 = vadd.f32 %v2184, %v2154
      %v2186 = vadd.f32 %v2185, %v2155
      %v2187 = vadd.f32 %v2186, %v2156
      %v2188 = vadd.f32 %v2187, %v2157
      %v2189 = vadd.f32 %v2188, %v2158
      %v2190 = vadd.f32 %v2189, %v2159
      %v2191 = vrot.slane %v2190, 4
      %v2192 = vadd.f32 %v2190, %v2191
      %v2193 = vrot.slane %v2192, 2
      %v2194 = vadd.f32 %v2192, %v2193
      %v2195 = vrot.slane %v2194, 1
      %v2196 = vadd.f32 %v2194, %v2195
      %v2197 = vmul.f32 %v2196, 0.00390625
      %v2198 = vmul.f32 %v2128, %v2128
      %v2199 = vmul.f32 %v2129, %v2129
      %v2200 = vmul.f32 %v2130, %v2130
      %v2201 = vmul.f32 %v2131, %v2131
      %v2202 = vmul.f32 %v2132, %v2132
      %v2203 = vmul.f32 %v2133, %v2133
      %v2204 = vmul.f32 %v2134, %v2134
      %v2205 = vmul.f32 %v2135, %v2135
      %v2206 = vmul.f32 %v2136, %v2136
      %v2207 = vmul.f32 %v2137, %v2137
      %v2208 = vmul.f32 %v2138, %v2138
      %v2209 = vmul.f32 %v2139, %v2139
      %v2210 = vmul.f32 %v2140, %v2140
      %v2211 = vmul.f32 %v2141, %v2141
      %v2212 = vmul.f32 %v2142, %v2142
      %v2213 = vmul.f32 %v2143, %v2143
      %v2214 = vmul.f32 %v2144, %v2144
      %v2215 = vmul.f32 %v2145, %v2145
      %v2216 = vmul.f32 %v2146, %v2146
      %v2217 = vmul.f32 %v2147, %v2147
      %v2218 = vmul.f32 %v2148, %v2148
      %v2219 = vmul.f32 %v2149, %v2149
      %v2220 = vmul.f32 %v2150, %v2150
      %v2221 = vmul.f32 %v2151, %v2151
      %v2222 = vmul.f32 %v2152, %v2152
      %v2223 = vmul.f32 %v2153, %v2153
      %v2224 = vmul.f32 %v2154, %v2154
      %v2225 = vmul.f32 %v2155, %v2155
      %v2226 = vmul.f32 %v2156, %v2156
      %v2227 = vmul.f32 %v2157, %v2157
      %v2228 = vmul.f32 %v2158, %v2158
      %v2229 = vmul.f32 %v2159, %v2159
      %v2230 = vadd.f32 %v2198, %v2199
      %v2231 = vadd.f32 %v2230, %v2200
      %v2232 = vadd.f32 %v2231, %v2201
      %v2233 = vadd.f32 %v2232, %v2202
      %v2234 = vadd.f32 %v2233, %v2203
      %v2235 = vadd.f32 %v2234, %v2204
      %v2236 = vadd.f32 %v2235, %v2205
      %v2237 = vadd.f32 %v2236, %v2206
      %v2238 = vadd.f32 %v2237, %v2207
      %v2239 = vadd.f32 %v2238, %v2208
      %v2240 = vadd.f32 %v2239, %v2209
      %v2241 = vadd.f32 %v2240, %v2210
      %v2242 = vadd.f32 %v2241, %v2211
      %v2243 = vadd.f32 %v2242, %v2212
      %v2244 = vadd.f32 %v2243, %v2213
      %v2245 = vadd.f32 %v2244, %v2214
      %v2246 = vadd.f32 %v2245, %v2215
      %v2247 = vadd.f32 %v2246, %v2216
      %v2248 = vadd.f32 %v2247, %v2217
      %v2249 = vadd.f32 %v2248, %v2218
      %v2250 = vadd.f32 %v2249, %v2219
      %v2251 = vadd.f32 %v2250, %v2220
      %v2252 = vadd.f32 %v2251, %v2221
      %v2253 = vadd.f32 %v2252, %v2222
      %v2254 = vadd.f32 %v2253, %v2223
      %v2255 = vadd.f32 %v2254, %v2224
      %v2256 = vadd.f32 %v2255, %v2225
      %v2257 = vadd.f32 %v2256, %v2226
      %v2258 = vadd.f32 %v2257, %v2227
      %v2259 = vadd.f32 %v2258, %v2228
      %v2260 = vadd.f32 %v2259, %v2229
      %v2261 = vrot.slane %v2260, 4
      %v2262 = vadd.f32 %v2260, %v2261
      %v2263 = vrot.slane %v2262, 2
      %v2264 = vadd.f32 %v2262, %v2263
      %v2265 = vrot.slane %v2264, 1
      %v2266 = vadd.f32 %v2264, %v2265
      %v2267 = vmul.f32 %v2266, 0.00390625
      %v2268 = vmul.f32 %v2197, %v2197
      %v2269 = vsub.f32 %v2267, %v2268
      %v2270 = vmax.f32 %v2269, 0.0
      %v2271 = vadd.f32 %v2270, 1e-05
      %v2272 = vrsqrt.pop %v2271
      %v2273 = vmul.f32 %v2272, %v2271
      %v2274 = vmul.f32 %v2273, %v2272
      %v2275 = vmul.f32 0.5, %v2274
      %v2276 = vsub.f32 1.5, %v2275
      %v2277 = vmul.f32 %v2272, %v2276
      %vm2278 = vweird.f32 %v2271
      %vm2279 = vweird.f32 %v2272
      %vm2280 = vmor %vm2278, %vm2279
      %v2281 = vsel %vm2280, %v2272, %v2277
      %v2282 = vsub.f32 %v2128, %v2197
      %v2283 = vsub.f32 %v2129, %v2197
      %v2284 = vsub.f32 %v2130, %v2197
      %v2285 = vsub.f32 %v2131, %v2197
      %v2286 = vsub.f32 %v2132, %v2197
      %v2287 = vsub.f32 %v2133, %v2197
      %v2288 = vsub.f32 %v2134, %v2197
      %v2289 = vsub.f32 %v2135, %v2197
      %v2290 = vsub.f32 %v2136, %v2197
      %v2291 = vsub.f32 %v2137, %v2197
      %v2292 = vsub.f32 %v2138, %v2197
      %v2293 = vsub.f32 %v2139, %v2197
      %v2294 = vsub.f32 %v2140, %v2197
      %v2295 = vsub.f32 %v2141, %v2197
      %v2296 = vsub.f32 %v2142, %v2197
      %v2297 = vsub.f32 %v2143, %v2197
      %v2298 = vsub.f32 %v2144, %v2197
      %v2299 = vsub.f32 %v2145, %v2197
      %v2300 = vsub.f32 %v2146, %v2197
      %v2301 = vsub.f32 %v2147, %v2197
      %v2302 = vsub.f32 %v2148, %v2197
      %v2303 = vsub.f32 %v2149, %v2197
      %v2304 = vsub.f32 %v2150, %v2197
      %v2305 = vsub.f32 %v2151, %v2197
      %v2306 = vsub.f32 %v2152, %v2197
      %v2307 = vsub.f32 %v2153, %v2197
      %v2308 = vsub.f32 %v2154, %v2197
      %v2309 = vsub.f32 %v2155, %v2197
      %v2310 = vsub.f32 %v2156, %v2197
      %v2311 = vsub.f32 %v2157, %v2197
      %v2312 = vsub.f32 %v2158, %v2197
      %v2313 = vsub.f32 %v2159, %v2197
      %v2314 = vmul.f32 %v2282, %v2281
      %v2315 = vmul.f32 %v2283, %v2281
      %v2316 = vmul.f32 %v2284, %v2281
      %v2317 = vmul.f32 %v2285, %v2281
      %v2318 = vmul.f32 %v2286, %v2281
      %v2319 = vmul.f32 %v2287, %v2281
      %v2320 = vmul.f32 %v2288, %v2281
      %v2321 = vmul.f32 %v2289, %v2281
      %v2322 = vmul.f32 %v2290, %v2281
      %v2323 = vmul.f32 %v2291, %v2281
      %v2324 = vmul.f32 %v2292, %v2281
      %v2325 = vmul.f32 %v2293, %v2281
      %v2326 = vmul.f32 %v2294, %v2281
      %v2327 = vmul.f32 %v2295, %v2281
      %v2328 = vmul.f32 %v2296, %v2281
      %v2329 = vmul.f32 %v2297, %v2281
      %v2330 = vmul.f32 %v2298, %v2281
      %v2331 = vmul.f32 %v2299, %v2281
      %v2332 = vmul.f32 %v2300, %v2281
      %v2333 = vmul.f32 %v2301, %v2281
      %v2334 = vmul.f32 %v2302, %v2281
      %v2335 = vmul.f32 %v2303, %v2281
      %v2336 = vmul.f32 %v2304, %v2281
      %v2337 = vmul.f32 %v2305, %v2281
      %v2338 = vmul.f32 %v2306, %v2281
      %v2339 = vmul.f32 %v2307, %v2281
      %v2340 = vmul.f32 %v2308, %v2281
      %v2341 = vmul.f32 %v2309, %v2281
      %v2342 = vmul.f32 %v2310, %v2281
      %v2343 = vmul.f32 %v2311, %v2281
      %v2344 = vmul.f32 %v2312, %v2281
      %v2345 = vmul.f32 %v2313, %v2281
      %v2346 = vmax.f32 %v2314, 0.0
      %v2347 = vmax.f32 %v2315, 0.0
      %v2348 = vmax.f32 %v2316, 0.0
      %v2349 = vmax.f32 %v2317, 0.0
      %v2350 = vmax.f32 %v2318, 0.0
      %v2351 = vmax.f32 %v2319, 0.0
      %v2352 = vmax.f32 %v2320, 0.0
      %v2353 = vmax.f32 %v2321, 0.0
      %v2354 = vmax.f32 %v2322, 0.0
      %v2355 = vmax.f32 %v2323, 0.0
      %v2356 = vmax.f32 %v2324, 0.0
      %v2357 = vmax.f32 %v2325, 0.0
      %v2358 = vmax.f32 %v2326, 0.0
      %v2359 = vmax.f32 %v2327, 0.0
      %v2360 = vmax.f32 %v2328, 0.0
      %v2361 = vmax.f32 %v2329, 0.0
      %v2362 = vmax.f32 %v2330, 0.0
      %v2363 = vmax.f32 %v2331, 0.0
      %v2364 = vmax.f32 %v2332, 0.0
      %v2365 = vmax.f32 %v2333, 0.0
      %v2366 = vmax.f32 %v2334, 0.0
      %v2367 = vmax.f32 %v2335, 0.0
      %v2368 = vmax.f32 %v2336, 0.0
      %v2369 = vmax.f32 %v2337, 0.0
      %v2370 = vmax.f32 %v2338, 0.0
      %v2371 = vmax.f32 %v2339, 0.0
      %v2372 = vmax.f32 %v2340, 0.0
      %v2373 = vmax.f32 %v2341, 0.0
      %v2374 = vmax.f32 %v2342, 0.0
      %v2375 = vmax.f32 %v2343, 0.0
      %v2376 = vmax.f32 %v2344, 0.0
      %v2377 = vmax.f32 %v2345, 0.0
      %v2378 = vpack.c.bf16 %v2346, %v2346
      %v2379 = vpack.c.bf16 %v2347, %v2347
      %v2380 = vpack.c.bf16 %v2348, %v2348
      %v2381 = vpack.c.bf16 %v2349, %v2349
      %v2382 = vpack.c.bf16 %v2350, %v2350
      %v2383 = vpack.c.bf16 %v2351, %v2351
      %v2384 = vpack.c.bf16 %v2352, %v2352
      %v2385 = vpack.c.bf16 %v2353, %v2353
      %v2386 = vpack.c.bf16 %v2354, %v2354
      %v2387 = vpack.c.bf16 %v2355, %v2355
      %v2388 = vpack.c.bf16 %v2356, %v2356
      %v2389 = vpack.c.bf16 %v2357, %v2357
      %v2390 = vpack.c.bf16 %v2358, %v2358
      %v2391 = vpack.c.bf16 %v2359, %v2359
      %v2392 = vpack.c.bf16 %v2360, %v2360
      %v2393 = vpack.c.bf16 %v2361, %v2361
      %v2394 = vpack.c.bf16 %v2362, %v2362
      %v2395 = vpack.c.bf16 %v2363, %v2363
      %v2396 = vpack.c.bf16 %v2364, %v2364
      %v2397 = vpack.c.bf16 %v2365, %v2365
      %v2398 = vpack.c.bf16 %v2366, %v2366
      %v2399 = vpack.c.bf16 %v2367, %v2367
      %v2400 = vpack.c.bf16 %v2368, %v2368
      %v2401 = vpack.c.bf16 %v2369, %v2369
      %v2402 = vpack.c.bf16 %v2370, %v2370
      %v2403 = vpack.c.bf16 %v2371, %v2371
      %v2404 = vpack.c.bf16 %v2372, %v2372
      %v2405 = vpack.c.bf16 %v2373, %v2373
      %v2406 = vpack.c.bf16 %v2374, %v2374
      %v2407 = vpack.c.bf16 %v2375, %v2375
      %v2408 = vpack.c.bf16 %v2376, %v2376
      %v2409 = vpack.c.bf16 %v2377, %v2377
      %s2410 = scalar_lea.vmem [#allocation2], 24
      %2411 = vst [vmem:[%s2410 + $0x4] sm:$0xf] %v2378
      %2412 = vst [vmem:[%s2410 + $0x10] sm:$0xf] %v2379
      %2413 = vst [vmem:[%s2410 + $0x1c] sm:$0xf] %v2380
      %2414 = vst [vmem:[%s2410 + $0x28] sm:$0xf] %v2381
      %2415 = vst [vmem:[%s2410 + $0x34] sm:$0xf] %v2382
      %2416 = vst [vmem:[%s2410 + $0x40] sm:$0xf] %v2383
      %2417 = vst [vmem:[%s2410 + $0x4c] sm:$0xf] %v2384
      %2418 = vst [vmem:[%s2410 + $0x58] sm:$0xf] %v2385
      %2419 = vst [vmem:[%s2410 + $0x64] sm:$0xf] %v2386
      %2420 = vst [vmem:[%s2410 + $0x70] sm:$0xf] %v2387
      %2421 = vst [vmem:[%s2410 + $0x7c] sm:$0xf] %v2388
      %2422 = vst [vmem:[%s2410 + $0x88] sm:$0xf] %v2389
      %2423 = vst [vmem:[%s2410 + $0x94] sm:$0xf] %v2390
      %2424 = vst [vmem:[%s2410 + $0xa0] sm:$0xf] %v2391
      %2425 = vst [vmem:[%s2410 + $0xac] sm:$0xf] %v2392
      %2426 = vst [vmem:[%s2410 + $0xb8] sm:$0xf] %v2393
      %2427 = vst [vmem:[%s2410 + $0xc4] sm:$0xf] %v2394
      %2428 = vst [vmem:[%s2410 + $0xd0] sm:$0xf] %v2395
      %2429 = vst [vmem:[%s2410 + $0xdc] sm:$0xf] %v2396
      %2430 = vst [vmem:[%s2410 + $0xe8] sm:$0xf] %v2397
      %2431 = vst [vmem:[%s2410 + $0xf4] sm:$0xf] %v2398
      %2432 = vst [vmem:[%s2410 + $0x100] sm:$0xf] %v2399
      %2433 = vst [vmem:[%s2410 + $0x10c] sm:$0xf] %v2400
      %2434 = vst [vmem:[%s2410 + $0x118] sm:$0xf] %v2401
      %2435 = vst [vmem:[%s2410 + $0x124] sm:$0xf] %v2402
      %2436 = vst [vmem:[%s2410 + $0x130] sm:$0xf] %v2403
      %2437 = vst [vmem:[%s2410 + $0x13c] sm:$0xf] %v2404
      %2438 = vst [vmem:[%s2410 + $0x148] sm:$0xf] %v2405
      %2439 = vst [vmem:[%s2410 + $0x154] sm:$0xf] %v2406
      %2440 = vst [vmem:[%s2410 + $0x160] sm:$0xf] %v2407
      %2441 = vst [vmem:[%s2410 + $0x16c] sm:$0xf] %v2408
      %2442 = vst [vmem:[%s2410 + $0x178] sm:$0xf] %v2409
      %v2459 = vunpack.c.l.b16 %v2378
      %v2460 = vunpack.c.l.b16 %v2380
      %v2461 = vunpack.c.l.b16 %v2382
      %v2462 = vunpack.c.l.b16 %v2384
      %v2463 = vunpack.c.l.b16 %v2386
      %v2464 = vunpack.c.l.b16 %v2388
      %v2465 = vunpack.c.l.b16 %v2390
      %v2466 = vunpack.c.l.b16 %v2392
      %v2467 = vunpack.c.l.b16 %v2394
      %v2468 = vunpack.c.l.b16 %v2396
      %v2469 = vunpack.c.l.b16 %v2398
      %v2470 = vunpack.c.l.b16 %v2400
      %v2471 = vunpack.c.l.b16 %v2402
      %v2472 = vunpack.c.l.b16 %v2404
      %v2473 = vunpack.c.l.b16 %v2406
      %v2474 = vunpack.c.l.b16 %v2408
      %v2475 = vpack.c.b16 %v2459, %v2459
      %v2476 = vpack.c.b16 %v2460, %v2460
      %v2477 = vpack.c.b16 %v2461, %v2461
      %v2478 = vpack.c.b16 %v2462, %v2462
      %v2479 = vpack.c.b16 %v2463, %v2463
      %v2480 = vpack.c.b16 %v2464, %v2464
      %v2481 = vpack.c.b16 %v2465, %v2465
      %v2482 = vpack.c.b16 %v2466, %v2466
      %v2483 = vpack.c.b16 %v2467, %v2467
      %v2484 = vpack.c.b16 %v2468, %v2468
      %v2485 = vpack.c.b16 %v2469, %v2469
      %v2486 = vpack.c.b16 %v2470, %v2470
      %v2487 = vpack.c.b16 %v2471, %v2471
      %v2488 = vpack.c.b16 %v2472, %v2472
      %v2489 = vpack.c.b16 %v2473, %v2473
      %v2490 = vpack.c.b16 %v2474, %v2474
      %v2492 = vshrl.u32 %v2475, 16
      %v2495 = vshrl.u32 %v2476, 16
      %v2498 = vshrl.u32 %v2477, 16
      %v2501 = vshrl.u32 %v2478, 16
      %v2504 = vshrl.u32 %v2479, 16
      %v2507 = vshrl.u32 %v2480, 16
      %v2510 = vshrl.u32 %v2481, 16
      %v2513 = vshrl.u32 %v2482, 16
      %v2516 = vshrl.u32 %v2483, 16
      %v2519 = vshrl.u32 %v2484, 16
      %v2522 = vshrl.u32 %v2485, 16
      %v2525 = vshrl.u32 %v2486, 16
      %v2528 = vshrl.u32 %v2487, 16
      %v2531 = vshrl.u32 %v2488, 16
      %v2534 = vshrl.u32 %v2489, 16
      %v2537 = vshrl.u32 %v2490, 16
      %v2571 = vunpack.c.l.b16 %v2379
      %v2572 = vunpack.c.l.b16 %v2381
      %v2573 = vunpack.c.l.b16 %v2383
      %v2574 = vunpack.c.l.b16 %v2385
      %v2575 = vunpack.c.l.b16 %v2387
      %v2576 = vunpack.c.l.b16 %v2389
      %v2577 = vunpack.c.l.b16 %v2391
      %v2578 = vunpack.c.l.b16 %v2393
      %v2579 = vunpack.c.l.b16 %v2395
      %v2580 = vunpack.c.l.b16 %v2397
      %v2581 = vunpack.c.l.b16 %v2399
      %v2582 = vunpack.c.l.b16 %v2401
      %v2583 = vunpack.c.l.b16 %v2403
      %v2584 = vunpack.c.l.b16 %v2405
      %v2585 = vunpack.c.l.b16 %v2407
      %v2586 = vunpack.c.l.b16 %v2409
      %v2587 = vpack.c.b16 %v2571, %v2459
      %v2588 = vpack.c.b16 %v2572, %v2460
      %v2589 = vpack.c.b16 %v2573, %v2461
      %v2590 = vpack.c.b16 %v2574, %v2462
      %v2591 = vpack.c.b16 %v2575, %v2463
      %v2592 = vpack.c.b16 %v2576, %v2464
      %v2593 = vpack.c.b16 %v2577, %v2465
      %v2594 = vpack.c.b16 %v2578, %v2466
      %v2595 = vpack.c.b16 %v2579, %v2467
      %v2596 = vpack.c.b16 %v2580, %v2468
      %v2597 = vpack.c.b16 %v2581, %v2469
      %v2598 = vpack.c.b16 %v2582, %v2470
      %v2599 = vpack.c.b16 %v2583, %v2471
      %v2600 = vpack.c.b16 %v2584, %v2472
      %v2601 = vpack.c.b16 %v2585, %v2473
      %v2602 = vpack.c.b16 %v2586, %v2474
      %v2604 = vshrl.u32 %v2587, 16
      %v2606 = vrot.slane %v2604, 7
      %v2607 = vshll.u32 %v2587, 16
      %v2609 = vor.u32 %v2606, %v2607
      %v2611 = vshrl.u32 %v2588, 16
      %v2613 = vrot.slane %v2611, 7
      %v2614 = vshll.u32 %v2588, 16
      %v2616 = vor.u32 %v2613, %v2614
      %v2618 = vshrl.u32 %v2589, 16
      %v2620 = vrot.slane %v2618, 7
      %v2621 = vshll.u32 %v2589, 16
      %v2623 = vor.u32 %v2620, %v2621
      %v2625 = vshrl.u32 %v2590, 16
      %v2627 = vrot.slane %v2625, 7
      %v2628 = vshll.u32 %v2590, 16
      %v2630 = vor.u32 %v2627, %v2628
      %v2632 = vshrl.u32 %v2591, 16
      %v2634 = vrot.slane %v2632, 7
      %v2635 = vshll.u32 %v2591, 16
      %v2637 = vor.u32 %v2634, %v2635
      %v2639 = vshrl.u32 %v2592, 16
      %v2641 = vrot.slane %v2639, 7
      %v2642 = vshll.u32 %v2592, 16
      %v2644 = vor.u32 %v2641, %v2642
      %v2646 = vshrl.u32 %v2593, 16
      %v2648 = vrot.slane %v2646, 7
      %v2649 = vshll.u32 %v2593, 16
      %v2651 = vor.u32 %v2648, %v2649
      %v2653 = vshrl.u32 %v2594, 16
      %v2655 = vrot.slane %v2653, 7
      %v2656 = vshll.u32 %v2594, 16
      %v2658 = vor.u32 %v2655, %v2656
      %v2660 = vshrl.u32 %v2595, 16
      %v2662 = vrot.slane %v2660, 7
      %v2663 = vshll.u32 %v2595, 16
      %v2665 = vor.u32 %v2662, %v2663
      %v2667 = vshrl.u32 %v2596, 16
      %v2669 = vrot.slane %v2667, 7
      %v2670 = vshll.u32 %v2596, 16
      %v2672 = vor.u32 %v2669, %v2670
      %v2674 = vshrl.u32 %v2597, 16
      %v2676 = vrot.slane %v2674, 7
      %v2677 = vshll.u32 %v2597, 16
      %v2679 = vor.u32 %v2676, %v2677
      %v2681 = vshrl.u32 %v2598, 16
      %v2683 = vrot.slane %v2681, 7
      %v2684 = vshll.u32 %v2598, 16
      %v2686 = vor.u32 %v2683, %v2684
      %v2688 = vshrl.u32 %v2599, 16
      %v2690 = vrot.slane %v2688, 7
      %v2691 = vshll.u32 %v2599, 16
      %v2693 = vor.u32 %v2690, %v2691
      %v2695 = vshrl.u32 %v2600, 16
      %v2697 = vrot.slane %v2695, 7
      %v2698 = vshll.u32 %v2600, 16
      %v2700 = vor.u32 %v2697, %v2698
      %v2702 = vshrl.u32 %v2601, 16
      %v2704 = vrot.slane %v2702, 7
      %v2705 = vshll.u32 %v2601, 16
      %v2707 = vor.u32 %v2704, %v2705
      %v2709 = vshrl.u32 %v2602, 16
      %v2711 = vrot.slane %v2709, 7
      %v2712 = vshll.u32 %v2602, 16
      %v2714 = vor.u32 %v2711, %v2712
      %vm2731 = vcmask 1040384
      %vm2732 = vsmask.f32 256
      %vm2733 = vmand %vm2731, %vm2732
      %v2734 = vsel %vm2733, %v2492, %v2609
      %v2735 = vsel %vm2733, %v2495, %v2616
      %v2736 = vsel %vm2733, %v2498, %v2623
      %v2737 = vsel %vm2733, %v2501, %v2630
      %v2738 = vsel %vm2733, %v2504, %v2637
      %v2739 = vsel %vm2733, %v2507, %v2644
      %v2740 = vsel %vm2733, %v2510, %v2651
      %v2741 = vsel %vm2733, %v2513, %v2658
      %v2742 = vsel %vm2733, %v2516, %v2665
      %v2743 = vsel %vm2733, %v2519, %v2672
      %v2744 = vsel %vm2733, %v2522, %v2679
      %v2745 = vsel %vm2733, %v2525, %v2686
      %v2746 = vsel %vm2733, %v2528, %v2693
      %v2747 = vsel %vm2733, %v2531, %v2700
      %v2748 = vsel %vm2733, %v2534, %v2707
      %v2749 = vsel %vm2733, %v2537, %v2714
      %v2766 = vunpack.c.l.b16 %v2734
      %v2767 = vunpack.c.h.b16 %v2734
      %v2768 = vunpack.c.l.b16 %v2735
      %v2769 = vunpack.c.h.b16 %v2735
      %v2770 = vunpack.c.l.b16 %v2736
      %v2771 = vunpack.c.h.b16 %v2736
      %v2772 = vunpack.c.l.b16 %v2737
      %v2773 = vunpack.c.h.b16 %v2737
      %v2774 = vunpack.c.l.b16 %v2738
      %v2775 = vunpack.c.h.b16 %v2738
      %v2776 = vunpack.c.l.b16 %v2739
      %v2777 = vunpack.c.h.b16 %v2739
      %v2778 = vunpack.c.l.b16 %v2740
      %v2779 = vunpack.c.h.b16 %v2740
      %v2780 = vunpack.c.l.b16 %v2741
      %v2781 = vunpack.c.h.b16 %v2741
      %v2782 = vunpack.c.l.b16 %v2742
      %v2783 = vunpack.c.h.b16 %v2742
      %v2784 = vunpack.c.l.b16 %v2743
      %v2785 = vunpack.c.h.b16 %v2743
      %v2786 = vunpack.c.l.b16 %v2744
      %v2787 = vunpack.c.h.b16 %v2744
      %v2788 = vunpack.c.l.b16 %v2745
      %v2789 = vunpack.c.h.b16 %v2745
      %v2790 = vunpack.c.l.b16 %v2746
      %v2791 = vunpack.c.h.b16 %v2746
      %v2792 = vunpack.c.l.b16 %v2747
      %v2793 = vunpack.c.h.b16 %v2747
      %v2794 = vunpack.c.l.b16 %v2748
      %v2795 = vunpack.c.h.b16 %v2748
      %v2796 = vunpack.c.l.b16 %v2749
      %v2797 = vunpack.c.h.b16 %v2749
      %v2798 = vpack.c.b16 %v2766, %v2766
      %v2799 = vpack.c.b16 %v2767, %v2767
      %v2800 = vpack.c.b16 %v2768, %v2768
      %v2801 = vpack.c.b16 %v2769, %v2769
      %v2802 = vpack.c.b16 %v2770, %v2770
      %v2803 = vpack.c.b16 %v2771, %v2771
      %v2804 = vpack.c.b16 %v2772, %v2772
      %v2805 = vpack.c.b16 %v2773, %v2773
      %v2806 = vpack.c.b16 %v2774, %v2774
      %v2807 = vpack.c.b16 %v2775, %v2775
      %v2808 = vpack.c.b16 %v2776, %v2776
      %v2809 = vpack.c.b16 %v2777, %v2777
      %v2810 = vpack.c.b16 %v2778, %v2778
      %v2811 = vpack.c.b16 %v2779, %v2779
      %v2812 = vpack.c.b16 %v2780, %v2780
      %v2813 = vpack.c.b16 %v2781, %v2781
      %v2814 = vpack.c.b16 %v2782, %v2782
      %v2815 = vpack.c.b16 %v2783, %v2783
      %v2816 = vpack.c.b16 %v2784, %v2784
      %v2817 = vpack.c.b16 %v2785, %v2785
      %v2818 = vpack.c.b16 %v2786, %v2786
      %v2819 = vpack.c.b16 %v2787, %v2787
      %v2820 = vpack.c.b16 %v2788, %v2788
      %v2821 = vpack.c.b16 %v2789, %v2789
      %v2822 = vpack.c.b16 %v2790, %v2790
      %v2823 = vpack.c.b16 %v2791, %v2791
      %v2824 = vpack.c.b16 %v2792, %v2792
      %v2825 = vpack.c.b16 %v2793, %v2793
      %v2826 = vpack.c.b16 %v2794, %v2794
      %v2827 = vpack.c.b16 %v2795, %v2795
      %v2828 = vpack.c.b16 %v2796, %v2796
      %v2829 = vpack.c.b16 %v2797, %v2797
      %2862 = vst [vmem:[%s2410] sm:$0xf] %v2798
      %2863 = vst [vmem:[%s2410 + $0xc] sm:$0xf] %v2799
      %2864 = vst [vmem:[%s2410 + $0x18] sm:$0xf] %v2800
      %2865 = vst [vmem:[%s2410 + $0x24] sm:$0xf] %v2801
      %2866 = vst [vmem:[%s2410 + $0x30] sm:$0xf] %v2802
      %2867 = vst [vmem:[%s2410 + $0x3c] sm:$0xf] %v2803
      %2868 = vst [vmem:[%s2410 + $0x48] sm:$0xf] %v2804
      %2869 = vst [vmem:[%s2410 + $0x54] sm:$0xf] %v2805
      %2870 = vst [vmem:[%s2410 + $0x60] sm:$0xf] %v2806
      %2871 = vst [vmem:[%s2410 + $0x6c] sm:$0xf] %v2807
      %2872 = vst [vmem:[%s2410 + $0x78] sm:$0xf] %v2808
      %2873 = vst [vmem:[%s2410 + $0x84] sm:$0xf] %v2809
      %2874 = vst [vmem:[%s2410 + $0x90] sm:$0xf] %v2810
      %2875 = vst [vmem:[%s2410 + $0x9c] sm:$0xf] %v2811
      %2876 = vst [vmem:[%s2410 + $0xa8] sm:$0xf] %v2812
      %2877 = vst [vmem:[%s2410 + $0xb4] sm:$0xf] %v2813
      %2878 = vst [vmem:[%s2410 + $0xc0] sm:$0xf] %v2814
      %2879 = vst [vmem:[%s2410 + $0xcc] sm:$0xf] %v2815
      %2880 = vst [vmem:[%s2410 + $0xd8] sm:$0xf] %v2816
      %2881 = vst [vmem:[%s2410 + $0xe4] sm:$0xf] %v2817
      %2882 = vst [vmem:[%s2410 + $0xf0] sm:$0xf] %v2818
      %2883 = vst [vmem:[%s2410 + $0xfc] sm:$0xf] %v2819
      %2884 = vst [vmem:[%s2410 + $0x108] sm:$0xf] %v2820
      %2885 = vst [vmem:[%s2410 + $0x114] sm:$0xf] %v2821
      %2886 = vst [vmem:[%s2410 + $0x120] sm:$0xf] %v2822
      %2887 = vst [vmem:[%s2410 + $0x12c] sm:$0xf] %v2823
      %2888 = vst [vmem:[%s2410 + $0x138] sm:$0xf] %v2824
      %2889 = vst [vmem:[%s2410 + $0x144] sm:$0xf] %v2825
      %2890 = vst [vmem:[%s2410 + $0x150] sm:$0xf] %v2826
      %2891 = vst [vmem:[%s2410 + $0x15c] sm:$0xf] %v2827
      %2892 = vst [vmem:[%s2410 + $0x168] sm:$0xf] %v2828
      %2893 = vst [vmem:[%s2410 + $0x174] sm:$0xf] %v2829
      %v2894 = vrot.slane %v2607, 1
      %v2895 = vor.u32 %v2604, %v2894
      %v2896 = vrot.slane %v2614, 1
      %v2897 = vor.u32 %v2611, %v2896
      %v2898 = vrot.slane %v2621, 1
      %v2899 = vor.u32 %v2618, %v2898
      %v2900 = vrot.slane %v2628, 1
      %v2901 = vor.u32 %v2625, %v2900
      %v2902 = vrot.slane %v2635, 1
      %v2903 = vor.u32 %v2632, %v2902
      %v2904 = vrot.slane %v2642, 1
      %v2905 = vor.u32 %v2639, %v2904
      %v2906 = vrot.slane %v2649, 1
      %v2907 = vor.u32 %v2646, %v2906
      %v2908 = vrot.slane %v2656, 1
      %v2909 = vor.u32 %v2653, %v2908
      %v2910 = vrot.slane %v2663, 1
      %v2911 = vor.u32 %v2660, %v2910
      %v2912 = vrot.slane %v2670, 1
      %v2913 = vor.u32 %v2667, %v2912
      %v2914 = vrot.slane %v2677, 1
      %v2915 = vor.u32 %v2674, %v2914
      %v2916 = vrot.slane %v2684, 1
      %v2917 = vor.u32 %v2681, %v2916
      %v2918 = vrot.slane %v2691, 1
      %v2919 = vor.u32 %v2688, %v2918
      %v2920 = vrot.slane %v2698, 1
      %v2921 = vor.u32 %v2695, %v2920
      %v2922 = vrot.slane %v2705, 1
      %v2923 = vor.u32 %v2702, %v2922
      %v2924 = vrot.slane %v2712, 1
      %v2925 = vor.u32 %v2709, %v2924
      %v2942 = vpack.c.b16 %v2571, %v2571
      %v2943 = vpack.c.b16 %v2572, %v2572
      %v2944 = vpack.c.b16 %v2573, %v2573
      %v2945 = vpack.c.b16 %v2574, %v2574
      %v2946 = vpack.c.b16 %v2575, %v2575
      %v2947 = vpack.c.b16 %v2576, %v2576
      %v2948 = vpack.c.b16 %v2577, %v2577
      %v2949 = vpack.c.b16 %v2578, %v2578
      %v2950 = vpack.c.b16 %v2579, %v2579
      %v2951 = vpack.c.b16 %v2580, %v2580
      %v2952 = vpack.c.b16 %v2581, %v2581
      %v2953 = vpack.c.b16 %v2582, %v2582
      %v2954 = vpack.c.b16 %v2583, %v2583
      %v2955 = vpack.c.b16 %v2584, %v2584
      %v2956 = vpack.c.b16 %v2585, %v2585
      %v2957 = vpack.c.b16 %v2586, %v2586
      %v2959 = vshll.u32 %v2942, 16
      %v2961 = vrot.slane %v2959, 4
      %v2963 = vshll.u32 %v2943, 16
      %v2965 = vrot.slane %v2963, 4
      %v2967 = vshll.u32 %v2944, 16
      %v2969 = vrot.slane %v2967, 4
      %v2971 = vshll.u32 %v2945, 16
      %v2973 = vrot.slane %v2971, 4
      %v2975 = vshll.u32 %v2946, 16
      %v2977 = vrot.slane %v2975, 4
      %v2979 = vshll.u32 %v2947, 16
      %v2981 = vrot.slane %v2979, 4
      %v2983 = vshll.u32 %v2948, 16
      %v2985 = vrot.slane %v2983, 4
      %v2987 = vshll.u32 %v2949, 16
      %v2989 = vrot.slane %v2987, 4
      %v2991 = vshll.u32 %v2950, 16
      %v2993 = vrot.slane %v2991, 4
      %v2995 = vshll.u32 %v2951, 16
      %v2997 = vrot.slane %v2995, 4
      %v2999 = vshll.u32 %v2952, 16
      %v3001 = vrot.slane %v2999, 4
      %v3003 = vshll.u32 %v2953, 16
      %v3005 = vrot.slane %v3003, 4
      %v3007 = vshll.u32 %v2954, 16
      %v3009 = vrot.slane %v3007, 4
      %v3011 = vshll.u32 %v2955, 16
      %v3013 = vrot.slane %v3011, 4
      %v3015 = vshll.u32 %v2956, 16
      %v3017 = vrot.slane %v3015, 4
      %v3019 = vshll.u32 %v2957, 16
      %v3021 = vrot.slane %v3019, 4
      %vm3038 = vcmask 1047552
      %vm3039 = vmand %vm3038, %vm441
      %v3040 = vsel %vm3039, %v2895, %v2961
      %v3041 = vsel %vm3039, %v2897, %v2965
      %v3042 = vsel %vm3039, %v2899, %v2969
      %v3043 = vsel %vm3039, %v2901, %v2973
      %v3044 = vsel %vm3039, %v2903, %v2977
      %v3045 = vsel %vm3039, %v2905, %v2981
      %v3046 = vsel %vm3039, %v2907, %v2985
      %v3047 = vsel %vm3039, %v2909, %v2989
      %v3048 = vsel %vm3039, %v2911, %v2993
      %v3049 = vsel %vm3039, %v2913, %v2997
      %v3050 = vsel %vm3039, %v2915, %v3001
      %v3051 = vsel %vm3039, %v2917, %v3005
      %v3052 = vsel %vm3039, %v2919, %v3009
      %v3053 = vsel %vm3039, %v2921, %v3013
      %v3054 = vsel %vm3039, %v2923, %v3017
      %v3055 = vsel %vm3039, %v2925, %v3021
      %v3072 = vunpack.c.l.b16 %v3040
      %v3073 = vunpack.c.h.b16 %v3040
      %v3074 = vunpack.c.l.b16 %v3041
      %v3075 = vunpack.c.h.b16 %v3041
      %v3076 = vunpack.c.l.b16 %v3042
      %v3077 = vunpack.c.h.b16 %v3042
      %v3078 = vunpack.c.l.b16 %v3043
      %v3079 = vunpack.c.h.b16 %v3043
      %v3080 = vunpack.c.l.b16 %v3044
      %v3081 = vunpack.c.h.b16 %v3044
      %v3082 = vunpack.c.l.b16 %v3045
      %v3083 = vunpack.c.h.b16 %v3045
      %v3084 = vunpack.c.l.b16 %v3046
      %v3085 = vunpack.c.h.b16 %v3046
      %v3086 = vunpack.c.l.b16 %v3047
      %v3087 = vunpack.c.h.b16 %v3047
      %v3088 = vunpack.c.l.b16 %v3048
      %v3089 = vunpack.c.h.b16 %v3048
      %v3090 = vunpack.c.l.b16 %v3049
      %v3091 = vunpack.c.h.b16 %v3049
      %v3092 = vunpack.c.l.b16 %v3050
      %v3093 = vunpack.c.h.b16 %v3050
      %v3094 = vunpack.c.l.b16 %v3051
      %v3095 = vunpack.c.h.b16 %v3051
      %v3096 = vunpack.c.l.b16 %v3052
      %v3097 = vunpack.c.h.b16 %v3052
      %v3098 = vunpack.c.l.b16 %v3053
      %v3099 = vunpack.c.h.b16 %v3053
      %v3100 = vunpack.c.l.b16 %v3054
      %v3101 = vunpack.c.h.b16 %v3054
      %v3102 = vunpack.c.l.b16 %v3055
      %v3103 = vunpack.c.h.b16 %v3055
      %v3104 = vpack.c.b16 %v3072, %v3072
      %v3105 = vpack.c.b16 %v3073, %v3073
      %v3106 = vpack.c.b16 %v3074, %v3074
      %v3107 = vpack.c.b16 %v3075, %v3075
      %v3108 = vpack.c.b16 %v3076, %v3076
      %v3109 = vpack.c.b16 %v3077, %v3077
      %v3110 = vpack.c.b16 %v3078, %v3078
      %v3111 = vpack.c.b16 %v3079, %v3079
      %v3112 = vpack.c.b16 %v3080, %v3080
      %v3113 = vpack.c.b16 %v3081, %v3081
      %v3114 = vpack.c.b16 %v3082, %v3082
      %v3115 = vpack.c.b16 %v3083, %v3083
      %v3116 = vpack.c.b16 %v3084, %v3084
      %v3117 = vpack.c.b16 %v3085, %v3085
      %v3118 = vpack.c.b16 %v3086, %v3086
      %v3119 = vpack.c.b16 %v3087, %v3087
      %v3120 = vpack.c.b16 %v3088, %v3088
      %v3121 = vpack.c.b16 %v3089, %v3089
      %v3122 = vpack.c.b16 %v3090, %v3090
      %v3123 = vpack.c.b16 %v3091, %v3091
      %v3124 = vpack.c.b16 %v3092, %v3092
      %v3125 = vpack.c.b16 %v3093, %v3093
      %v3126 = vpack.c.b16 %v3094, %v3094
      %v3127 = vpack.c.b16 %v3095, %v3095
      %v3128 = vpack.c.b16 %v3096, %v3096
      %v3129 = vpack.c.b16 %v3097, %v3097
      %v3130 = vpack.c.b16 %v3098, %v3098
      %v3131 = vpack.c.b16 %v3099, %v3099
      %v3132 = vpack.c.b16 %v3100, %v3100
      %v3133 = vpack.c.b16 %v3101, %v3101
      %v3134 = vpack.c.b16 %v3102, %v3102
      %v3135 = vpack.c.b16 %v3103, %v3103
      %3168 = vst [vmem:[%s2410 + $0x8] sm:$0xf] %v3104
      %3169 = vst [vmem:[%s2410 + $0x14] sm:$0xf] %v3105
      %3170 = vst [vmem:[%s2410 + $0x20] sm:$0xf] %v3106
      %3171 = vst [vmem:[%s2410 + $0x2c] sm:$0xf] %v3107
      %3172 = vst [vmem:[%s2410 + $0x38] sm:$0xf] %v3108
      %3173 = vst [vmem:[%s2410 + $0x44] sm:$0xf] %v3109
      %3174 = vst [vmem:[%s2410 + $0x50] sm:$0xf] %v3110
      %3175 = vst [vmem:[%s2410 + $0x5c] sm:$0xf] %v3111
      %3176 = vst [vmem:[%s2410 + $0x68] sm:$0xf] %v3112
      %3177 = vst [vmem:[%s2410 + $0x74] sm:$0xf] %v3113
      %3178 = vst [vmem:[%s2410 + $0x80] sm:$0xf] %v3114
      %3179 = vst [vmem:[%s2410 + $0x8c] sm:$0xf] %v3115
      %3180 = vst [vmem:[%s2410 + $0x98] sm:$0xf] %v3116
      %3181 = vst [vmem:[%s2410 + $0xa4] sm:$0xf] %v3117
      %3182 = vst [vmem:[%s2410 + $0xb0] sm:$0xf] %v3118
      %3183 = vst [vmem:[%s2410 + $0xbc] sm:$0xf] %v3119
      %3184 = vst [vmem:[%s2410 + $0xc8] sm:$0xf] %v3120
      %3185 = vst [vmem:[%s2410 + $0xd4] sm:$0xf] %v3121
      %3186 = vst [vmem:[%s2410 + $0xe0] sm:$0xf] %v3122
      %3187 = vst [vmem:[%s2410 + $0xec] sm:$0xf] %v3123
      %3188 = vst [vmem:[%s2410 + $0xf8] sm:$0xf] %v3124
      %3189 = vst [vmem:[%s2410 + $0x104] sm:$0xf] %v3125
      %3190 = vst [vmem:[%s2410 + $0x110] sm:$0xf] %v3126
      %3191 = vst [vmem:[%s2410 + $0x11c] sm:$0xf] %v3127
      %3192 = vst [vmem:[%s2410 + $0x128] sm:$0xf] %v3128
      %3193 = vst [vmem:[%s2410 + $0x134] sm:$0xf] %v3129
      %3194 = vst [vmem:[%s2410 + $0x140] sm:$0xf] %v3130
      %3195 = vst [vmem:[%s2410 + $0x14c] sm:$0xf] %v3131
      %3196 = vst [vmem:[%s2410 + $0x158] sm:$0xf] %v3132
      %3197 = vst [vmem:[%s2410 + $0x164] sm:$0xf] %v3133
      %3198 = vst [vmem:[%s2410 + $0x170] sm:$0xf] %v3134
      %3199 = vst [vmem:[%s2410 + $0x17c] sm:$0xf] %v3135
      %s3200 = scalar_lea.vmem [#allocation2], 48
      %v3201 = vld [vmem:[%s3200] sm:$0xff]
      %v3202 = vld [vmem:[%s3200 + $0x8] sm:$0xf]
      %v3203 = vld [vmem:[%s3200 + $0xc] sm:$0xff]
      %v3204 = vld [vmem:[%s3200 + $0x14] sm:$0xf]
      %3205 = vst [vmem:[#allocation2] sm:$0xff] %v3201
      %3206 = vst [vmem:[#allocation2 + $0x8] sm:$0xf] %v3202
      %3207 = vst [vmem:[#allocation2 + $0xc] sm:$0xff] %v3203
      %3208 = vst [vmem:[#allocation2 + $0x14] sm:$0xf] %v3204
      %s3209 = scalar_lea.vmem [#allocation2], 360
      %v3210 = vld [vmem:[%s3209] sm:$0xff]
      %v3211 = vld [vmem:[%s3209 + $0x8] sm:$0xf]
      %v3212 = vld [vmem:[%s3209 + $0xc] sm:$0xff]
      %v3213 = vld [vmem:[%s3209 + $0x14] sm:$0xf]
      %s3214 = scalar_lea.vmem [#allocation2], 408
      %3215 = vst [vmem:[%s3214] sm:$0xff] %v3210
      %3216 = vst [vmem:[%s3214 + $0x8] sm:$0xf] %v3211
      %3217 = vst [vmem:[%s3214 + $0xc] sm:$0xff] %v3212
      %3218 = vst [vmem:[%s3214 + $0x14] sm:$0xf] %v3213
      %v3219 = vld [vmem:[#allocation2] sm:$0xff]
      %v3220 = vld [vmem:[#allocation2 + $0x8] sm:$0xf]
      %v3221 = vld [vmem:[#allocation2 + $0xc] sm:$0xff]
      %v3222 = vld [vmem:[#allocation2 + $0x14] sm:$0xf]
      %v3223 = vld [vmem:[#allocation2 + $0x18] sm:$0xff]
      %v3224 = vld [vmem:[#allocation2 + $0x20] sm:$0xf]
      %v3225 = vld [vmem:[#allocation2 + $0x24] sm:$0xff]
      %v3226 = vld [vmem:[#allocation2 + $0x2c] sm:$0xf]
      %v3227 = vld [vmem:[#allocation2 + $0x30] sm:$0xff]
      %v3228 = vld [vmem:[#allocation2 + $0x38] sm:$0xf]
      %v3229 = vld [vmem:[#allocation2 + $0x3c] sm:$0xff]
      %v3230 = vld [vmem:[#allocation2 + $0x44] sm:$0xf]
      %v3231 = vld [vmem:[#allocation2 + $0x48] sm:$0xff]
      %v3232 = vld [vmem:[#allocation2 + $0x50] sm:$0xf]
      %v3233 = vld [vmem:[#allocation2 + $0x54] sm:$0xff]
      %v3234 = vld [vmem:[#allocation2 + $0x5c] sm:$0xf]
      %v3235 = vld [vmem:[#allocation2 + $0x60] sm:$0xff]
      %v3236 = vld [vmem:[#allocation2 + $0x68] sm:$0xf]
      %v3237 = vld [vmem:[#allocation2 + $0x6c] sm:$0xff]
      %v3238 = vld [vmem:[#allocation2 + $0x74] sm:$0xf]
      %v3239 = vld [vmem:[#allocation2 + $0x78] sm:$0xff]
      %v3240 = vld [vmem:[#allocation2 + $0x80] sm:$0xf]
      %v3241 = vld [vmem:[#allocation2 + $0x84] sm:$0xff]
      %v3242 = vld [vmem:[#allocation2 + $0x8c] sm:$0xf]
      %v3243 = vld [vmem:[#allocation2 + $0x90] sm:$0xff]
      %v3244 = vld [vmem:[#allocation2 + $0x98] sm:$0xf]
      %v3245 = vld [vmem:[#allocation2 + $0x9c] sm:$0xff]
      %v3246 = vld [vmem:[#allocation2 + $0xa4] sm:$0xf]
      %v3247 = vld [vmem:[#allocation2 + $0xa8] sm:$0xff]
      %v3248 = vld [vmem:[#allocation2 + $0xb0] sm:$0xf]
      %v3249 = vld [vmem:[#allocation2 + $0xb4] sm:$0xff]
      %v3250 = vld [vmem:[#allocation2 + $0xbc] sm:$0xf]
      %v3251 = vld [vmem:[#allocation2 + $0xc0] sm:$0xff]
      %v3252 = vld [vmem:[#allocation2 + $0xc8] sm:$0xf]
      %v3253 = vld [vmem:[#allocation2 + $0xcc] sm:$0xff]
      %v3254 = vld [vmem:[#allocation2 + $0xd4] sm:$0xf]
      %v3255 = vld [vmem:[#allocation2 + $0xd8] sm:$0xff]
      %v3256 = vld [vmem:[#allocation2 + $0xe0] sm:$0xf]
      %v3257 = vld [vmem:[#allocation2 + $0xe4] sm:$0xff]
      %v3258 = vld [vmem:[#allocation2 + $0xec] sm:$0xf]
      %v3259 = vld [vmem:[#allocation2 + $0xf0] sm:$0xff]
      %v3260 = vld [vmem:[#allocation2 + $0xf8] sm:$0xf]
      %v3261 = vld [vmem:[#allocation2 + $0xfc] sm:$0xff]
      %v3262 = vld [vmem:[#allocation2 + $0x104] sm:$0xf]
      %v3263 = vld [vmem:[#allocation2 + $0x108] sm:$0xff]
      %v3264 = vld [vmem:[#allocation2 + $0x110] sm:$0xf]
      %v3265 = vld [vmem:[#allocation2 + $0x114] sm:$0xff]
      %v3266 = vld [vmem:[#allocation2 + $0x11c] sm:$0xf]
      %v3267 = vld [vmem:[#allocation2 + $0x120] sm:$0xff]
      %v3268 = vld [vmem:[#allocation2 + $0x128] sm:$0xf]
      %v3269 = vld [vmem:[#allocation2 + $0x12c] sm:$0xff]
      %v3270 = vld [vmem:[#allocation2 + $0x134] sm:$0xf]
      %v3271 = vld [vmem:[#allocation2 + $0x138] sm:$0xff]
      %v3272 = vld [vmem:[#allocation2 + $0x140] sm:$0xf]
      %v3273 = vld [vmem:[#allocation2 + $0x144] sm:$0xff]
      %v3274 = vld [vmem:[#allocation2 + $0x14c] sm:$0xf]
      %v3275 = vld [vmem:[#allocation2 + $0x150] sm:$0xff]
      %v3276 = vld [vmem:[#allocation2 + $0x158] sm:$0xf]
      %v3277 = vld [vmem:[#allocation2 + $0x15c] sm:$0xff]
      %v3278 = vld [vmem:[#allocation2 + $0x164] sm:$0xf]
      %v3279 = vld [vmem:[#allocation2 + $0x168] sm:$0xff]
      %v3280 = vld [vmem:[#allocation2 + $0x170] sm:$0xf]
      %v3281 = vld [vmem:[#allocation2 + $0x174] sm:$0xff]
      %v3282 = vld [vmem:[#allocation2 + $0x17c] sm:$0xf]
      %v3283 = vld [vmem:[%s2] sm:$0xf]
      %v3284 = vld [vmem:[%s2 + $0x4] sm:$0xf]
      %v3285 = vld [vmem:[%s2 + $0x8] sm:$0xf]
      %v3286 = vld [vmem:[%s2 + $0xc] sm:$0xf]
      %v3287 = vld [vmem:[%s2 + $0x10] sm:$0xf]
      %v3288 = vld [vmem:[%s2 + $0x14] sm:$0xf]
      %v3289 = vld [vmem:[%s2 + $0x18] sm:$0xf]
      %v3290 = vld [vmem:[%s2 + $0x1c] sm:$0xf]
      %v3291 = vld [vmem:[%s2 + $0x20] sm:$0xf]
      %v3292 = vld [vmem:[%s2 + $0x24] sm:$0xf]
      %v3293 = vld [vmem:[%s2 + $0x28] sm:$0xf]
      %v3294 = vld [vmem:[%s2 + $0x2c] sm:$0xf]
      %v3295 = vld [vmem:[%s2 + $0x30] sm:$0xf]
      %v3296 = vld [vmem:[%s2 + $0x34] sm:$0xf]
      %v3297 = vld [vmem:[%s2 + $0x38] sm:$0xf]
      %v3298 = vld [vmem:[%s2 + $0x3c] sm:$0xf]
      %v3299 = vld [vmem:[%s2 + $0x40] sm:$0xf]
      %v3300 = vld [vmem:[%s2 + $0x44] sm:$0xf]
      %v3301 = vld [vmem:[%s2 + $0x48] sm:$0xf]
      %v3302 = vld [vmem:[%s2 + $0x4c] sm:$0xf]
      %v3303 = vld [vmem:[%s2 + $0x50] sm:$0xf]
      %v3304 = vld [vmem:[%s2 + $0x54] sm:$0xf]
      %v3305 = vld [vmem:[%s2 + $0x58] sm:$0xf]
      %v3306 = vld [vmem:[%s2 + $0x5c] sm:$0xf]
      %v3307 = vld [vmem:[%s2 + $0x60] sm:$0xf]
      %v3308 = vld [vmem:[%s2 + $0x64] sm:$0xf]
      %v3309 = vld [vmem:[%s2 + $0x68] sm:$0xf]
      %v3310 = vld [vmem:[%s2 + $0x6c] sm:$0xf]
      %v3311 = vld [vmem:[%s2 + $0x70] sm:$0xf]
      %v3312 = vld [vmem:[%s2 + $0x74] sm:$0xf]
      %v3313 = vld [vmem:[%s2 + $0x78] sm:$0xf]
      %v3314 = vld [vmem:[%s2 + $0x7c] sm:$0xf]
      %v3315 = vld [vmem:[%s2 + $0x80] sm:$0xf]
      %v3316 = vld [vmem:[%s2 + $0x84] sm:$0xf]
      %v3317 = vld [vmem:[%s2 + $0x88] sm:$0xf]
      %v3318 = vld [vmem:[%s2 + $0x8c] sm:$0xf]
      %v3319 = vld [vmem:[%s2 + $0x90] sm:$0xf]
      %v3320 = vld [vmem:[%s2 + $0x94] sm:$0xf]
      %v3321 = vld [vmem:[%s2 + $0x98] sm:$0xf]
      %v3322 = vld [vmem:[%s2 + $0x9c] sm:$0xf]
      %v3323 = vld [vmem:[%s2 + $0xa0] sm:$0xf]
      %v3324 = vld [vmem:[%s2 + $0xa4] sm:$0xf]
      %v3325 = vld [vmem:[%s2 + $0xa8] sm:$0xf]
      %v3326 = vld [vmem:[%s2 + $0xac] sm:$0xf]
      %v3327 = vld [vmem:[%s2 + $0xb0] sm:$0xf]
      %v3328 = vld [vmem:[%s2 + $0xb4] sm:$0xf]
      %v3329 = vld [vmem:[%s2 + $0xb8] sm:$0xf]
      %v3330 = vld [vmem:[%s2 + $0xbc] sm:$0xf]
      %v3331 = vld [vmem:[%s2410] sm:$0xff]
      %v3332 = vld [vmem:[%s2410 + $0x8] sm:$0xf]
      %v3333 = vld [vmem:[%s2410 + $0xc] sm:$0xff]
      %v3334 = vld [vmem:[%s2410 + $0x14] sm:$0xf]
      %v3335 = vld [vmem:[%s2410 + $0x18] sm:$0xff]
      %v3336 = vld [vmem:[%s2410 + $0x20] sm:$0xf]
      %v3337 = vld [vmem:[%s2410 + $0x24] sm:$0xff]
      %v3338 = vld [vmem:[%s2410 + $0x2c] sm:$0xf]
      %v3339 = vld [vmem:[%s2410 + $0x30] sm:$0xff]
      %v3340 = vld [vmem:[%s2410 + $0x38] sm:$0xf]
      %v3341 = vld [vmem:[%s2410 + $0x3c] sm:$0xff]
      %v3342 = vld [vmem:[%s2410 + $0x44] sm:$0xf]
      %v3343 = vld [vmem:[%s2410 + $0x48] sm:$0xff]
      %v3344 = vld [vmem:[%s2410 + $0x50] sm:$0xf]
      %v3345 = vld [vmem:[%s2410 + $0x54] sm:$0xff]
      %v3346 = vld [vmem:[%s2410 + $0x5c] sm:$0xf]
      %v3347 = vld [vmem:[%s2410 + $0x60] sm:$0xff]
      %v3348 = vld [vmem:[%s2410 + $0x68] sm:$0xf]
      %v3349 = vld [vmem:[%s2410 + $0x6c] sm:$0xff]
      %v3350 = vld [vmem:[%s2410 + $0x74] sm:$0xf]
      %v3351 = vld [vmem:[%s2410 + $0x78] sm:$0xff]
      %v3352 = vld [vmem:[%s2410 + $0x80] sm:$0xf]
      %v3353 = vld [vmem:[%s2410 + $0x84] sm:$0xff]
      %v3354 = vld [vmem:[%s2410 + $0x8c] sm:$0xf]
      %v3355 = vld [vmem:[%s2410 + $0x90] sm:$0xff]
      %v3356 = vld [vmem:[%s2410 + $0x98] sm:$0xf]
      %v3357 = vld [vmem:[%s2410 + $0x9c] sm:$0xff]
      %v3358 = vld [vmem:[%s2410 + $0xa4] sm:$0xf]
      %v3359 = vld [vmem:[%s2410 + $0xa8] sm:$0xff]
      %v3360 = vld [vmem:[%s2410 + $0xb0] sm:$0xf]
      %v3361 = vld [vmem:[%s2410 + $0xb4] sm:$0xff]
      %v3362 = vld [vmem:[%s2410 + $0xbc] sm:$0xf]
      %v3363 = vld [vmem:[%s2410 + $0xc0] sm:$0xff]
      %v3364 = vld [vmem:[%s2410 + $0xc8] sm:$0xf]
      %v3365 = vld [vmem:[%s2410 + $0xcc] sm:$0xff]
      %v3366 = vld [vmem:[%s2410 + $0xd4] sm:$0xf]
      %v3367 = vld [vmem:[%s2410 + $0xd8] sm:$0xff]
      %v3368 = vld [vmem:[%s2410 + $0xe0] sm:$0xf]
      %v3369 = vld [vmem:[%s2410 + $0xe4] sm:$0xff]
      %v3370 = vld [vmem:[%s2410 + $0xec] sm:$0xf]
      %v3371 = vld [vmem:[%s2410 + $0xf0] sm:$0xff]
      %v3372 = vld [vmem:[%s2410 + $0xf8] sm:$0xf]
      %v3373 = vld [vmem:[%s2410 + $0xfc] sm:$0xff]
      %v3374 = vld [vmem:[%s2410 + $0x104] sm:$0xf]
      %v3375 = vld [vmem:[%s2410 + $0x108] sm:$0xff]
      %v3376 = vld [vmem:[%s2410 + $0x110] sm:$0xf]
      %v3377 = vld [vmem:[%s2410 + $0x114] sm:$0xff]
      %v3378 = vld [vmem:[%s2410 + $0x11c] sm:$0xf]
      %v3379 = vld [vmem:[%s2410 + $0x120] sm:$0xff]
      %v3380 = vld [vmem:[%s2410 + $0x128] sm:$0xf]
      %v3381 = vld [vmem:[%s2410 + $0x12c] sm:$0xff]
      %v3382 = vld [vmem:[%s2410 + $0x134] sm:$0xf]
      %v3383 = vld [vmem:[%s2410 + $0x138] sm:$0xff]
      %v3384 = vld [vmem:[%s2410 + $0x140] sm:$0xf]
      %v3385 = vld [vmem:[%s2410 + $0x144] sm:$0xff]
      %v3386 = vld [vmem:[%s2410 + $0x14c] sm:$0xf]
      %v3387 = vld [vmem:[%s2410 + $0x150] sm:$0xff]
      %v3388 = vld [vmem:[%s2410 + $0x158] sm:$0xf]
      %v3389 = vld [vmem:[%s2410 + $0x15c] sm:$0xff]
      %v3390 = vld [vmem:[%s2410 + $0x164] sm:$0xf]
      %v3391 = vld [vmem:[%s2410 + $0x168] sm:$0xff]
      %v3392 = vld [vmem:[%s2410 + $0x170] sm:$0xf]
      %v3393 = vld [vmem:[%s2410 + $0x174] sm:$0xff]
      %v3394 = vld [vmem:[%s2410 + $0x17c] sm:$0xf]
      %s3395 = scalar_lea.vmem %s2, 192
      %v3396 = vld [vmem:[%s3395] sm:$0xf]
      %v3397 = vld [vmem:[%s3395 + $0x4] sm:$0xf]
      %v3398 = vld [vmem:[%s3395 + $0x8] sm:$0xf]
      %v3399 = vld [vmem:[%s3395 + $0xc] sm:$0xf]
      %v3400 = vld [vmem:[%s3395 + $0x10] sm:$0xf]
      %v3401 = vld [vmem:[%s3395 + $0x14] sm:$0xf]
      %v3402 = vld [vmem:[%s3395 + $0x18] sm:$0xf]
      %v3403 = vld [vmem:[%s3395 + $0x1c] sm:$0xf]
      %v3404 = vld [vmem:[%s3395 + $0x20] sm:$0xf]
      %v3405 = vld [vmem:[%s3395 + $0x24] sm:$0xf]
      %v3406 = vld [vmem:[%s3395 + $0x28] sm:$0xf]
      %v3407 = vld [vmem:[%s3395 + $0x2c] sm:$0xf]
      %v3408 = vld [vmem:[%s3395 + $0x30] sm:$0xf]
      %v3409 = vld [vmem:[%s3395 + $0x34] sm:$0xf]
      %v3410 = vld [vmem:[%s3395 + $0x38] sm:$0xf]
      %v3411 = vld [vmem:[%s3395 + $0x3c] sm:$0xf]
      %v3412 = vld [vmem:[%s3395 + $0x40] sm:$0xf]
      %v3413 = vld [vmem:[%s3395 + $0x44] sm:$0xf]
      %v3414 = vld [vmem:[%s3395 + $0x48] sm:$0xf]
      %v3415 = vld [vmem:[%s3395 + $0x4c] sm:$0xf]
      %v3416 = vld [vmem:[%s3395 + $0x50] sm:$0xf]
      %v3417 = vld [vmem:[%s3395 + $0x54] sm:$0xf]
      %v3418 = vld [vmem:[%s3395 + $0x58] sm:$0xf]
      %v3419 = vld [vmem:[%s3395 + $0x5c] sm:$0xf]
      %v3420 = vld [vmem:[%s3395 + $0x60] sm:$0xf]
      %v3421 = vld [vmem:[%s3395 + $0x64] sm:$0xf]
      %v3422 = vld [vmem:[%s3395 + $0x68] sm:$0xf]
      %v3423 = vld [vmem:[%s3395 + $0x6c] sm:$0xf]
      %v3424 = vld [vmem:[%s3395 + $0x70] sm:$0xf]
      %v3425 = vld [vmem:[%s3395 + $0x74] sm:$0xf]
      %v3426 = vld [vmem:[%s3395 + $0x78] sm:$0xf]
      %v3427 = vld [vmem:[%s3395 + $0x7c] sm:$0xf]
      %v3428 = vld [vmem:[%s3395 + $0x80] sm:$0xf]
      %v3429 = vld [vmem:[%s3395 + $0x84] sm:$0xf]
      %v3430 = vld [vmem:[%s3395 + $0x88] sm:$0xf]
      %v3431 = vld [vmem:[%s3395 + $0x8c] sm:$0xf]
      %v3432 = vld [vmem:[%s3395 + $0x90] sm:$0xf]
      %v3433 = vld [vmem:[%s3395 + $0x94] sm:$0xf]
      %v3434 = vld [vmem:[%s3395 + $0x98] sm:$0xf]
      %v3435 = vld [vmem:[%s3395 + $0x9c] sm:$0xf]
      %v3436 = vld [vmem:[%s3395 + $0xa0] sm:$0xf]
      %v3437 = vld [vmem:[%s3395 + $0xa4] sm:$0xf]
      %v3438 = vld [vmem:[%s3395 + $0xa8] sm:$0xf]
      %v3439 = vld [vmem:[%s3395 + $0xac] sm:$0xf]
      %v3440 = vld [vmem:[%s3395 + $0xb0] sm:$0xf]
      %v3441 = vld [vmem:[%s3395 + $0xb4] sm:$0xf]
      %v3442 = vld [vmem:[%s3395 + $0xb8] sm:$0xf]
      %v3443 = vld [vmem:[%s3395 + $0xbc] sm:$0xf]
      %v3508 = vunpack.c.l.b16 %v3331
      %v3509 = vunpack.c.h.b16 %v3331
      %v3510 = vunpack.c.l.b16 %v3332
      %v3511 = vunpack.c.l.b16 %v3333
      %v3512 = vunpack.c.h.b16 %v3333
      %v3513 = vunpack.c.l.b16 %v3334
      %v3514 = vunpack.c.l.b16 %v3335
      %v3515 = vunpack.c.h.b16 %v3335
      %v3516 = vunpack.c.l.b16 %v3336
      %v3517 = vunpack.c.l.b16 %v3337
      %v3518 = vunpack.c.h.b16 %v3337
      %v3519 = vunpack.c.l.b16 %v3338
      %v3520 = vunpack.c.l.b16 %v3339
      %v3521 = vunpack.c.h.b16 %v3339
      %v3522 = vunpack.c.l.b16 %v3340
      %v3523 = vunpack.c.l.b16 %v3341
      %v3524 = vunpack.c.h.b16 %v3341
      %v3525 = vunpack.c.l.b16 %v3342
      %v3526 = vunpack.c.l.b16 %v3343
      %v3527 = vunpack.c.h.b16 %v3343
      %v3528 = vunpack.c.l.b16 %v3344
      %v3529 = vunpack.c.l.b16 %v3345
      %v3530 = vunpack.c.h.b16 %v3345
      %v3531 = vunpack.c.l.b16 %v3346
      %v3532 = vunpack.c.l.b16 %v3347
      %v3533 = vunpack.c.h.b16 %v3347
      %v3534 = vunpack.c.l.b16 %v3348
      %v3535 = vunpack.c.l.b16 %v3349
      %v3536 = vunpack.c.h.b16 %v3349
      %v3537 = vunpack.c.l.b16 %v3350
      %v3538 = vunpack.c.l.b16 %v3351
      %v3539 = vunpack.c.h.b16 %v3351
      %v3540 = vunpack.c.l.b16 %v3352
      %v3541 = vunpack.c.l.b16 %v3353
      %v3542 = vunpack.c.h.b16 %v3353
      %v3543 = vunpack.c.l.b16 %v3354
      %v3544 = vunpack.c.l.b16 %v3355
      %v3545 = vunpack.c.h.b16 %v3355
      %v3546 = vunpack.c.l.b16 %v3356
      %v3547 = vunpack.c.l.b16 %v3357
      %v3548 = vunpack.c.h.b16 %v3357
      %v3549 = vunpack.c.l.b16 %v3358
      %v3550 = vunpack.c.l.b16 %v3359
      %v3551 = vunpack.c.h.b16 %v3359
      %v3552 = vunpack.c.l.b16 %v3360
      %v3553 = vunpack.c.l.b16 %v3361
      %v3554 = vunpack.c.h.b16 %v3361
      %v3555 = vunpack.c.l.b16 %v3362
      %v3556 = vunpack.c.l.b16 %v3363
      %v3557 = vunpack.c.h.b16 %v3363
      %v3558 = vunpack.c.l.b16 %v3364
      %v3559 = vunpack.c.l.b16 %v3365
      %v3560 = vunpack.c.h.b16 %v3365
      %v3561 = vunpack.c.l.b16 %v3366
      %v3562 = vunpack.c.l.b16 %v3367
      %v3563 = vunpack.c.h.b16 %v3367
      %v3564 = vunpack.c.l.b16 %v3368
      %v3565 = vunpack.c.l.b16 %v3369
      %v3566 = vunpack.c.h.b16 %v3369
      %v3567 = vunpack.c.l.b16 %v3370
      %v3568 = vunpack.c.l.b16 %v3371
      %v3569 = vunpack.c.h.b16 %v3371
      %v3570 = vunpack.c.l.b16 %v3372
      %v3571 = vunpack.c.l.b16 %v3373
      %v3572 = vunpack.c.h.b16 %v3373
      %v3573 = vunpack.c.l.b16 %v3374
      %v3574 = vunpack.c.l.b16 %v3375
      %v3575 = vunpack.c.h.b16 %v3375
      %v3576 = vunpack.c.l.b16 %v3376
      %v3577 = vunpack.c.l.b16 %v3377
      %v3578 = vunpack.c.h.b16 %v3377
      %v3579 = vunpack.c.l.b16 %v3378
      %v3580 = vunpack.c.l.b16 %v3379
      %v3581 = vunpack.c.h.b16 %v3379
      %v3582 = vunpack.c.l.b16 %v3380
      %v3583 = vunpack.c.l.b16 %v3381
      %v3584 = vunpack.c.h.b16 %v3381
      %v3585 = vunpack.c.l.b16 %v3382
      %v3586 = vunpack.c.l.b16 %v3383
      %v3587 = vunpack.c.h.b16 %v3383
      %v3588 = vunpack.c.l.b16 %v3384
      %v3589 = vunpack.c.l.b16 %v3385
      %v3590 = vunpack.c.h.b16 %v3385
      %v3591 = vunpack.c.l.b16 %v3386
      %v3592 = vunpack.c.l.b16 %v3387
      %v3593 = vunpack.c.h.b16 %v3387
      %v3594 = vunpack.c.l.b16 %v3388
      %v3595 = vunpack.c.l.b16 %v3389
      %v3596 = vunpack.c.h.b16 %v3389
      %v3597 = vunpack.c.l.b16 %v3390
      %v3598 = vunpack.c.l.b16 %v3391
      %v3599 = vunpack.c.h.b16 %v3391
      %v3600 = vunpack.c.l.b16 %v3392
      %v3601 = vunpack.c.l.b16 %v3393
      %v3602 = vunpack.c.h.b16 %v3393
      %v3603 = vunpack.c.l.b16 %v3394
      %v3604 = vpack.c.b16 %v3511, %v3508
      %v3605 = vpack.c.b16 %v3512, %v3509
      %v3606 = vpack.c.b16 %v3513, %v3510
      %v3607 = vpack.c.b16 %v3517, %v3514
      %v3608 = vpack.c.b16 %v3518, %v3515
      %v3609 = vpack.c.b16 %v3519, %v3516
      %v3610 = vpack.c.b16 %v3523, %v3520
      %v3611 = vpack.c.b16 %v3524, %v3521
      %v3612 = vpack.c.b16 %v3525, %v3522
      %v3613 = vpack.c.b16 %v3529, %v3526
      %v3614 = vpack.c.b16 %v3530, %v3527
      %v3615 = vpack.c.b16 %v3531, %v3528
      %v3616 = vpack.c.b16 %v3535, %v3532
      %v3617 = vpack.c.b16 %v3536, %v3533
      %v3618 = vpack.c.b16 %v3537, %v3534
      %v3619 = vpack.c.b16 %v3541, %v3538
      %v3620 = vpack.c.b16 %v3542, %v3539
      %v3621 = vpack.c.b16 %v3543, %v3540
      %v3622 = vpack.c.b16 %v3547, %v3544
      %v3623 = vpack.c.b16 %v3548, %v3545
      %v3624 = vpack.c.b16 %v3549, %v3546
      %v3625 = vpack.c.b16 %v3553, %v3550
      %v3626 = vpack.c.b16 %v3554, %v3551
      %v3627 = vpack.c.b16 %v3555, %v3552
      %v3628 = vpack.c.b16 %v3559, %v3556
      %v3629 = vpack.c.b16 %v3560, %v3557
      %v3630 = vpack.c.b16 %v3561, %v3558
      %v3631 = vpack.c.b16 %v3565, %v3562
      %v3632 = vpack.c.b16 %v3566, %v3563
      %v3633 = vpack.c.b16 %v3567, %v3564
      %v3634 = vpack.c.b16 %v3571, %v3568
      %v3635 = vpack.c.b16 %v3572, %v3569
      %v3636 = vpack.c.b16 %v3573, %v3570
      %v3637 = vpack.c.b16 %v3577, %v3574
      %v3638 = vpack.c.b16 %v3578, %v3575
      %v3639 = vpack.c.b16 %v3579, %v3576
      %v3640 = vpack.c.b16 %v3583, %v3580
      %v3641 = vpack.c.b16 %v3584, %v3581
      %v3642 = vpack.c.b16 %v3585, %v3582
      %v3643 = vpack.c.b16 %v3589, %v3586
      %v3644 = vpack.c.b16 %v3590, %v3587
      %v3645 = vpack.c.b16 %v3591, %v3588
      %v3646 = vpack.c.b16 %v3595, %v3592
      %v3647 = vpack.c.b16 %v3596, %v3593
      %v3648 = vpack.c.b16 %v3597, %v3594
      %v3649 = vpack.c.b16 %v3601, %v3598
      %v3650 = vpack.c.b16 %v3602, %v3599
      %v3651 = vpack.c.b16 %v3603, %v3600
      %v3748 = vunpack.c.l.b16 %v3396
      %v3749 = vunpack.c.l.b16 %v3397
      %v3750 = vunpack.c.l.b16 %v3398
      %v3751 = vunpack.c.l.b16 %v3399
      %v3752 = vunpack.c.l.b16 %v3400
      %v3753 = vunpack.c.l.b16 %v3401
      %v3754 = vunpack.c.l.b16 %v3402
      %v3755 = vunpack.c.l.b16 %v3403
      %v3756 = vunpack.c.l.b16 %v3404
      %v3757 = vunpack.c.l.b16 %v3405
      %v3758 = vunpack.c.l.b16 %v3406
      %v3759 = vunpack.c.l.b16 %v3407
      %v3760 = vunpack.c.l.b16 %v3408
      %v3761 = vunpack.c.l.b16 %v3409
      %v3762 = vunpack.c.l.b16 %v3410
      %v3763 = vunpack.c.l.b16 %v3411
      %v3764 = vunpack.c.l.b16 %v3412
      %v3765 = vunpack.c.l.b16 %v3413
      %v3766 = vunpack.c.l.b16 %v3414
      %v3767 = vunpack.c.l.b16 %v3415
      %v3768 = vunpack.c.l.b16 %v3416
      %v3769 = vunpack.c.l.b16 %v3417
      %v3770 = vunpack.c.l.b16 %v3418
      %v3771 = vunpack.c.l.b16 %v3419
      %v3772 = vunpack.c.l.b16 %v3420
      %v3773 = vunpack.c.l.b16 %v3421
      %v3774 = vunpack.c.l.b16 %v3422
      %v3775 = vunpack.c.l.b16 %v3423
      %v3776 = vunpack.c.l.b16 %v3424
      %v3777 = vunpack.c.l.b16 %v3425
      %v3778 = vunpack.c.l.b16 %v3426
      %v3779 = vunpack.c.l.b16 %v3427
      %v3780 = vunpack.c.l.b16 %v3428
      %v3781 = vunpack.c.l.b16 %v3429
      %v3782 = vunpack.c.l.b16 %v3430
      %v3783 = vunpack.c.l.b16 %v3431
      %v3784 = vunpack.c.l.b16 %v3432
      %v3785 = vunpack.c.l.b16 %v3433
      %v3786 = vunpack.c.l.b16 %v3434
      %v3787 = vunpack.c.l.b16 %v3435
      %v3788 = vunpack.c.l.b16 %v3436
      %v3789 = vunpack.c.l.b16 %v3437
      %v3790 = vunpack.c.l.b16 %v3438
      %v3791 = vunpack.c.l.b16 %v3439
      %v3792 = vunpack.c.l.b16 %v3440
      %v3793 = vunpack.c.l.b16 %v3441
      %v3794 = vunpack.c.l.b16 %v3442
      %v3795 = vunpack.c.l.b16 %v3443
      %v3796 = vpack.c.b16 %v3749, %v3748
      %v3797 = vpack.c.b16 %v3751, %v3750
      %v3798 = vpack.c.b16 %v3753, %v3752
      %v3799 = vpack.c.b16 %v3755, %v3754
      %v3800 = vpack.c.b16 %v3757, %v3756
      %v3801 = vpack.c.b16 %v3759, %v3758
      %v3802 = vpack.c.b16 %v3761, %v3760
      %v3803 = vpack.c.b16 %v3763, %v3762
      %v3804 = vpack.c.b16 %v3765, %v3764
      %v3805 = vpack.c.b16 %v3767, %v3766
      %v3806 = vpack.c.b16 %v3769, %v3768
      %v3807 = vpack.c.b16 %v3771, %v3770
      %v3808 = vpack.c.b16 %v3773, %v3772
      %v3809 = vpack.c.b16 %v3775, %v3774
      %v3810 = vpack.c.b16 %v3777, %v3776
      %v3811 = vpack.c.b16 %v3779, %v3778
      %v3812 = vpack.c.b16 %v3781, %v3780
      %v3813 = vpack.c.b16 %v3783, %v3782
      %v3814 = vpack.c.b16 %v3785, %v3784
      %v3815 = vpack.c.b16 %v3787, %v3786
      %v3816 = vpack.c.b16 %v3789, %v3788
      %v3817 = vpack.c.b16 %v3791, %v3790
      %v3818 = vpack.c.b16 %v3793, %v3792
      %v3819 = vpack.c.b16 %v3795, %v3794
      %3844 = vmatpush.bf16.msra.mxu0 %v3803
      %3845 = vmatpush.bf16.msra.mxu0 %v3802
      %3846 = vmatpush.bf16.msra.mxu0 %v3801
      %3847 = vmatpush.bf16.msra.mxu0 %v3800
      %3848 = vmatpush.bf16.msra.mxu0 %v3799
      %3849 = vmatpush.bf16.msra.mxu0 %v3798
      %3850 = vmatpush.bf16.msra.mxu0 %v3797
      %3851 = vmatpush.bf16.msra.mxu0 %v3796
      %3852 = vmatmul.bf16.gmra.mxu0 %v3604
      %v3853 = vpop.f32.mrf.mxu0
      %v3854 = vadd.f32 0.0, %v3853
      %v3855 = vpop.f32.mrf.mxu0
      %v3856 = vadd.f32 0.0, %v3855
      %3857 = vmatmul.bf16.gmra.mxu0 %v3607
      %v3858 = vpop.f32.mrf.mxu0
      %v3859 = vadd.f32 0.0, %v3858
      %v3860 = vpop.f32.mrf.mxu0
      %v3861 = vadd.f32 0.0, %v3860
      %3862 = vmatmul.bf16.gmra.mxu0 %v3610
      %v3863 = vpop.f32.mrf.mxu0
      %v3864 = vadd.f32 0.0, %v3863
      %v3865 = vpop.f32.mrf.mxu0
      %v3866 = vadd.f32 0.0, %v3865
      %3867 = vmatmul.bf16.gmra.mxu0 %v3613
      %v3868 = vpop.f32.mrf.mxu0
      %v3869 = vadd.f32 0.0, %v3868
      %v3870 = vpop.f32.mrf.mxu0
      %v3871 = vadd.f32 0.0, %v3870
      %3872 = vmatmul.bf16.gmra.mxu0 %v3616
      %v3873 = vpop.f32.mrf.mxu0
      %v3874 = vadd.f32 0.0, %v3873
      %v3875 = vpop.f32.mrf.mxu0
      %v3876 = vadd.f32 0.0, %v3875
      %3877 = vmatmul.bf16.gmra.mxu0 %v3619
      %v3878 = vpop.f32.mrf.mxu0
      %v3879 = vadd.f32 0.0, %v3878
      %v3880 = vpop.f32.mrf.mxu0
      %v3881 = vadd.f32 0.0, %v3880
      %3882 = vmatmul.bf16.gmra.mxu0 %v3622
      %v3883 = vpop.f32.mrf.mxu0
      %v3884 = vadd.f32 0.0, %v3883
      %v3885 = vpop.f32.mrf.mxu0
      %v3886 = vadd.f32 0.0, %v3885
      %3887 = vmatmul.bf16.gmra.mxu0 %v3625
      %v3888 = vpop.f32.mrf.mxu0
      %v3889 = vadd.f32 0.0, %v3888
      %v3890 = vpop.f32.mrf.mxu0
      %v3891 = vadd.f32 0.0, %v3890
      %3892 = vmatmul.bf16.gmra.mxu0 %v3628
      %v3893 = vpop.f32.mrf.mxu0
      %v3894 = vadd.f32 0.0, %v3893
      %v3895 = vpop.f32.mrf.mxu0
      %v3896 = vadd.f32 0.0, %v3895
      %3897 = vmatmul.bf16.gmra.mxu0 %v3631
      %v3898 = vpop.f32.mrf.mxu0
      %v3899 = vadd.f32 0.0, %v3898
      %v3900 = vpop.f32.mrf.mxu0
      %v3901 = vadd.f32 0.0, %v3900
      %3902 = vmatmul.bf16.gmra.mxu0 %v3634
      %v3903 = vpop.f32.mrf.mxu0
      %v3904 = vadd.f32 0.0, %v3903
      %v3905 = vpop.f32.mrf.mxu0
      %v3906 = vadd.f32 0.0, %v3905
      %3907 = vmatmul.bf16.gmra.mxu0 %v3637
      %v3908 = vpop.f32.mrf.mxu0
      %v3909 = vadd.f32 0.0, %v3908
      %v3910 = vpop.f32.mrf.mxu0
      %v3911 = vadd.f32 0.0, %v3910
      %3912 = vmatmul.bf16.gmra.mxu0 %v3640
      %v3913 = vpop.f32.mrf.mxu0
      %v3914 = vadd.f32 0.0, %v3913
      %v3915 = vpop.f32.mrf.mxu0
      %v3916 = vadd.f32 0.0, %v3915
      %3917 = vmatmul.bf16.gmra.mxu0 %v3643
      %v3918 = vpop.f32.mrf.mxu0
      %v3919 = vadd.f32 0.0, %v3918
      %v3920 = vpop.f32.mrf.mxu0
      %v3921 = vadd.f32 0.0, %v3920
      %3922 = vmatmul.bf16.gmra.mxu0 %v3646
      %v3923 = vpop.f32.mrf.mxu0
      %v3924 = vadd.f32 0.0, %v3923
      %v3925 = vpop.f32.mrf.mxu0
      %v3926 = vadd.f32 0.0, %v3925
      %3927 = vmatmul.bf16.gmra.mxu0 %v3649
      %v3928 = vpop.f32.mrf.mxu0
      %v3929 = vadd.f32 0.0, %v3928
      %v3930 = vpop.f32.mrf.mxu0
      %v3931 = vadd.f32 0.0, %v3930
      %3932 = vdwg.mxu0
      %3933 = vmatpush.bf16.msra.mxu0 %v3811
      %3934 = vmatpush.bf16.msra.mxu0 %v3810
      %3935 = vmatpush.bf16.msra.mxu0 %v3809
      %3936 = vmatpush.bf16.msra.mxu0 %v3808
      %3937 = vmatpush.bf16.msra.mxu0 %v3807
      %3938 = vmatpush.bf16.msra.mxu0 %v3806
      %3939 = vmatpush.bf16.msra.mxu0 %v3805
      %3940 = vmatpush.bf16.msra.mxu0 %v3804
      %3941 = vmatmul.bf16.gmra.mxu0 %v3605
      %v3942 = vpop.f32.mrf.mxu0
      %v3943 = vadd.f32 %v3854, %v3942
      %v3944 = vpop.f32.mrf.mxu0
      %v3945 = vadd.f32 %v3856, %v3944
      %3946 = vmatmul.bf16.gmra.mxu0 %v3608
      %v3947 = vpop.f32.mrf.mxu0
      %v3948 = vadd.f32 %v3859, %v3947
      %v3949 = vpop.f32.mrf.mxu0
      %v3950 = vadd.f32 %v3861, %v3949
      %3951 = vmatmul.bf16.gmra.mxu0 %v3611
      %v3952 = vpop.f32.mrf.mxu0
      %v3953 = vadd.f32 %v3864, %v3952
      %v3954 = vpop.f32.mrf.mxu0
      %v3955 = vadd.f32 %v3866, %v3954
      %3956 = vmatmul.bf16.gmra.mxu0 %v3614
      %v3957 = vpop.f32.mrf.mxu0
      %v3958 = vadd.f32 %v3869, %v3957
      %v3959 = vpop.f32.mrf.mxu0
      %v3960 = vadd.f32 %v3871, %v3959
      %3961 = vmatmul.bf16.gmra.mxu0 %v3617
      %v3962 = vpop.f32.mrf.mxu0
      %v3963 = vadd.f32 %v3874, %v3962
      %v3964 = vpop.f32.mrf.mxu0
      %v3965 = vadd.f32 %v3876, %v3964
      %3966 = vmatmul.bf16.gmra.mxu0 %v3620
      %v3967 = vpop.f32.mrf.mxu0
      %v3968 = vadd.f32 %v3879, %v3967
      %v3969 = vpop.f32.mrf.mxu0
      %v3970 = vadd.f32 %v3881, %v3969
      %3971 = vmatmul.bf16.gmra.mxu0 %v3623
      %v3972 = vpop.f32.mrf.mxu0
      %v3973 = vadd.f32 %v3884, %v3972
      %v3974 = vpop.f32.mrf.mxu0
      %v3975 = vadd.f32 %v3886, %v3974
      %3976 = vmatmul.bf16.gmra.mxu0 %v3626
      %v3977 = vpop.f32.mrf.mxu0
      %v3978 = vadd.f32 %v3889, %v3977
      %v3979 = vpop.f32.mrf.mxu0
      %v3980 = vadd.f32 %v3891, %v3979
      %3981 = vmatmul.bf16.gmra.mxu0 %v3629
      %v3982 = vpop.f32.mrf.mxu0
      %v3983 = vadd.f32 %v3894, %v3982
      %v3984 = vpop.f32.mrf.mxu0
      %v3985 = vadd.f32 %v3896, %v3984
      %3986 = vmatmul.bf16.gmra.mxu0 %v3632
      %v3987 = vpop.f32.mrf.mxu0
      %v3988 = vadd.f32 %v3899, %v3987
      %v3989 = vpop.f32.mrf.mxu0
      %v3990 = vadd.f32 %v3901, %v3989
      %3991 = vmatmul.bf16.gmra.mxu0 %v3635
      %v3992 = vpop.f32.mrf.mxu0
      %v3993 = vadd.f32 %v3904, %v3992
      %v3994 = vpop.f32.mrf.mxu0
      %v3995 = vadd.f32 %v3906, %v3994
      %3996 = vmatmul.bf16.gmra.mxu0 %v3638
      %v3997 = vpop.f32.mrf.mxu0
      %v3998 = vadd.f32 %v3909, %v3997
      %v3999 = vpop.f32.mrf.mxu0
      %v4000 = vadd.f32 %v3911, %v3999
      %4001 = vmatmul.bf16.gmra.mxu0 %v3641
      %v4002 = vpop.f32.mrf.mxu0
      %v4003 = vadd.f32 %v3914, %v4002
      %v4004 = vpop.f32.mrf.mxu0
      %v4005 = vadd.f32 %v3916, %v4004
      %4006 = vmatmul.bf16.gmra.mxu0 %v3644
      %v4007 = vpop.f32.mrf.mxu0
      %v4008 = vadd.f32 %v3919, %v4007
      %v4009 = vpop.f32.mrf.mxu0
      %v4010 = vadd.f32 %v3921, %v4009
      %4011 = vmatmul.bf16.gmra.mxu0 %v3647
      %v4012 = vpop.f32.mrf.mxu0
      %v4013 = vadd.f32 %v3924, %v4012
      %v4014 = vpop.f32.mrf.mxu0
      %v4015 = vadd.f32 %v3926, %v4014
      %4016 = vmatmul.bf16.gmra.mxu0 %v3650
      %v4017 = vpop.f32.mrf.mxu0
      %v4018 = vadd.f32 %v3929, %v4017
      %v4019 = vpop.f32.mrf.mxu0
      %v4020 = vadd.f32 %v3931, %v4019
      %4021 = vdwg.mxu0
      %4022 = vmatpush.bf16.msra.mxu0 %v3819
      %4023 = vmatpush.bf16.msra.mxu0 %v3818
      %4024 = vmatpush.bf16.msra.mxu0 %v3817
      %4025 = vmatpush.bf16.msra.mxu0 %v3816
      %4026 = vmatpush.bf16.msra.mxu0 %v3815
      %4027 = vmatpush.bf16.msra.mxu0 %v3814
      %4028 = vmatpush.bf16.msra.mxu0 %v3813
      %4029 = vmatpush.bf16.msra.mxu0 %v3812
      %4030 = vmatmul.bf16.gmra.mxu0 %v3606
      %v4031 = vpop.f32.mrf.mxu0
      %v4032 = vadd.f32 %v3943, %v4031
      %v4033 = vpop.f32.mrf.mxu0
      %v4034 = vadd.f32 %v3945, %v4033
      %4035 = vmatmul.bf16.gmra.mxu0 %v3609
      %v4036 = vpop.f32.mrf.mxu0
      %v4037 = vadd.f32 %v3948, %v4036
      %v4038 = vpop.f32.mrf.mxu0
      %v4039 = vadd.f32 %v3950, %v4038
      %4040 = vmatmul.bf16.gmra.mxu0 %v3612
      %v4041 = vpop.f32.mrf.mxu0
      %v4042 = vadd.f32 %v3953, %v4041
      %v4043 = vpop.f32.mrf.mxu0
      %v4044 = vadd.f32 %v3955, %v4043
      %4045 = vmatmul.bf16.gmra.mxu0 %v3615
      %v4046 = vpop.f32.mrf.mxu0
      %v4047 = vadd.f32 %v3958, %v4046
      %v4048 = vpop.f32.mrf.mxu0
      %v4049 = vadd.f32 %v3960, %v4048
      %4050 = vmatmul.bf16.gmra.mxu0 %v3618
      %v4051 = vpop.f32.mrf.mxu0
      %v4052 = vadd.f32 %v3963, %v4051
      %v4053 = vpop.f32.mrf.mxu0
      %v4054 = vadd.f32 %v3965, %v4053
      %4055 = vmatmul.bf16.gmra.mxu0 %v3621
      %v4056 = vpop.f32.mrf.mxu0
      %v4057 = vadd.f32 %v3968, %v4056
      %v4058 = vpop.f32.mrf.mxu0
      %v4059 = vadd.f32 %v3970, %v4058
      %4060 = vmatmul.bf16.gmra.mxu0 %v3624
      %v4061 = vpop.f32.mrf.mxu0
      %v4062 = vadd.f32 %v3973, %v4061
      %v4063 = vpop.f32.mrf.mxu0
      %v4064 = vadd.f32 %v3975, %v4063
      %4065 = vmatmul.bf16.gmra.mxu0 %v3627
      %v4066 = vpop.f32.mrf.mxu0
      %v4067 = vadd.f32 %v3978, %v4066
      %v4068 = vpop.f32.mrf.mxu0
      %v4069 = vadd.f32 %v3980, %v4068
      %4070 = vmatmul.bf16.gmra.mxu0 %v3630
      %v4071 = vpop.f32.mrf.mxu0
      %v4072 = vadd.f32 %v3983, %v4071
      %v4073 = vpop.f32.mrf.mxu0
      %v4074 = vadd.f32 %v3985, %v4073
      %4075 = vmatmul.bf16.gmra.mxu0 %v3633
      %v4076 = vpop.f32.mrf.mxu0
      %v4077 = vadd.f32 %v3988, %v4076
      %v4078 = vpop.f32.mrf.mxu0
      %v4079 = vadd.f32 %v3990, %v4078
      %4080 = vmatmul.bf16.gmra.mxu0 %v3636
      %v4081 = vpop.f32.mrf.mxu0
      %v4082 = vadd.f32 %v3993, %v4081
      %v4083 = vpop.f32.mrf.mxu0
      %v4084 = vadd.f32 %v3995, %v4083
      %4085 = vmatmul.bf16.gmra.mxu0 %v3639
      %v4086 = vpop.f32.mrf.mxu0
      %v4087 = vadd.f32 %v3998, %v4086
      %v4088 = vpop.f32.mrf.mxu0
      %v4089 = vadd.f32 %v4000, %v4088
      %4090 = vmatmul.bf16.gmra.mxu0 %v3642
      %v4091 = vpop.f32.mrf.mxu0
      %v4092 = vadd.f32 %v4003, %v4091
      %v4093 = vpop.f32.mrf.mxu0
      %v4094 = vadd.f32 %v4005, %v4093
      %4095 = vmatmul.bf16.gmra.mxu0 %v3645
      %v4096 = vpop.f32.mrf.mxu0
      %v4097 = vadd.f32 %v4008, %v4096
      %v4098 = vpop.f32.mrf.mxu0
      %v4099 = vadd.f32 %v4010, %v4098
      %4100 = vmatmul.bf16.gmra.mxu0 %v3648
      %v4101 = vpop.f32.mrf.mxu0
      %v4102 = vadd.f32 %v4013, %v4101
      %v4103 = vpop.f32.mrf.mxu0
      %v4104 = vadd.f32 %v4015, %v4103
      %4105 = vmatmul.bf16.gmra.mxu0 %v3651
      %v4106 = vpop.f32.mrf.mxu0
      %v4107 = vadd.f32 %v4018, %v4106
      %v4108 = vpop.f32.mrf.mxu0
      %v4109 = vadd.f32 %v4020, %v4108
      %4110 = vdwg.mxu0
      %v4175 = vunpack.c.l.b16 %v3219
      %v4176 = vunpack.c.h.b16 %v3219
      %v4177 = vunpack.c.l.b16 %v3220
      %v4178 = vunpack.c.l.b16 %v3221
      %v4179 = vunpack.c.h.b16 %v3221
      %v4180 = vunpack.c.l.b16 %v3222
      %v4181 = vunpack.c.l.b16 %v3223
      %v4182 = vunpack.c.h.b16 %v3223
      %v4183 = vunpack.c.l.b16 %v3224
      %v4184 = vunpack.c.l.b16 %v3225
      %v4185 = vunpack.c.h.b16 %v3225
      %v4186 = vunpack.c.l.b16 %v3226
      %v4187 = vunpack.c.l.b16 %v3227
      %v4188 = vunpack.c.h.b16 %v3227
      %v4189 = vunpack.c.l.b16 %v3228
      %v4190 = vunpack.c.l.b16 %v3229
      %v4191 = vunpack.c.h.b16 %v3229
      %v4192 = vunpack.c.l.b16 %v3230
      %v4193 = vunpack.c.l.b16 %v3231
      %v4194 = vunpack.c.h.b16 %v3231
      %v4195 = vunpack.c.l.b16 %v3232
      %v4196 = vunpack.c.l.b16 %v3233
      %v4197 = vunpack.c.h.b16 %v3233
      %v4198 = vunpack.c.l.b16 %v3234
      %v4199 = vunpack.c.l.b16 %v3235
      %v4200 = vunpack.c.h.b16 %v3235
      %v4201 = vunpack.c.l.b16 %v3236
      %v4202 = vunpack.c.l.b16 %v3237
      %v4203 = vunpack.c.h.b16 %v3237
      %v4204 = vunpack.c.l.b16 %v3238
      %v4205 = vunpack.c.l.b16 %v3239
      %v4206 = vunpack.c.h.b16 %v3239
      %v4207 = vunpack.c.l.b16 %v3240
      %v4208 = vunpack.c.l.b16 %v3241
      %v4209 = vunpack.c.h.b16 %v3241
      %v4210 = vunpack.c.l.b16 %v3242
      %v4211 = vunpack.c.l.b16 %v3243
      %v4212 = vunpack.c.h.b16 %v3243
      %v4213 = vunpack.c.l.b16 %v3244
      %v4214 = vunpack.c.l.b16 %v3245
      %v4215 = vunpack.c.h.b16 %v3245
      %v4216 = vunpack.c.l.b16 %v3246
      %v4217 = vunpack.c.l.b16 %v3247
      %v4218 = vunpack.c.h.b16 %v3247
      %v4219 = vunpack.c.l.b16 %v3248
      %v4220 = vunpack.c.l.b16 %v3249
      %v4221 = vunpack.c.h.b16 %v3249
      %v4222 = vunpack.c.l.b16 %v3250
      %v4223 = vunpack.c.l.b16 %v3251
      %v4224 = vunpack.c.h.b16 %v3251
      %v4225 = vunpack.c.l.b16 %v3252
      %v4226 = vunpack.c.l.b16 %v3253
      %v4227 = vunpack.c.h.b16 %v3253
      %v4228 = vunpack.c.l.b16 %v3254
      %v4229 = vunpack.c.l.b16 %v3255
      %v4230 = vunpack.c.h.b16 %v3255
      %v4231 = vunpack.c.l.b16 %v3256
      %v4232 = vunpack.c.l.b16 %v3257
      %v4233 = vunpack.c.h.b16 %v3257
      %v4234 = vunpack.c.l.b16 %v3258
      %v4235 = vunpack.c.l.b16 %v3259
      %v4236 = vunpack.c.h.b16 %v3259
      %v4237 = vunpack.c.l.b16 %v3260
      %v4238 = vunpack.c.l.b16 %v3261
      %v4239 = vunpack.c.h.b16 %v3261
      %v4240 = vunpack.c.l.b16 %v3262
      %v4241 = vunpack.c.l.b16 %v3263
      %v4242 = vunpack.c.h.b16 %v3263
      %v4243 = vunpack.c.l.b16 %v3264
      %v4244 = vunpack.c.l.b16 %v3265
      %v4245 = vunpack.c.h.b16 %v3265
      %v4246 = vunpack.c.l.b16 %v3266
      %v4247 = vunpack.c.l.b16 %v3267
      %v4248 = vunpack.c.h.b16 %v3267
      %v4249 = vunpack.c.l.b16 %v3268
      %v4250 = vunpack.c.l.b16 %v3269
      %v4251 = vunpack.c.h.b16 %v3269
      %v4252 = vunpack.c.l.b16 %v3270
      %v4253 = vunpack.c.l.b16 %v3271
      %v4254 = vunpack.c.h.b16 %v3271
      %v4255 = vunpack.c.l.b16 %v3272
      %v4256 = vunpack.c.l.b16 %v3273
      %v4257 = vunpack.c.h.b16 %v3273
      %v4258 = vunpack.c.l.b16 %v3274
      %v4259 = vunpack.c.l.b16 %v3275
      %v4260 = vunpack.c.h.b16 %v3275
      %v4261 = vunpack.c.l.b16 %v3276
      %v4262 = vunpack.c.l.b16 %v3277
      %v4263 = vunpack.c.h.b16 %v3277
      %v4264 = vunpack.c.l.b16 %v3278
      %v4265 = vunpack.c.l.b16 %v3279
      %v4266 = vunpack.c.h.b16 %v3279
      %v4267 = vunpack.c.l.b16 %v3280
      %v4268 = vunpack.c.l.b16 %v3281
      %v4269 = vunpack.c.h.b16 %v3281
      %v4270 = vunpack.c.l.b16 %v3282
      %v4271 = vpack.c.b16 %v4178, %v4175
      %v4272 = vpack.c.b16 %v4179, %v4176
      %v4273 = vpack.c.b16 %v4180, %v4177
      %v4274 = vpack.c.b16 %v4184, %v4181
      %v4275 = vpack.c.b16 %v4185, %v4182
      %v4276 = vpack.c.b16 %v4186, %v4183
      %v4277 = vpack.c.b16 %v4190, %v4187
      %v4278 = vpack.c.b16 %v4191, %v4188
      %v4279 = vpack.c.b16 %v4192, %v4189
      %v4280 = vpack.c.b16 %v4196, %v4193
      %v4281 = vpack.c.b16 %v4197, %v4194
      %v4282 = vpack.c.b16 %v4198, %v4195
      %v4283 = vpack.c.b16 %v4202, %v4199
      %v4284 = vpack.c.b16 %v4203, %v4200
      %v4285 = vpack.c.b16 %v4204, %v4201
      %v4286 = vpack.c.b16 %v4208, %v4205
      %v4287 = vpack.c.b16 %v4209, %v4206
      %v4288 = vpack.c.b16 %v4210, %v4207
      %v4289 = vpack.c.b16 %v4214, %v4211
      %v4290 = vpack.c.b16 %v4215, %v4212
      %v4291 = vpack.c.b16 %v4216, %v4213
      %v4292 = vpack.c.b16 %v4220, %v4217
      %v4293 = vpack.c.b16 %v4221, %v4218
      %v4294 = vpack.c.b16 %v4222, %v4219
      %v4295 = vpack.c.b16 %v4226, %v4223
      %v4296 = vpack.c.b16 %v4227, %v4224
      %v4297 = vpack.c.b16 %v4228, %v4225
      %v4298 = vpack.c.b16 %v4232, %v4229
      %v4299 = vpack.c.b16 %v4233, %v4230
      %v4300 = vpack.c.b16 %v4234, %v4231
      %v4301 = vpack.c.b16 %v4238, %v4235
      %v4302 = vpack.c.b16 %v4239, %v4236
      %v4303 = vpack.c.b16 %v4240, %v4237
      %v4304 = vpack.c.b16 %v4244, %v4241
      %v4305 = vpack.c.b16 %v4245, %v4242
      %v4306 = vpack.c.b16 %v4246, %v4243
      %v4307 = vpack.c.b16 %v4250, %v4247
      %v4308 = vpack.c.b16 %v4251, %v4248
      %v4309 = vpack.c.b16 %v4252, %v4249
      %v4310 = vpack.c.b16 %v4256, %v4253
      %v4311 = vpack.c.b16 %v4257, %v4254
      %v4312 = vpack.c.b16 %v4258, %v4255
      %v4313 = vpack.c.b16 %v4262, %v4259
      %v4314 = vpack.c.b16 %v4263, %v4260
      %v4315 = vpack.c.b16 %v4264, %v4261
      %v4316 = vpack.c.b16 %v4268, %v4265
      %v4317 = vpack.c.b16 %v4269, %v4266
      %v4318 = vpack.c.b16 %v4270, %v4267
      %v4415 = vunpack.c.l.b16 %v3283
      %v4416 = vunpack.c.l.b16 %v3284
      %v4417 = vunpack.c.l.b16 %v3285
      %v4418 = vunpack.c.l.b16 %v3286
      %v4419 = vunpack.c.l.b16 %v3287
      %v4420 = vunpack.c.l.b16 %v3288
      %v4421 = vunpack.c.l.b16 %v3289
      %v4422 = vunpack.c.l.b16 %v3290
      %v4423 = vunpack.c.l.b16 %v3291
      %v4424 = vunpack.c.l.b16 %v3292
      %v4425 = vunpack.c.l.b16 %v3293
      %v4426 = vunpack.c.l.b16 %v3294
      %v4427 = vunpack.c.l.b16 %v3295
      %v4428 = vunpack.c.l.b16 %v3296
      %v4429 = vunpack.c.l.b16 %v3297
      %v4430 = vunpack.c.l.b16 %v3298
      %v4431 = vunpack.c.l.b16 %v3299
      %v4432 = vunpack.c.l.b16 %v3300
      %v4433 = vunpack.c.l.b16 %v3301
      %v4434 = vunpack.c.l.b16 %v3302
      %v4435 = vunpack.c.l.b16 %v3303
      %v4436 = vunpack.c.l.b16 %v3304
      %v4437 = vunpack.c.l.b16 %v3305
      %v4438 = vunpack.c.l.b16 %v3306
      %v4439 = vunpack.c.l.b16 %v3307
      %v4440 = vunpack.c.l.b16 %v3308
      %v4441 = vunpack.c.l.b16 %v3309
      %v4442 = vunpack.c.l.b16 %v3310
      %v4443 = vunpack.c.l.b16 %v3311
      %v4444 = vunpack.c.l.b16 %v3312
      %v4445 = vunpack.c.l.b16 %v3313
      %v4446 = vunpack.c.l.b16 %v3314
      %v4447 = vunpack.c.l.b16 %v3315
      %v4448 = vunpack.c.l.b16 %v3316
      %v4449 = vunpack.c.l.b16 %v3317
      %v4450 = vunpack.c.l.b16 %v3318
      %v4451 = vunpack.c.l.b16 %v3319
      %v4452 = vunpack.c.l.b16 %v3320
      %v4453 = vunpack.c.l.b16 %v3321
      %v4454 = vunpack.c.l.b16 %v3322
      %v4455 = vunpack.c.l.b16 %v3323
      %v4456 = vunpack.c.l.b16 %v3324
      %v4457 = vunpack.c.l.b16 %v3325
      %v4458 = vunpack.c.l.b16 %v3326
      %v4459 = vunpack.c.l.b16 %v3327
      %v4460 = vunpack.c.l.b16 %v3328
      %v4461 = vunpack.c.l.b16 %v3329
      %v4462 = vunpack.c.l.b16 %v3330
      %v4463 = vpack.c.b16 %v4416, %v4415
      %v4464 = vpack.c.b16 %v4418, %v4417
      %v4465 = vpack.c.b16 %v4420, %v4419
      %v4466 = vpack.c.b16 %v4422, %v4421
      %v4467 = vpack.c.b16 %v4424, %v4423
      %v4468 = vpack.c.b16 %v4426, %v4425
      %v4469 = vpack.c.b16 %v4428, %v4427
      %v4470 = vpack.c.b16 %v4430, %v4429
      %v4471 = vpack.c.b16 %v4432, %v4431
      %v4472 = vpack.c.b16 %v4434, %v4433
      %v4473 = vpack.c.b16 %v4436, %v4435
      %v4474 = vpack.c.b16 %v4438, %v4437
      %v4475 = vpack.c.b16 %v4440, %v4439
      %v4476 = vpack.c.b16 %v4442, %v4441
      %v4477 = vpack.c.b16 %v4444, %v4443
      %v4478 = vpack.c.b16 %v4446, %v4445
      %v4479 = vpack.c.b16 %v4448, %v4447
      %v4480 = vpack.c.b16 %v4450, %v4449
      %v4481 = vpack.c.b16 %v4452, %v4451
      %v4482 = vpack.c.b16 %v4454, %v4453
      %v4483 = vpack.c.b16 %v4456, %v4455
      %v4484 = vpack.c.b16 %v4458, %v4457
      %v4485 = vpack.c.b16 %v4460, %v4459
      %v4486 = vpack.c.b16 %v4462, %v4461
      %4511 = vmatpush.bf16.msra.mxu0 %v4470
      %4512 = vmatpush.bf16.msra.mxu0 %v4469
      %4513 = vmatpush.bf16.msra.mxu0 %v4468
      %4514 = vmatpush.bf16.msra.mxu0 %v4467
      %4515 = vmatpush.bf16.msra.mxu0 %v4466
      %4516 = vmatpush.bf16.msra.mxu0 %v4465
      %4517 = vmatpush.bf16.msra.mxu0 %v4464
      %4518 = vmatpush.bf16.msra.mxu0 %v4463
      %4519 = vmatmul.bf16.gmra.mxu0 %v4271
      %v4520 = vpop.f32.mrf.mxu0
      %v4521 = vadd.f32 %v4032, %v4520
      %v4522 = vpop.f32.mrf.mxu0
      %v4523 = vadd.f32 %v4034, %v4522
      %4524 = vmatmul.bf16.gmra.mxu0 %v4274
      %v4525 = vpop.f32.mrf.mxu0
      %v4526 = vadd.f32 %v4037, %v4525
      %v4527 = vpop.f32.mrf.mxu0
      %v4528 = vadd.f32 %v4039, %v4527
      %4529 = vmatmul.bf16.gmra.mxu0 %v4277
      %v4530 = vpop.f32.mrf.mxu0
      %v4531 = vadd.f32 %v4042, %v4530
      %v4532 = vpop.f32.mrf.mxu0
      %v4533 = vadd.f32 %v4044, %v4532
      %4534 = vmatmul.bf16.gmra.mxu0 %v4280
      %v4535 = vpop.f32.mrf.mxu0
      %v4536 = vadd.f32 %v4047, %v4535
      %v4537 = vpop.f32.mrf.mxu0
      %v4538 = vadd.f32 %v4049, %v4537
      %4539 = vmatmul.bf16.gmra.mxu0 %v4283
      %v4540 = vpop.f32.mrf.mxu0
      %v4541 = vadd.f32 %v4052, %v4540
      %v4542 = vpop.f32.mrf.mxu0
      %v4543 = vadd.f32 %v4054, %v4542
      %4544 = vmatmul.bf16.gmra.mxu0 %v4286
      %v4545 = vpop.f32.mrf.mxu0
      %v4546 = vadd.f32 %v4057, %v4545
      %v4547 = vpop.f32.mrf.mxu0
      %v4548 = vadd.f32 %v4059, %v4547
      %4549 = vmatmul.bf16.gmra.mxu0 %v4289
      %v4550 = vpop.f32.mrf.mxu0
      %v4551 = vadd.f32 %v4062, %v4550
      %v4552 = vpop.f32.mrf.mxu0
      %v4553 = vadd.f32 %v4064, %v4552
      %4554 = vmatmul.bf16.gmra.mxu0 %v4292
      %v4555 = vpop.f32.mrf.mxu0
      %v4556 = vadd.f32 %v4067, %v4555
      %v4557 = vpop.f32.mrf.mxu0
      %v4558 = vadd.f32 %v4069, %v4557
      %4559 = vmatmul.bf16.gmra.mxu0 %v4295
      %v4560 = vpop.f32.mrf.mxu0
      %v4561 = vadd.f32 %v4072, %v4560
      %v4562 = vpop.f32.mrf.mxu0
      %v4563 = vadd.f32 %v4074, %v4562
      %4564 = vmatmul.bf16.gmra.mxu0 %v4298
      %v4565 = vpop.f32.mrf.mxu0
      %v4566 = vadd.f32 %v4077, %v4565
      %v4567 = vpop.f32.mrf.mxu0
      %v4568 = vadd.f32 %v4079, %v4567
      %4569 = vmatmul.bf16.gmra.mxu0 %v4301
      %v4570 = vpop.f32.mrf.mxu0
      %v4571 = vadd.f32 %v4082, %v4570
      %v4572 = vpop.f32.mrf.mxu0
      %v4573 = vadd.f32 %v4084, %v4572
      %4574 = vmatmul.bf16.gmra.mxu0 %v4304
      %v4575 = vpop.f32.mrf.mxu0
      %v4576 = vadd.f32 %v4087, %v4575
      %v4577 = vpop.f32.mrf.mxu0
      %v4578 = vadd.f32 %v4089, %v4577
      %4579 = vmatmul.bf16.gmra.mxu0 %v4307
      %v4580 = vpop.f32.mrf.mxu0
      %v4581 = vadd.f32 %v4092, %v4580
      %v4582 = vpop.f32.mrf.mxu0
      %v4583 = vadd.f32 %v4094, %v4582
      %4584 = vmatmul.bf16.gmra.mxu0 %v4310
      %v4585 = vpop.f32.mrf.mxu0
      %v4586 = vadd.f32 %v4097, %v4585
      %v4587 = vpop.f32.mrf.mxu0
      %v4588 = vadd.f32 %v4099, %v4587
      %4589 = vmatmul.bf16.gmra.mxu0 %v4313
      %v4590 = vpop.f32.mrf.mxu0
      %v4591 = vadd.f32 %v4102, %v4590
      %v4592 = vpop.f32.mrf.mxu0
      %v4593 = vadd.f32 %v4104, %v4592
      %4594 = vmatmul.bf16.gmra.mxu0 %v4316
      %v4595 = vpop.f32.mrf.mxu0
      %v4596 = vadd.f32 %v4107, %v4595
      %v4597 = vpop.f32.mrf.mxu0
      %v4598 = vadd.f32 %v4109, %v4597
      %4599 = vdwg.mxu0
      %4600 = vmatpush.bf16.msra.mxu0 %v4478
      %4601 = vmatpush.bf16.msra.mxu0 %v4477
      %4602 = vmatpush.bf16.msra.mxu0 %v4476
      %4603 = vmatpush.bf16.msra.mxu0 %v4475
      %4604 = vmatpush.bf16.msra.mxu0 %v4474
      %4605 = vmatpush.bf16.msra.mxu0 %v4473
      %4606 = vmatpush.bf16.msra.mxu0 %v4472
      %4607 = vmatpush.bf16.msra.mxu0 %v4471
      %4608 = vmatmul.bf16.gmra.mxu0 %v4272
      %v4609 = vpop.f32.mrf.mxu0
      %v4610 = vadd.f32 %v4521, %v4609
      %v4611 = vpop.f32.mrf.mxu0
      %v4612 = vadd.f32 %v4523, %v4611
      %4613 = vmatmul.bf16.gmra.mxu0 %v4275
      %v4614 = vpop.f32.mrf.mxu0
      %v4615 = vadd.f32 %v4526, %v4614
      %v4616 = vpop.f32.mrf.mxu0
      %v4617 = vadd.f32 %v4528, %v4616
      %4618 = vmatmul.bf16.gmra.mxu0 %v4278
      %v4619 = vpop.f32.mrf.mxu0
      %v4620 = vadd.f32 %v4531, %v4619
      %v4621 = vpop.f32.mrf.mxu0
      %v4622 = vadd.f32 %v4533, %v4621
      %4623 = vmatmul.bf16.gmra.mxu0 %v4281
      %v4624 = vpop.f32.mrf.mxu0
      %v4625 = vadd.f32 %v4536, %v4624
      %v4626 = vpop.f32.mrf.mxu0
      %v4627 = vadd.f32 %v4538, %v4626
      %4628 = vmatmul.bf16.gmra.mxu0 %v4284
      %v4629 = vpop.f32.mrf.mxu0
      %v4630 = vadd.f32 %v4541, %v4629
      %v4631 = vpop.f32.mrf.mxu0
      %v4632 = vadd.f32 %v4543, %v4631
      %4633 = vmatmul.bf16.gmra.mxu0 %v4287
      %v4634 = vpop.f32.mrf.mxu0
      %v4635 = vadd.f32 %v4546, %v4634
      %v4636 = vpop.f32.mrf.mxu0
      %v4637 = vadd.f32 %v4548, %v4636
      %4638 = vmatmul.bf16.gmra.mxu0 %v4290
      %v4639 = vpop.f32.mrf.mxu0
      %v4640 = vadd.f32 %v4551, %v4639
      %v4641 = vpop.f32.mrf.mxu0
      %v4642 = vadd.f32 %v4553, %v4641
      %4643 = vmatmul.bf16.gmra.mxu0 %v4293
      %v4644 = vpop.f32.mrf.mxu0
      %v4645 = vadd.f32 %v4556, %v4644
      %v4646 = vpop.f32.mrf.mxu0
      %v4647 = vadd.f32 %v4558, %v4646
      %4648 = vmatmul.bf16.gmra.mxu0 %v4296
      %v4649 = vpop.f32.mrf.mxu0
      %v4650 = vadd.f32 %v4561, %v4649
      %v4651 = vpop.f32.mrf.mxu0
      %v4652 = vadd.f32 %v4563, %v4651
      %4653 = vmatmul.bf16.gmra.mxu0 %v4299
      %v4654 = vpop.f32.mrf.mxu0
      %v4655 = vadd.f32 %v4566, %v4654
      %v4656 = vpop.f32.mrf.mxu0
      %v4657 = vadd.f32 %v4568, %v4656
      %4658 = vmatmul.bf16.gmra.mxu0 %v4302
      %v4659 = vpop.f32.mrf.mxu0
      %v4660 = vadd.f32 %v4571, %v4659
      %v4661 = vpop.f32.mrf.mxu0
      %v4662 = vadd.f32 %v4573, %v4661
      %4663 = vmatmul.bf16.gmra.mxu0 %v4305
      %v4664 = vpop.f32.mrf.mxu0
      %v4665 = vadd.f32 %v4576, %v4664
      %v4666 = vpop.f32.mrf.mxu0
      %v4667 = vadd.f32 %v4578, %v4666
      %4668 = vmatmul.bf16.gmra.mxu0 %v4308
      %v4669 = vpop.f32.mrf.mxu0
      %v4670 = vadd.f32 %v4581, %v4669
      %v4671 = vpop.f32.mrf.mxu0
      %v4672 = vadd.f32 %v4583, %v4671
      %4673 = vmatmul.bf16.gmra.mxu0 %v4311
      %v4674 = vpop.f32.mrf.mxu0
      %v4675 = vadd.f32 %v4586, %v4674
      %v4676 = vpop.f32.mrf.mxu0
      %v4677 = vadd.f32 %v4588, %v4676
      %4678 = vmatmul.bf16.gmra.mxu0 %v4314
      %v4679 = vpop.f32.mrf.mxu0
      %v4680 = vadd.f32 %v4591, %v4679
      %v4681 = vpop.f32.mrf.mxu0
      %v4682 = vadd.f32 %v4593, %v4681
      %4683 = vmatmul.bf16.gmra.mxu0 %v4317
      %v4684 = vpop.f32.mrf.mxu0
      %v4685 = vadd.f32 %v4596, %v4684
      %v4686 = vpop.f32.mrf.mxu0
      %v4687 = vadd.f32 %v4598, %v4686
      %4688 = vdwg.mxu0
      %4689 = vmatpush.bf16.msra.mxu0 %v4486
      %4690 = vmatpush.bf16.msra.mxu0 %v4485
      %4691 = vmatpush.bf16.msra.mxu0 %v4484
      %4692 = vmatpush.bf16.msra.mxu0 %v4483
      %4693 = vmatpush.bf16.msra.mxu0 %v4482
      %4694 = vmatpush.bf16.msra.mxu0 %v4481
      %4695 = vmatpush.bf16.msra.mxu0 %v4480
      %4696 = vmatpush.bf16.msra.mxu0 %v4479
      %4697 = vmatmul.bf16.gmra.mxu0 %v4273
      %v4698 = vpop.f32.mrf.mxu0
      %v4699 = vadd.f32 %v4610, %v4698
      %v4700 = vpop.f32.mrf.mxu0
      %v4701 = vadd.f32 %v4612, %v4700
      %4702 = vmatmul.bf16.gmra.mxu0 %v4276
      %v4703 = vpop.f32.mrf.mxu0
      %v4704 = vadd.f32 %v4615, %v4703
      %v4705 = vpop.f32.mrf.mxu0
      %v4706 = vadd.f32 %v4617, %v4705
      %4707 = vmatmul.bf16.gmra.mxu0 %v4279
      %v4708 = vpop.f32.mrf.mxu0
      %v4709 = vadd.f32 %v4620, %v4708
      %v4710 = vpop.f32.mrf.mxu0
      %v4711 = vadd.f32 %v4622, %v4710
      %4712 = vmatmul.bf16.gmra.mxu0 %v4282
      %v4713 = vpop.f32.mrf.mxu0
      %v4714 = vadd.f32 %v4625, %v4713
      %v4715 = vpop.f32.mrf.mxu0
      %v4716 = vadd.f32 %v4627, %v4715
      %4717 = vmatmul.bf16.gmra.mxu0 %v4285
      %v4718 = vpop.f32.mrf.mxu0
      %v4719 = vadd.f32 %v4630, %v4718
      %v4720 = vpop.f32.mrf.mxu0
      %v4721 = vadd.f32 %v4632, %v4720
      %4722 = vmatmul.bf16.gmra.mxu0 %v4288
      %v4723 = vpop.f32.mrf.mxu0
      %v4724 = vadd.f32 %v4635, %v4723
      %v4725 = vpop.f32.mrf.mxu0
      %v4726 = vadd.f32 %v4637, %v4725
      %4727 = vmatmul.bf16.gmra.mxu0 %v4291
      %v4728 = vpop.f32.mrf.mxu0
      %v4729 = vadd.f32 %v4640, %v4728
      %v4730 = vpop.f32.mrf.mxu0
      %v4731 = vadd.f32 %v4642, %v4730
      %4732 = vmatmul.bf16.gmra.mxu0 %v4294
      %v4733 = vpop.f32.mrf.mxu0
      %v4734 = vadd.f32 %v4645, %v4733
      %v4735 = vpop.f32.mrf.mxu0
      %v4736 = vadd.f32 %v4647, %v4735
      %4737 = vmatmul.bf16.gmra.mxu0 %v4297
      %v4738 = vpop.f32.mrf.mxu0
      %v4739 = vadd.f32 %v4650, %v4738
      %v4740 = vpop.f32.mrf.mxu0
      %v4741 = vadd.f32 %v4652, %v4740
      %4742 = vmatmul.bf16.gmra.mxu0 %v4300
      %v4743 = vpop.f32.mrf.mxu0
      %v4744 = vadd.f32 %v4655, %v4743
      %v4745 = vpop.f32.mrf.mxu0
      %v4746 = vadd.f32 %v4657, %v4745
      %4747 = vmatmul.bf16.gmra.mxu0 %v4303
      %v4748 = vpop.f32.mrf.mxu0
      %v4749 = vadd.f32 %v4660, %v4748
      %v4750 = vpop.f32.mrf.mxu0
      %v4751 = vadd.f32 %v4662, %v4750
      %4752 = vmatmul.bf16.gmra.mxu0 %v4306
      %v4753 = vpop.f32.mrf.mxu0
      %v4754 = vadd.f32 %v4665, %v4753
      %v4755 = vpop.f32.mrf.mxu0
      %v4756 = vadd.f32 %v4667, %v4755
      %4757 = vmatmul.bf16.gmra.mxu0 %v4309
      %v4758 = vpop.f32.mrf.mxu0
      %v4759 = vadd.f32 %v4670, %v4758
      %v4760 = vpop.f32.mrf.mxu0
      %v4761 = vadd.f32 %v4672, %v4760
      %4762 = vmatmul.bf16.gmra.mxu0 %v4312
      %v4763 = vpop.f32.mrf.mxu0
      %v4764 = vadd.f32 %v4675, %v4763
      %v4765 = vpop.f32.mrf.mxu0
      %v4766 = vadd.f32 %v4677, %v4765
      %4767 = vmatmul.bf16.gmra.mxu0 %v4315
      %v4768 = vpop.f32.mrf.mxu0
      %v4769 = vadd.f32 %v4680, %v4768
      %v4770 = vpop.f32.mrf.mxu0
      %v4771 = vadd.f32 %v4682, %v4770
      %4772 = vmatmul.bf16.gmra.mxu0 %v4318
      %v4773 = vpop.f32.mrf.mxu0
      %v4774 = vadd.f32 %v4685, %v4773
      %v4775 = vpop.f32.mrf.mxu0
      %v4776 = vadd.f32 %v4687, %v4775
      %4777 = vdwg.mxu0
      %v4778 = vld [vmem:[%s3200] sm:$0xff]
      %v4779 = vld [vmem:[%s3200 + $0x8] sm:$0xf]
      %v4780 = vld [vmem:[%s3200 + $0xc] sm:$0xff]
      %v4781 = vld [vmem:[%s3200 + $0x14] sm:$0xf]
      %v4782 = vld [vmem:[%s3200 + $0x18] sm:$0xff]
      %v4783 = vld [vmem:[%s3200 + $0x20] sm:$0xf]
      %v4784 = vld [vmem:[%s3200 + $0x24] sm:$0xff]
      %v4785 = vld [vmem:[%s3200 + $0x2c] sm:$0xf]
      %v4786 = vld [vmem:[%s3200 + $0x30] sm:$0xff]
      %v4787 = vld [vmem:[%s3200 + $0x38] sm:$0xf]
      %v4788 = vld [vmem:[%s3200 + $0x3c] sm:$0xff]
      %v4789 = vld [vmem:[%s3200 + $0x44] sm:$0xf]
      %v4790 = vld [vmem:[%s3200 + $0x48] sm:$0xff]
      %v4791 = vld [vmem:[%s3200 + $0x50] sm:$0xf]
      %v4792 = vld [vmem:[%s3200 + $0x54] sm:$0xff]
      %v4793 = vld [vmem:[%s3200 + $0x5c] sm:$0xf]
      %v4794 = vld [vmem:[%s3200 + $0x60] sm:$0xff]
      %v4795 = vld [vmem:[%s3200 + $0x68] sm:$0xf]
      %v4796 = vld [vmem:[%s3200 + $0x6c] sm:$0xff]
      %v4797 = vld [vmem:[%s3200 + $0x74] sm:$0xf]
      %v4798 = vld [vmem:[%s3200 + $0x78] sm:$0xff]
      %v4799 = vld [vmem:[%s3200 + $0x80] sm:$0xf]
      %v4800 = vld [vmem:[%s3200 + $0x84] sm:$0xff]
      %v4801 = vld [vmem:[%s3200 + $0x8c] sm:$0xf]
      %v4802 = vld [vmem:[%s3200 + $0x90] sm:$0xff]
      %v4803 = vld [vmem:[%s3200 + $0x98] sm:$0xf]
      %v4804 = vld [vmem:[%s3200 + $0x9c] sm:$0xff]
      %v4805 = vld [vmem:[%s3200 + $0xa4] sm:$0xf]
      %v4806 = vld [vmem:[%s3200 + $0xa8] sm:$0xff]
      %v4807 = vld [vmem:[%s3200 + $0xb0] sm:$0xf]
      %v4808 = vld [vmem:[%s3200 + $0xb4] sm:$0xff]
      %v4809 = vld [vmem:[%s3200 + $0xbc] sm:$0xf]
      %v4810 = vld [vmem:[%s3200 + $0xc0] sm:$0xff]
      %v4811 = vld [vmem:[%s3200 + $0xc8] sm:$0xf]
      %v4812 = vld [vmem:[%s3200 + $0xcc] sm:$0xff]
      %v4813 = vld [vmem:[%s3200 + $0xd4] sm:$0xf]
      %v4814 = vld [vmem:[%s3200 + $0xd8] sm:$0xff]
      %v4815 = vld [vmem:[%s3200 + $0xe0] sm:$0xf]
      %v4816 = vld [vmem:[%s3200 + $0xe4] sm:$0xff]
      %v4817 = vld [vmem:[%s3200 + $0xec] sm:$0xf]
      %v4818 = vld [vmem:[%s3200 + $0xf0] sm:$0xff]
      %v4819 = vld [vmem:[%s3200 + $0xf8] sm:$0xf]
      %v4820 = vld [vmem:[%s3200 + $0xfc] sm:$0xff]
      %v4821 = vld [vmem:[%s3200 + $0x104] sm:$0xf]
      %v4822 = vld [vmem:[%s3200 + $0x108] sm:$0xff]
      %v4823 = vld [vmem:[%s3200 + $0x110] sm:$0xf]
      %v4824 = vld [vmem:[%s3200 + $0x114] sm:$0xff]
      %v4825 = vld [vmem:[%s3200 + $0x11c] sm:$0xf]
      %v4826 = vld [vmem:[%s3200 + $0x120] sm:$0xff]
      %v4827 = vld [vmem:[%s3200 + $0x128] sm:$0xf]
      %v4828 = vld [vmem:[%s3200 + $0x12c] sm:$0xff]
      %v4829 = vld [vmem:[%s3200 + $0x134] sm:$0xf]
      %v4830 = vld [vmem:[%s3200 + $0x138] sm:$0xff]
      %v4831 = vld [vmem:[%s3200 + $0x140] sm:$0xf]
      %v4832 = vld [vmem:[%s3200 + $0x144] sm:$0xff]
      %v4833 = vld [vmem:[%s3200 + $0x14c] sm:$0xf]
      %v4834 = vld [vmem:[%s3200 + $0x150] sm:$0xff]
      %v4835 = vld [vmem:[%s3200 + $0x158] sm:$0xf]
      %v4836 = vld [vmem:[%s3200 + $0x15c] sm:$0xff]
      %v4837 = vld [vmem:[%s3200 + $0x164] sm:$0xf]
      %v4838 = vld [vmem:[%s3200 + $0x168] sm:$0xff]
      %v4839 = vld [vmem:[%s3200 + $0x170] sm:$0xf]
      %v4840 = vld [vmem:[%s3200 + $0x174] sm:$0xff]
      %v4841 = vld [vmem:[%s3200 + $0x17c] sm:$0xf]
      %s4842 = scalar_lea.vmem %s2, 384
      %v4843 = vld [vmem:[%s4842] sm:$0xf]
      %v4844 = vld [vmem:[%s4842 + $0x4] sm:$0xf]
      %v4845 = vld [vmem:[%s4842 + $0x8] sm:$0xf]
      %v4846 = vld [vmem:[%s4842 + $0xc] sm:$0xf]
      %v4847 = vld [vmem:[%s4842 + $0x10] sm:$0xf]
      %v4848 = vld [vmem:[%s4842 + $0x14] sm:$0xf]
      %v4849 = vld [vmem:[%s4842 + $0x18] sm:$0xf]
      %v4850 = vld [vmem:[%s4842 + $0x1c] sm:$0xf]
      %v4851 = vld [vmem:[%s4842 + $0x20] sm:$0xf]
      %v4852 = vld [vmem:[%s4842 + $0x24] sm:$0xf]
      %v4853 = vld [vmem:[%s4842 + $0x28] sm:$0xf]
      %v4854 = vld [vmem:[%s4842 + $0x2c] sm:$0xf]
      %v4855 = vld [vmem:[%s4842 + $0x30] sm:$0xf]
      %v4856 = vld [vmem:[%s4842 + $0x34] sm:$0xf]
      %v4857 = vld [vmem:[%s4842 + $0x38] sm:$0xf]
      %v4858 = vld [vmem:[%s4842 + $0x3c] sm:$0xf]
      %v4859 = vld [vmem:[%s4842 + $0x40] sm:$0xf]
      %v4860 = vld [vmem:[%s4842 + $0x44] sm:$0xf]
      %v4861 = vld [vmem:[%s4842 + $0x48] sm:$0xf]
      %v4862 = vld [vmem:[%s4842 + $0x4c] sm:$0xf]
      %v4863 = vld [vmem:[%s4842 + $0x50] sm:$0xf]
      %v4864 = vld [vmem:[%s4842 + $0x54] sm:$0xf]
      %v4865 = vld [vmem:[%s4842 + $0x58] sm:$0xf]
      %v4866 = vld [vmem:[%s4842 + $0x5c] sm:$0xf]
      %v4867 = vld [vmem:[%s4842 + $0x60] sm:$0xf]
      %v4868 = vld [vmem:[%s4842 + $0x64] sm:$0xf]
      %v4869 = vld [vmem:[%s4842 + $0x68] sm:$0xf]
      %v4870 = vld [vmem:[%s4842 + $0x6c] sm:$0xf]
      %v4871 = vld [vmem:[%s4842 + $0x70] sm:$0xf]
      %v4872 = vld [vmem:[%s4842 + $0x74] sm:$0xf]
      %v4873 = vld [vmem:[%s4842 + $0x78] sm:$0xf]
      %v4874 = vld [vmem:[%s4842 + $0x7c] sm:$0xf]
      %v4875 = vld [vmem:[%s4842 + $0x80] sm:$0xf]
      %v4876 = vld [vmem:[%s4842 + $0x84] sm:$0xf]
      %v4877 = vld [vmem:[%s4842 + $0x88] sm:$0xf]
      %v4878 = vld [vmem:[%s4842 + $0x8c] sm:$0xf]
      %v4879 = vld [vmem:[%s4842 + $0x90] sm:$0xf]
      %v4880 = vld [vmem:[%s4842 + $0x94] sm:$0xf]
      %v4881 = vld [vmem:[%s4842 + $0x98] sm:$0xf]
      %v4882 = vld [vmem:[%s4842 + $0x9c] sm:$0xf]
      %v4883 = vld [vmem:[%s4842 + $0xa0] sm:$0xf]
      %v4884 = vld [vmem:[%s4842 + $0xa4] sm:$0xf]
      %v4885 = vld [vmem:[%s4842 + $0xa8] sm:$0xf]
      %v4886 = vld [vmem:[%s4842 + $0xac] sm:$0xf]
      %v4887 = vld [vmem:[%s4842 + $0xb0] sm:$0xf]
      %v4888 = vld [vmem:[%s4842 + $0xb4] sm:$0xf]
      %v4889 = vld [vmem:[%s4842 + $0xb8] sm:$0xf]
      %v4890 = vld [vmem:[%s4842 + $0xbc] sm:$0xf]
      %v4955 = vunpack.c.l.b16 %v4778
      %v4956 = vunpack.c.h.b16 %v4778
      %v4957 = vunpack.c.l.b16 %v4779
      %v4958 = vunpack.c.l.b16 %v4780
      %v4959 = vunpack.c.h.b16 %v4780
      %v4960 = vunpack.c.l.b16 %v4781
      %v4961 = vunpack.c.l.b16 %v4782
      %v4962 = vunpack.c.h.b16 %v4782
      %v4963 = vunpack.c.l.b16 %v4783
      %v4964 = vunpack.c.l.b16 %v4784
      %v4965 = vunpack.c.h.b16 %v4784
      %v4966 = vunpack.c.l.b16 %v4785
      %v4967 = vunpack.c.l.b16 %v4786
      %v4968 = vunpack.c.h.b16 %v4786
      %v4969 = vunpack.c.l.b16 %v4787
      %v4970 = vunpack.c.l.b16 %v4788
      %v4971 = vunpack.c.h.b16 %v4788
      %v4972 = vunpack.c.l.b16 %v4789
      %v4973 = vunpack.c.l.b16 %v4790
      %v4974 = vunpack.c.h.b16 %v4790
      %v4975 = vunpack.c.l.b16 %v4791
      %v4976 = vunpack.c.l.b16 %v4792
      %v4977 = vunpack.c.h.b16 %v4792
      %v4978 = vunpack.c.l.b16 %v4793
      %v4979 = vunpack.c.l.b16 %v4794
      %v4980 = vunpack.c.h.b16 %v4794
      %v4981 = vunpack.c.l.b16 %v4795
      %v4982 = vunpack.c.l.b16 %v4796
      %v4983 = vunpack.c.h.b16 %v4796
      %v4984 = vunpack.c.l.b16 %v4797
      %v4985 = vunpack.c.l.b16 %v4798
      %v4986 = vunpack.c.h.b16 %v4798
      %v4987 = vunpack.c.l.b16 %v4799
      %v4988 = vunpack.c.l.b16 %v4800
      %v4989 = vunpack.c.h.b16 %v4800
      %v4990 = vunpack.c.l.b16 %v4801
      %v4991 = vunpack.c.l.b16 %v4802
      %v4992 = vunpack.c.h.b16 %v4802
      %v4993 = vunpack.c.l.b16 %v4803
      %v4994 = vunpack.c.l.b16 %v4804
      %v4995 = vunpack.c.h.b16 %v4804
      %v4996 = vunpack.c.l.b16 %v4805
      %v4997 = vunpack.c.l.b16 %v4806
      %v4998 = vunpack.c.h.b16 %v4806
      %v4999 = vunpack.c.l.b16 %v4807
      %v5000 = vunpack.c.l.b16 %v4808
      %v5001 = vunpack.c.h.b16 %v4808
      %v5002 = vunpack.c.l.b16 %v4809
      %v5003 = vunpack.c.l.b16 %v4810
      %v5004 = vunpack.c.h.b16 %v4810
      %v5005 = vunpack.c.l.b16 %v4811
      %v5006 = vunpack.c.l.b16 %v4812
      %v5007 = vunpack.c.h.b16 %v4812
      %v5008 = vunpack.c.l.b16 %v4813
      %v5009 = vunpack.c.l.b16 %v4814
      %v5010 = vunpack.c.h.b16 %v4814
      %v5011 = vunpack.c.l.b16 %v4815
      %v5012 = vunpack.c.l.b16 %v4816
      %v5013 = vunpack.c.h.b16 %v4816
      %v5014 = vunpack.c.l.b16 %v4817
      %v5015 = vunpack.c.l.b16 %v4818
      %v5016 = vunpack.c.h.b16 %v4818
      %v5017 = vunpack.c.l.b16 %v4819
      %v5018 = vunpack.c.l.b16 %v4820
      %v5019 = vunpack.c.h.b16 %v4820
      %v5020 = vunpack.c.l.b16 %v4821
      %v5021 = vunpack.c.l.b16 %v4822
      %v5022 = vunpack.c.h.b16 %v4822
      %v5023 = vunpack.c.l.b16 %v4823
      %v5024 = vunpack.c.l.b16 %v4824
      %v5025 = vunpack.c.h.b16 %v4824
      %v5026 = vunpack.c.l.b16 %v4825
      %v5027 = vunpack.c.l.b16 %v4826
      %v5028 = vunpack.c.h.b16 %v4826
      %v5029 = vunpack.c.l.b16 %v4827
      %v5030 = vunpack.c.l.b16 %v4828
      %v5031 = vunpack.c.h.b16 %v4828
      %v5032 = vunpack.c.l.b16 %v4829
      %v5033 = vunpack.c.l.b16 %v4830
      %v5034 = vunpack.c.h.b16 %v4830
      %v5035 = vunpack.c.l.b16 %v4831
      %v5036 = vunpack.c.l.b16 %v4832
      %v5037 = vunpack.c.h.b16 %v4832
      %v5038 = vunpack.c.l.b16 %v4833
      %v5039 = vunpack.c.l.b16 %v4834
      %v5040 = vunpack.c.h.b16 %v4834
      %v5041 = vunpack.c.l.b16 %v4835
      %v5042 = vunpack.c.l.b16 %v4836
      %v5043 = vunpack.c.h.b16 %v4836
      %v5044 = vunpack.c.l.b16 %v4837
      %v5045 = vunpack.c.l.b16 %v4838
      %v5046 = vunpack.c.h.b16 %v4838
      %v5047 = vunpack.c.l.b16 %v4839
      %v5048 = vunpack.c.l.b16 %v4840
      %v5049 = vunpack.c.h.b16 %v4840
      %v5050 = vunpack.c.l.b16 %v4841
      %v5051 = vpack.c.b16 %v4958, %v4955
      %v5052 = vpack.c.b16 %v4959, %v4956
      %v5053 = vpack.c.b16 %v4960, %v4957
      %v5054 = vpack.c.b16 %v4964, %v4961
      %v5055 = vpack.c.b16 %v4965, %v4962
      %v5056 = vpack.c.b16 %v4966, %v4963
      %v5057 = vpack.c.b16 %v4970, %v4967
      %v5058 = vpack.c.b16 %v4971, %v4968
      %v5059 = vpack.c.b16 %v4972, %v4969
      %v5060 = vpack.c.b16 %v4976, %v4973
      %v5061 = vpack.c.b16 %v4977, %v4974
      %v5062 = vpack.c.b16 %v4978, %v4975
      %v5063 = vpack.c.b16 %v4982, %v4979
      %v5064 = vpack.c.b16 %v4983, %v4980
      %v5065 = vpack.c.b16 %v4984, %v4981
      %v5066 = vpack.c.b16 %v4988, %v4985
      %v5067 = vpack.c.b16 %v4989, %v4986
      %v5068 = vpack.c.b16 %v4990, %v4987
      %v5069 = vpack.c.b16 %v4994, %v4991
      %v5070 = vpack.c.b16 %v4995, %v4992
      %v5071 = vpack.c.b16 %v4996, %v4993
      %v5072 = vpack.c.b16 %v5000, %v4997
      %v5073 = vpack.c.b16 %v5001, %v4998
      %v5074 = vpack.c.b16 %v5002, %v4999
      %v5075 = vpack.c.b16 %v5006, %v5003
      %v5076 = vpack.c.b16 %v5007, %v5004
      %v5077 = vpack.c.b16 %v5008, %v5005
      %v5078 = vpack.c.b16 %v5012, %v5009
      %v5079 = vpack.c.b16 %v5013, %v5010
      %v5080 = vpack.c.b16 %v5014, %v5011
      %v5081 = vpack.c.b16 %v5018, %v5015
      %v5082 = vpack.c.b16 %v5019, %v5016
      %v5083 = vpack.c.b16 %v5020, %v5017
      %v5084 = vpack.c.b16 %v5024, %v5021
      %v5085 = vpack.c.b16 %v5025, %v5022
      %v5086 = vpack.c.b16 %v5026, %v5023
      %v5087 = vpack.c.b16 %v5030, %v5027
      %v5088 = vpack.c.b16 %v5031, %v5028
      %v5089 = vpack.c.b16 %v5032, %v5029
      %v5090 = vpack.c.b16 %v5036, %v5033
      %v5091 = vpack.c.b16 %v5037, %v5034
      %v5092 = vpack.c.b16 %v5038, %v5035
      %v5093 = vpack.c.b16 %v5042, %v5039
      %v5094 = vpack.c.b16 %v5043, %v5040
      %v5095 = vpack.c.b16 %v5044, %v5041
      %v5096 = vpack.c.b16 %v5048, %v5045
      %v5097 = vpack.c.b16 %v5049, %v5046
      %v5098 = vpack.c.b16 %v5050, %v5047
      %v5195 = vunpack.c.l.b16 %v4843
      %v5196 = vunpack.c.l.b16 %v4844
      %v5197 = vunpack.c.l.b16 %v4845
      %v5198 = vunpack.c.l.b16 %v4846
      %v5199 = vunpack.c.l.b16 %v4847
      %v5200 = vunpack.c.l.b16 %v4848
      %v5201 = vunpack.c.l.b16 %v4849
      %v5202 = vunpack.c.l.b16 %v4850
      %v5203 = vunpack.c.l.b16 %v4851
      %v5204 = vunpack.c.l.b16 %v4852
      %v5205 = vunpack.c.l.b16 %v4853
      %v5206 = vunpack.c.l.b16 %v4854
      %v5207 = vunpack.c.l.b16 %v4855
      %v5208 = vunpack.c.l.b16 %v4856
      %v5209 = vunpack.c.l.b16 %v4857
      %v5210 = vunpack.c.l.b16 %v4858
      %v5211 = vunpack.c.l.b16 %v4859
      %v5212 = vunpack.c.l.b16 %v4860
      %v5213 = vunpack.c.l.b16 %v4861
      %v5214 = vunpack.c.l.b16 %v4862
      %v5215 = vunpack.c.l.b16 %v4863
      %v5216 = vunpack.c.l.b16 %v4864
      %v5217 = vunpack.c.l.b16 %v4865
      %v5218 = vunpack.c.l.b16 %v4866
      %v5219 = vunpack.c.l.b16 %v4867
      %v5220 = vunpack.c.l.b16 %v4868
      %v5221 = vunpack.c.l.b16 %v4869
      %v5222 = vunpack.c.l.b16 %v4870
      %v5223 = vunpack.c.l.b16 %v4871
      %v5224 = vunpack.c.l.b16 %v4872
      %v5225 = vunpack.c.l.b16 %v4873
      %v5226 = vunpack.c.l.b16 %v4874
      %v5227 = vunpack.c.l.b16 %v4875
      %v5228 = vunpack.c.l.b16 %v4876
      %v5229 = vunpack.c.l.b16 %v4877
      %v5230 = vunpack.c.l.b16 %v4878
      %v5231 = vunpack.c.l.b16 %v4879
      %v5232 = vunpack.c.l.b16 %v4880
      %v5233 = vunpack.c.l.b16 %v4881
      %v5234 = vunpack.c.l.b16 %v4882
      %v5235 = vunpack.c.l.b16 %v4883
      %v5236 = vunpack.c.l.b16 %v4884
      %v5237 = vunpack.c.l.b16 %v4885
      %v5238 = vunpack.c.l.b16 %v4886
      %v5239 = vunpack.c.l.b16 %v4887
      %v5240 = vunpack.c.l.b16 %v4888
      %v5241 = vunpack.c.l.b16 %v4889
      %v5242 = vunpack.c.l.b16 %v4890
      %v5243 = vpack.c.b16 %v5196, %v5195
      %v5244 = vpack.c.b16 %v5198, %v5197
      %v5245 = vpack.c.b16 %v5200, %v5199
      %v5246 = vpack.c.b16 %v5202, %v5201
      %v5247 = vpack.c.b16 %v5204, %v5203
      %v5248 = vpack.c.b16 %v5206, %v5205
      %v5249 = vpack.c.b16 %v5208, %v5207
      %v5250 = vpack.c.b16 %v5210, %v5209
      %v5251 = vpack.c.b16 %v5212, %v5211
      %v5252 = vpack.c.b16 %v5214, %v5213
      %v5253 = vpack.c.b16 %v5216, %v5215
      %v5254 = vpack.c.b16 %v5218, %v5217
      %v5255 = vpack.c.b16 %v5220, %v5219
      %v5256 = vpack.c.b16 %v5222, %v5221
      %v5257 = vpack.c.b16 %v5224, %v5223
      %v5258 = vpack.c.b16 %v5226, %v5225
      %v5259 = vpack.c.b16 %v5228, %v5227
      %v5260 = vpack.c.b16 %v5230, %v5229
      %v5261 = vpack.c.b16 %v5232, %v5231
      %v5262 = vpack.c.b16 %v5234, %v5233
      %v5263 = vpack.c.b16 %v5236, %v5235
      %v5264 = vpack.c.b16 %v5238, %v5237
      %v5265 = vpack.c.b16 %v5240, %v5239
      %v5266 = vpack.c.b16 %v5242, %v5241
      %5291 = vmatpush.bf16.msra.mxu0 %v5250
      %5292 = vmatpush.bf16.msra.mxu0 %v5249
      %5293 = vmatpush.bf16.msra.mxu0 %v5248
      %5294 = vmatpush.bf16.msra.mxu0 %v5247
      %5295 = vmatpush.bf16.msra.mxu0 %v5246
      %5296 = vmatpush.bf16.msra.mxu0 %v5245
      %5297 = vmatpush.bf16.msra.mxu0 %v5244
      %5298 = vmatpush.bf16.msra.mxu0 %v5243
      %5299 = vmatmul.bf16.gmra.mxu0 %v5051
      %v5300 = vpop.f32.mrf.mxu0
      %v5301 = vadd.f32 0.0, %v5300
      %v5302 = vpop.f32.mrf.mxu0
      %v5303 = vadd.f32 0.0, %v5302
      %5304 = vmatmul.bf16.gmra.mxu0 %v5054
      %v5305 = vpop.f32.mrf.mxu0
      %v5306 = vadd.f32 0.0, %v5305
      %v5307 = vpop.f32.mrf.mxu0
      %v5308 = vadd.f32 0.0, %v5307
      %5309 = vmatmul.bf16.gmra.mxu0 %v5057
      %v5310 = vpop.f32.mrf.mxu0
      %v5311 = vadd.f32 0.0, %v5310
      %v5312 = vpop.f32.mrf.mxu0
      %v5313 = vadd.f32 0.0, %v5312
      %5314 = vmatmul.bf16.gmra.mxu0 %v5060
      %v5315 = vpop.f32.mrf.mxu0
      %v5316 = vadd.f32 0.0, %v5315
      %v5317 = vpop.f32.mrf.mxu0
      %v5318 = vadd.f32 0.0, %v5317
      %5319 = vmatmul.bf16.gmra.mxu0 %v5063
      %v5320 = vpop.f32.mrf.mxu0
      %v5321 = vadd.f32 0.0, %v5320
      %v5322 = vpop.f32.mrf.mxu0
      %v5323 = vadd.f32 0.0, %v5322
      %5324 = vmatmul.bf16.gmra.mxu0 %v5066
      %v5325 = vpop.f32.mrf.mxu0
      %v5326 = vadd.f32 0.0, %v5325
      %v5327 = vpop.f32.mrf.mxu0
      %v5328 = vadd.f32 0.0, %v5327
      %5329 = vmatmul.bf16.gmra.mxu0 %v5069
      %v5330 = vpop.f32.mrf.mxu0
      %v5331 = vadd.f32 0.0, %v5330
      %v5332 = vpop.f32.mrf.mxu0
      %v5333 = vadd.f32 0.0, %v5332
      %5334 = vmatmul.bf16.gmra.mxu0 %v5072
      %v5335 = vpop.f32.mrf.mxu0
      %v5336 = vadd.f32 0.0, %v5335
      %v5337 = vpop.f32.mrf.mxu0
      %v5338 = vadd.f32 0.0, %v5337
      %5339 = vmatmul.bf16.gmra.mxu0 %v5075
      %v5340 = vpop.f32.mrf.mxu0
      %v5341 = vadd.f32 0.0, %v5340
      %v5342 = vpop.f32.mrf.mxu0
      %v5343 = vadd.f32 0.0, %v5342
      %5344 = vmatmul.bf16.gmra.mxu0 %v5078
      %v5345 = vpop.f32.mrf.mxu0
      %v5346 = vadd.f32 0.0, %v5345
      %v5347 = vpop.f32.mrf.mxu0
      %v5348 = vadd.f32 0.0, %v5347
      %5349 = vmatmul.bf16.gmra.mxu0 %v5081
      %v5350 = vpop.f32.mrf.mxu0
      %v5351 = vadd.f32 0.0, %v5350
      %v5352 = vpop.f32.mrf.mxu0
      %v5353 = vadd.f32 0.0, %v5352
      %5354 = vmatmul.bf16.gmra.mxu0 %v5084
      %v5355 = vpop.f32.mrf.mxu0
      %v5356 = vadd.f32 0.0, %v5355
      %v5357 = vpop.f32.mrf.mxu0
      %v5358 = vadd.f32 0.0, %v5357
      %5359 = vmatmul.bf16.gmra.mxu0 %v5087
      %v5360 = vpop.f32.mrf.mxu0
      %v5361 = vadd.f32 0.0, %v5360
      %v5362 = vpop.f32.mrf.mxu0
      %v5363 = vadd.f32 0.0, %v5362
      %5364 = vmatmul.bf16.gmra.mxu0 %v5090
      %v5365 = vpop.f32.mrf.mxu0
      %v5366 = vadd.f32 0.0, %v5365
      %v5367 = vpop.f32.mrf.mxu0
      %v5368 = vadd.f32 0.0, %v5367
      %5369 = vmatmul.bf16.gmra.mxu0 %v5093
      %v5370 = vpop.f32.mrf.mxu0
      %v5371 = vadd.f32 0.0, %v5370
      %v5372 = vpop.f32.mrf.mxu0
      %v5373 = vadd.f32 0.0, %v5372
      %5374 = vmatmul.bf16.gmra.mxu0 %v5096
      %v5375 = vpop.f32.mrf.mxu0
      %v5376 = vadd.f32 0.0, %v5375
      %v5377 = vpop.f32.mrf.mxu0
      %v5378 = vadd.f32 0.0, %v5377
      %5379 = vdwg.mxu0
      %5380 = vmatpush.bf16.msra.mxu0 %v5258
      %5381 = vmatpush.bf16.msra.mxu0 %v5257
      %5382 = vmatpush.bf16.msra.mxu0 %v5256
      %5383 = vmatpush.bf16.msra.mxu0 %v5255
      %5384 = vmatpush.bf16.msra.mxu0 %v5254
      %5385 = vmatpush.bf16.msra.mxu0 %v5253
      %5386 = vmatpush.bf16.msra.mxu0 %v5252
      %5387 = vmatpush.bf16.msra.mxu0 %v5251
      %5388 = vmatmul.bf16.gmra.mxu0 %v5052
      %v5389 = vpop.f32.mrf.mxu0
      %v5390 = vadd.f32 %v5301, %v5389
      %v5391 = vpop.f32.mrf.mxu0
      %v5392 = vadd.f32 %v5303, %v5391
      %5393 = vmatmul.bf16.gmra.mxu0 %v5055
      %v5394 = vpop.f32.mrf.mxu0
      %v5395 = vadd.f32 %v5306, %v5394
      %v5396 = vpop.f32.mrf.mxu0
      %v5397 = vadd.f32 %v5308, %v5396
      %5398 = vmatmul.bf16.gmra.mxu0 %v5058
      %v5399 = vpop.f32.mrf.mxu0
      %v5400 = vadd.f32 %v5311, %v5399
      %v5401 = vpop.f32.mrf.mxu0
      %v5402 = vadd.f32 %v5313, %v5401
      %5403 = vmatmul.bf16.gmra.mxu0 %v5061
      %v5404 = vpop.f32.mrf.mxu0
      %v5405 = vadd.f32 %v5316, %v5404
      %v5406 = vpop.f32.mrf.mxu0
      %v5407 = vadd.f32 %v5318, %v5406
      %5408 = vmatmul.bf16.gmra.mxu0 %v5064
      %v5409 = vpop.f32.mrf.mxu0
      %v5410 = vadd.f32 %v5321, %v5409
      %v5411 = vpop.f32.mrf.mxu0
      %v5412 = vadd.f32 %v5323, %v5411
      %5413 = vmatmul.bf16.gmra.mxu0 %v5067
      %v5414 = vpop.f32.mrf.mxu0
      %v5415 = vadd.f32 %v5326, %v5414
      %v5416 = vpop.f32.mrf.mxu0
      %v5417 = vadd.f32 %v5328, %v5416
      %5418 = vmatmul.bf16.gmra.mxu0 %v5070
      %v5419 = vpop.f32.mrf.mxu0
      %v5420 = vadd.f32 %v5331, %v5419
      %v5421 = vpop.f32.mrf.mxu0
      %v5422 = vadd.f32 %v5333, %v5421
      %5423 = vmatmul.bf16.gmra.mxu0 %v5073
      %v5424 = vpop.f32.mrf.mxu0
      %v5425 = vadd.f32 %v5336, %v5424
      %v5426 = vpop.f32.mrf.mxu0
      %v5427 = vadd.f32 %v5338, %v5426
      %5428 = vmatmul.bf16.gmra.mxu0 %v5076
      %v5429 = vpop.f32.mrf.mxu0
      %v5430 = vadd.f32 %v5341, %v5429
      %v5431 = vpop.f32.mrf.mxu0
      %v5432 = vadd.f32 %v5343, %v5431
      %5433 = vmatmul.bf16.gmra.mxu0 %v5079
      %v5434 = vpop.f32.mrf.mxu0
      %v5435 = vadd.f32 %v5346, %v5434
      %v5436 = vpop.f32.mrf.mxu0
      %v5437 = vadd.f32 %v5348, %v5436
      %5438 = vmatmul.bf16.gmra.mxu0 %v5082
      %v5439 = vpop.f32.mrf.mxu0
      %v5440 = vadd.f32 %v5351, %v5439
      %v5441 = vpop.f32.mrf.mxu0
      %v5442 = vadd.f32 %v5353, %v5441
      %5443 = vmatmul.bf16.gmra.mxu0 %v5085
      %v5444 = vpop.f32.mrf.mxu0
      %v5445 = vadd.f32 %v5356, %v5444
      %v5446 = vpop.f32.mrf.mxu0
      %v5447 = vadd.f32 %v5358, %v5446
      %5448 = vmatmul.bf16.gmra.mxu0 %v5088
      %v5449 = vpop.f32.mrf.mxu0
      %v5450 = vadd.f32 %v5361, %v5449
      %v5451 = vpop.f32.mrf.mxu0
      %v5452 = vadd.f32 %v5363, %v5451
      %5453 = vmatmul.bf16.gmra.mxu0 %v5091
      %v5454 = vpop.f32.mrf.mxu0
      %v5455 = vadd.f32 %v5366, %v5454
      %v5456 = vpop.f32.mrf.mxu0
      %v5457 = vadd.f32 %v5368, %v5456
      %5458 = vmatmul.bf16.gmra.mxu0 %v5094
      %v5459 = vpop.f32.mrf.mxu0
      %v5460 = vadd.f32 %v5371, %v5459
      %v5461 = vpop.f32.mrf.mxu0
      %v5462 = vadd.f32 %v5373, %v5461
      %5463 = vmatmul.bf16.gmra.mxu0 %v5097
      %v5464 = vpop.f32.mrf.mxu0
      %v5465 = vadd.f32 %v5376, %v5464
      %v5466 = vpop.f32.mrf.mxu0
      %v5467 = vadd.f32 %v5378, %v5466
      %5468 = vdwg.mxu0
      %5469 = vmatpush.bf16.msra.mxu0 %v5266
      %5470 = vmatpush.bf16.msra.mxu0 %v5265
      %5471 = vmatpush.bf16.msra.mxu0 %v5264
      %5472 = vmatpush.bf16.msra.mxu0 %v5263
      %5473 = vmatpush.bf16.msra.mxu0 %v5262
      %5474 = vmatpush.bf16.msra.mxu0 %v5261
      %5475 = vmatpush.bf16.msra.mxu0 %v5260
      %5476 = vmatpush.bf16.msra.mxu0 %v5259
      %5477 = vmatmul.bf16.gmra.mxu0 %v5053
      %v5478 = vpop.f32.mrf.mxu0
      %v5479 = vadd.f32 %v5390, %v5478
      %v5480 = vpop.f32.mrf.mxu0
      %v5481 = vadd.f32 %v5392, %v5480
      %5482 = vmatmul.bf16.gmra.mxu0 %v5056
      %v5483 = vpop.f32.mrf.mxu0
      %v5484 = vadd.f32 %v5395, %v5483
      %v5485 = vpop.f32.mrf.mxu0
      %v5486 = vadd.f32 %v5397, %v5485
      %5487 = vmatmul.bf16.gmra.mxu0 %v5059
      %v5488 = vpop.f32.mrf.mxu0
      %v5489 = vadd.f32 %v5400, %v5488
      %v5490 = vpop.f32.mrf.mxu0
      %v5491 = vadd.f32 %v5402, %v5490
      %5492 = vmatmul.bf16.gmra.mxu0 %v5062
      %v5493 = vpop.f32.mrf.mxu0
      %v5494 = vadd.f32 %v5405, %v5493
      %v5495 = vpop.f32.mrf.mxu0
      %v5496 = vadd.f32 %v5407, %v5495
      %5497 = vmatmul.bf16.gmra.mxu0 %v5065
      %v5498 = vpop.f32.mrf.mxu0
      %v5499 = vadd.f32 %v5410, %v5498
      %v5500 = vpop.f32.mrf.mxu0
      %v5501 = vadd.f32 %v5412, %v5500
      %5502 = vmatmul.bf16.gmra.mxu0 %v5068
      %v5503 = vpop.f32.mrf.mxu0
      %v5504 = vadd.f32 %v5415, %v5503
      %v5505 = vpop.f32.mrf.mxu0
      %v5506 = vadd.f32 %v5417, %v5505
      %5507 = vmatmul.bf16.gmra.mxu0 %v5071
      %v5508 = vpop.f32.mrf.mxu0
      %v5509 = vadd.f32 %v5420, %v5508
      %v5510 = vpop.f32.mrf.mxu0
      %v5511 = vadd.f32 %v5422, %v5510
      %5512 = vmatmul.bf16.gmra.mxu0 %v5074
      %v5513 = vpop.f32.mrf.mxu0
      %v5514 = vadd.f32 %v5425, %v5513
      %v5515 = vpop.f32.mrf.mxu0
      %v5516 = vadd.f32 %v5427, %v5515
      %5517 = vmatmul.bf16.gmra.mxu0 %v5077
      %v5518 = vpop.f32.mrf.mxu0
      %v5519 = vadd.f32 %v5430, %v5518
      %v5520 = vpop.f32.mrf.mxu0
      %v5521 = vadd.f32 %v5432, %v5520
      %5522 = vmatmul.bf16.gmra.mxu0 %v5080
      %v5523 = vpop.f32.mrf.mxu0
      %v5524 = vadd.f32 %v5435, %v5523
      %v5525 = vpop.f32.mrf.mxu0
      %v5526 = vadd.f32 %v5437, %v5525
      %5527 = vmatmul.bf16.gmra.mxu0 %v5083
      %v5528 = vpop.f32.mrf.mxu0
      %v5529 = vadd.f32 %v5440, %v5528
      %v5530 = vpop.f32.mrf.mxu0
      %v5531 = vadd.f32 %v5442, %v5530
      %5532 = vmatmul.bf16.gmra.mxu0 %v5086
      %v5533 = vpop.f32.mrf.mxu0
      %v5534 = vadd.f32 %v5445, %v5533
      %v5535 = vpop.f32.mrf.mxu0
      %v5536 = vadd.f32 %v5447, %v5535
      %5537 = vmatmul.bf16.gmra.mxu0 %v5089
      %v5538 = vpop.f32.mrf.mxu0
      %v5539 = vadd.f32 %v5450, %v5538
      %v5540 = vpop.f32.mrf.mxu0
      %v5541 = vadd.f32 %v5452, %v5540
      %5542 = vmatmul.bf16.gmra.mxu0 %v5092
      %v5543 = vpop.f32.mrf.mxu0
      %v5544 = vadd.f32 %v5455, %v5543
      %v5545 = vpop.f32.mrf.mxu0
      %v5546 = vadd.f32 %v5457, %v5545
      %5547 = vmatmul.bf16.gmra.mxu0 %v5095
      %v5548 = vpop.f32.mrf.mxu0
      %v5549 = vadd.f32 %v5460, %v5548
      %v5550 = vpop.f32.mrf.mxu0
      %v5551 = vadd.f32 %v5462, %v5550
      %5552 = vmatmul.bf16.gmra.mxu0 %v5098
      %v5553 = vpop.f32.mrf.mxu0
      %v5554 = vadd.f32 %v5465, %v5553
      %v5555 = vpop.f32.mrf.mxu0
      %v5556 = vadd.f32 %v5467, %v5555
      %5557 = vdwg.mxu0
      %v5558 = vadd.f32 %v4699, %v5479
      %v5559 = vadd.f32 %v4701, %v5481
      %v5560 = vadd.f32 %v4704, %v5484
      %v5561 = vadd.f32 %v4706, %v5486
      %v5562 = vadd.f32 %v4709, %v5489
      %v5563 = vadd.f32 %v4711, %v5491
      %v5564 = vadd.f32 %v4714, %v5494
      %v5565 = vadd.f32 %v4716, %v5496
      %v5566 = vadd.f32 %v4719, %v5499
      %v5567 = vadd.f32 %v4721, %v5501
      %v5568 = vadd.f32 %v4724, %v5504
      %v5569 = vadd.f32 %v4726, %v5506
      %v5570 = vadd.f32 %v4729, %v5509
      %v5571 = vadd.f32 %v4731, %v5511
      %v5572 = vadd.f32 %v4734, %v5514
      %v5573 = vadd.f32 %v4736, %v5516
      %v5574 = vadd.f32 %v4739, %v5519
      %v5575 = vadd.f32 %v4741, %v5521
      %v5576 = vadd.f32 %v4744, %v5524
      %v5577 = vadd.f32 %v4746, %v5526
      %v5578 = vadd.f32 %v4749, %v5529
      %v5579 = vadd.f32 %v4751, %v5531
      %v5580 = vadd.f32 %v4754, %v5534
      %v5581 = vadd.f32 %v4756, %v5536
      %v5582 = vadd.f32 %v4759, %v5539
      %v5583 = vadd.f32 %v4761, %v5541
      %v5584 = vadd.f32 %v4764, %v5544
      %v5585 = vadd.f32 %v4766, %v5546
      %v5586 = vadd.f32 %v4769, %v5549
      %v5587 = vadd.f32 %v4771, %v5551
      %v5588 = vadd.f32 %v4774, %v5554
      %v5589 = vadd.f32 %v4776, %v5556
      %v5590 = vadd.f32 %v5558, %v5559
      %v5591 = vadd.f32 %v5590, %v5560
      %v5592 = vadd.f32 %v5591, %v5561
      %v5593 = vadd.f32 %v5592, %v5562
      %v5594 = vadd.f32 %v5593, %v5563
      %v5595 = vadd.f32 %v5594, %v5564
      %v5596 = vadd.f32 %v5595, %v5565
      %v5597 = vadd.f32 %v5596, %v5566
      %v5598 = vadd.f32 %v5597, %v5567
      %v5599 = vadd.f32 %v5598, %v5568
      %v5600 = vadd.f32 %v5599, %v5569
      %v5601 = vadd.f32 %v5600, %v5570
      %v5602 = vadd.f32 %v5601, %v5571
      %v5603 = vadd.f32 %v5602, %v5572
      %v5604 = vadd.f32 %v5603, %v5573
      %v5605 = vadd.f32 %v5604, %v5574
      %v5606 = vadd.f32 %v5605, %v5575
      %v5607 = vadd.f32 %v5606, %v5576
      %v5608 = vadd.f32 %v5607, %v5577
      %v5609 = vadd.f32 %v5608, %v5578
      %v5610 = vadd.f32 %v5609, %v5579
      %v5611 = vadd.f32 %v5610, %v5580
      %v5612 = vadd.f32 %v5611, %v5581
      %v5613 = vadd.f32 %v5612, %v5582
      %v5614 = vadd.f32 %v5613, %v5583
      %v5615 = vadd.f32 %v5614, %v5584
      %v5616 = vadd.f32 %v5615, %v5585
      %v5617 = vadd.f32 %v5616, %v5586
      %v5618 = vadd.f32 %v5617, %v5587
      %v5619 = vadd.f32 %v5618, %v5588
      %v5620 = vadd.f32 %v5619, %v5589
      %v5621 = vrot.slane %v5620, 4
      %v5622 = vadd.f32 %v5620, %v5621
      %v5623 = vrot.slane %v5622, 2
      %v5624 = vadd.f32 %v5622, %v5623
      %v5625 = vrot.slane %v5624, 1
      %v5626 = vadd.f32 %v5624, %v5625
      %v5627 = vmul.f32 %v5626, 0.00390625
      %v5628 = vmul.f32 %v5558, %v5558
      %v5629 = vmul.f32 %v5559, %v5559
      %v5630 = vmul.f32 %v5560, %v5560
      %v5631 = vmul.f32 %v5561, %v5561
      %v5632 = vmul.f32 %v5562, %v5562
      %v5633 = vmul.f32 %v5563, %v5563
      %v5634 = vmul.f32 %v5564, %v5564
      %v5635 = vmul.f32 %v5565, %v5565
      %v5636 = vmul.f32 %v5566, %v5566
      %v5637 = vmul.f32 %v5567, %v5567
      %v5638 = vmul.f32 %v5568, %v5568
      %v5639 = vmul.f32 %v5569, %v5569
      %v5640 = vmul.f32 %v5570, %v5570
      %v5641 = vmul.f32 %v5571, %v5571
      %v5642 = vmul.f32 %v5572, %v5572
      %v5643 = vmul.f32 %v5573, %v5573
      %v5644 = vmul.f32 %v5574, %v5574
      %v5645 = vmul.f32 %v5575, %v5575
      %v5646 = vmul.f32 %v5576, %v5576
      %v5647 = vmul.f32 %v5577, %v5577
      %v5648 = vmul.f32 %v5578, %v5578
      %v5649 = vmul.f32 %v5579, %v5579
      %v5650 = vmul.f32 %v5580, %v5580
      %v5651 = vmul.f32 %v5581, %v5581
      %v5652 = vmul.f32 %v5582, %v5582
      %v5653 = vmul.f32 %v5583, %v5583
      %v5654 = vmul.f32 %v5584, %v5584
      %v5655 = vmul.f32 %v5585, %v5585
      %v5656 = vmul.f32 %v5586, %v5586
      %v5657 = vmul.f32 %v5587, %v5587
      %v5658 = vmul.f32 %v5588, %v5588
      %v5659 = vmul.f32 %v5589, %v5589
      %v5660 = vadd.f32 %v5628, %v5629
      %v5661 = vadd.f32 %v5660, %v5630
      %v5662 = vadd.f32 %v5661, %v5631
      %v5663 = vadd.f32 %v5662, %v5632
      %v5664 = vadd.f32 %v5663, %v5633
      %v5665 = vadd.f32 %v5664, %v5634
      %v5666 = vadd.f32 %v5665, %v5635
      %v5667 = vadd.f32 %v5666, %v5636
      %v5668 = vadd.f32 %v5667, %v5637
      %v5669 = vadd.f32 %v5668, %v5638
      %v5670 = vadd.f32 %v5669, %v5639
      %v5671 = vadd.f32 %v5670, %v5640
      %v5672 = vadd.f32 %v5671, %v5641
      %v5673 = vadd.f32 %v5672, %v5642
      %v5674 = vadd.f32 %v5673, %v5643
      %v5675 = vadd.f32 %v5674, %v5644
      %v5676 = vadd.f32 %v5675, %v5645
      %v5677 = vadd.f32 %v5676, %v5646
      %v5678 = vadd.f32 %v5677, %v5647
      %v5679 = vadd.f32 %v5678, %v5648
      %v5680 = vadd.f32 %v5679, %v5649
      %v5681 = vadd.f32 %v5680, %v5650
      %v5682 = vadd.f32 %v5681, %v5651
      %v5683 = vadd.f32 %v5682, %v5652
      %v5684 = vadd.f32 %v5683, %v5653
      %v5685 = vadd.f32 %v5684, %v5654
      %v5686 = vadd.f32 %v5685, %v5655
      %v5687 = vadd.f32 %v5686, %v5656
      %v5688 = vadd.f32 %v5687, %v5657
      %v5689 = vadd.f32 %v5688, %v5658
      %v5690 = vadd.f32 %v5689, %v5659
      %v5691 = vrot.slane %v5690, 4
      %v5692 = vadd.f32 %v5690, %v5691
      %v5693 = vrot.slane %v5692, 2
      %v5694 = vadd.f32 %v5692, %v5693
      %v5695 = vrot.slane %v5694, 1
      %v5696 = vadd.f32 %v5694, %v5695
      %v5697 = vmul.f32 %v5696, 0.00390625
      %v5698 = vmul.f32 %v5627, %v5627
      %v5699 = vsub.f32 %v5697, %v5698
      %v5700 = vmax.f32 %v5699, 0.0
      %v5701 = vadd.f32 %v5700, 1e-05
      %v5702 = vrsqrt.pop %v5701
      %v5703 = vmul.f32 %v5702, %v5701
      %v5704 = vmul.f32 %v5703, %v5702
      %v5705 = vmul.f32 0.5, %v5704
      %v5706 = vsub.f32 1.5, %v5705
      %v5707 = vmul.f32 %v5702, %v5706
      %vm5708 = vweird.f32 %v5701
      %vm5709 = vweird.f32 %v5702
      %vm5710 = vmor %vm5708, %vm5709
      %v5711 = vsel %vm5710, %v5702, %v5707
      %s5712 = scalar_lea.vmem %s165, 24
      %v5713 = vld [vmem:[%s5712 + $0x1] sm:$0xff]
      %v5714 = vld [vmem:[%s5712 + $0x9] sm:$0xff]
      %v5715 = vld [vmem:[%s5712 + $0x19] sm:$0xff]
      %v5716 = vld [vmem:[%s5712 + $0x21] sm:$0xff]
      %v5717 = vld [vmem:[%s5712 + $0x31] sm:$0xff]
      %v5718 = vld [vmem:[%s5712 + $0x39] sm:$0xff]
      %v5719 = vld [vmem:[%s5712 + $0x49] sm:$0xff]
      %v5720 = vld [vmem:[%s5712 + $0x51] sm:$0xff]
      %v5721 = vld [vmem:[%s5712 + $0x61] sm:$0xff]
      %v5722 = vld [vmem:[%s5712 + $0x69] sm:$0xff]
      %v5723 = vld [vmem:[%s5712 + $0x79] sm:$0xff]
      %v5724 = vld [vmem:[%s5712 + $0x81] sm:$0xff]
      %v5725 = vld [vmem:[%s5712 + $0x91] sm:$0xff]
      %v5726 = vld [vmem:[%s5712 + $0x99] sm:$0xff]
      %v5727 = vld [vmem:[%s5712 + $0xa9] sm:$0xff]
      %v5728 = vld [vmem:[%s5712 + $0xb1] sm:$0xff]
      %v5729 = vld [vmem:[%s5712 + $0xc1] sm:$0xff]
      %v5730 = vld [vmem:[%s5712 + $0xc9] sm:$0xff]
      %v5731 = vld [vmem:[%s5712 + $0xd9] sm:$0xff]
      %v5732 = vld [vmem:[%s5712 + $0xe1] sm:$0xff]
      %v5733 = vld [vmem:[%s5712 + $0xf1] sm:$0xff]
      %v5734 = vld [vmem:[%s5712 + $0xf9] sm:$0xff]
      %v5735 = vld [vmem:[%s5712 + $0x109] sm:$0xff]
      %v5736 = vld [vmem:[%s5712 + $0x111] sm:$0xff]
      %v5737 = vld [vmem:[%s5712 + $0x121] sm:$0xff]
      %v5738 = vld [vmem:[%s5712 + $0x129] sm:$0xff]
      %v5739 = vld [vmem:[%s5712 + $0x139] sm:$0xff]
      %v5740 = vld [vmem:[%s5712 + $0x141] sm:$0xff]
      %v5741 = vld [vmem:[%s5712 + $0x151] sm:$0xff]
      %v5742 = vld [vmem:[%s5712 + $0x159] sm:$0xff]
      %v5743 = vld [vmem:[%s5712 + $0x169] sm:$0xff]
      %v5744 = vld [vmem:[%s5712 + $0x171] sm:$0xff]
      %v5745 = vsub.f32 %v5558, %v5627
      %v5746 = vsub.f32 %v5559, %v5627
      %v5747 = vsub.f32 %v5560, %v5627
      %v5748 = vsub.f32 %v5561, %v5627
      %v5749 = vsub.f32 %v5562, %v5627
      %v5750 = vsub.f32 %v5563, %v5627
      %v5751 = vsub.f32 %v5564, %v5627
      %v5752 = vsub.f32 %v5565, %v5627
      %v5753 = vsub.f32 %v5566, %v5627
      %v5754 = vsub.f32 %v5567, %v5627
      %v5755 = vsub.f32 %v5568, %v5627
      %v5756 = vsub.f32 %v5569, %v5627
      %v5757 = vsub.f32 %v5570, %v5627
      %v5758 = vsub.f32 %v5571, %v5627
      %v5759 = vsub.f32 %v5572, %v5627
      %v5760 = vsub.f32 %v5573, %v5627
      %v5761 = vsub.f32 %v5574, %v5627
      %v5762 = vsub.f32 %v5575, %v5627
      %v5763 = vsub.f32 %v5576, %v5627
      %v5764 = vsub.f32 %v5577, %v5627
      %v5765 = vsub.f32 %v5578, %v5627
      %v5766 = vsub.f32 %v5579, %v5627
      %v5767 = vsub.f32 %v5580, %v5627
      %v5768 = vsub.f32 %v5581, %v5627
      %v5769 = vsub.f32 %v5582, %v5627
      %v5770 = vsub.f32 %v5583, %v5627
      %v5771 = vsub.f32 %v5584, %v5627
      %v5772 = vsub.f32 %v5585, %v5627
      %v5773 = vsub.f32 %v5586, %v5627
      %v5774 = vsub.f32 %v5587, %v5627
      %v5775 = vsub.f32 %v5588, %v5627
      %v5776 = vsub.f32 %v5589, %v5627
      %v5777 = vmul.f32 %v5745, %v5711
      %v5778 = vmul.f32 %v5746, %v5711
      %v5779 = vmul.f32 %v5747, %v5711
      %v5780 = vmul.f32 %v5748, %v5711
      %v5781 = vmul.f32 %v5749, %v5711
      %v5782 = vmul.f32 %v5750, %v5711
      %v5783 = vmul.f32 %v5751, %v5711
      %v5784 = vmul.f32 %v5752, %v5711
      %v5785 = vmul.f32 %v5753, %v5711
      %v5786 = vmul.f32 %v5754, %v5711
      %v5787 = vmul.f32 %v5755, %v5711
      %v5788 = vmul.f32 %v5756, %v5711
      %v5789 = vmul.f32 %v5757, %v5711
      %v5790 = vmul.f32 %v5758, %v5711
      %v5791 = vmul.f32 %v5759, %v5711
      %v5792 = vmul.f32 %v5760, %v5711
      %v5793 = vmul.f32 %v5761, %v5711
      %v5794 = vmul.f32 %v5762, %v5711
      %v5795 = vmul.f32 %v5763, %v5711
      %v5796 = vmul.f32 %v5764, %v5711
      %v5797 = vmul.f32 %v5765, %v5711
      %v5798 = vmul.f32 %v5766, %v5711
      %v5799 = vmul.f32 %v5767, %v5711
      %v5800 = vmul.f32 %v5768, %v5711
      %v5801 = vmul.f32 %v5769, %v5711
      %v5802 = vmul.f32 %v5770, %v5711
      %v5803 = vmul.f32 %v5771, %v5711
      %v5804 = vmul.f32 %v5772, %v5711
      %v5805 = vmul.f32 %v5773, %v5711
      %v5806 = vmul.f32 %v5774, %v5711
      %v5807 = vmul.f32 %v5775, %v5711
      %v5808 = vmul.f32 %v5776, %v5711
      %v5809 = vadd.f32 %v5713, %v5777
      %v5810 = vadd.f32 %v5714, %v5778
      %v5811 = vadd.f32 %v5715, %v5779
      %v5812 = vadd.f32 %v5716, %v5780
      %v5813 = vadd.f32 %v5717, %v5781
      %v5814 = vadd.f32 %v5718, %v5782
      %v5815 = vadd.f32 %v5719, %v5783
      %v5816 = vadd.f32 %v5720, %v5784
      %v5817 = vadd.f32 %v5721, %v5785
      %v5818 = vadd.f32 %v5722, %v5786
      %v5819 = vadd.f32 %v5723, %v5787
      %v5820 = vadd.f32 %v5724, %v5788
      %v5821 = vadd.f32 %v5725, %v5789
      %v5822 = vadd.f32 %v5726, %v5790
      %v5823 = vadd.f32 %v5727, %v5791
      %v5824 = vadd.f32 %v5728, %v5792
      %v5825 = vadd.f32 %v5729, %v5793
      %v5826 = vadd.f32 %v5730, %v5794
      %v5827 = vadd.f32 %v5731, %v5795
      %v5828 = vadd.f32 %v5732, %v5796
      %v5829 = vadd.f32 %v5733, %v5797
      %v5830 = vadd.f32 %v5734, %v5798
      %v5831 = vadd.f32 %v5735, %v5799
      %v5832 = vadd.f32 %v5736, %v5800
      %v5833 = vadd.f32 %v5737, %v5801
      %v5834 = vadd.f32 %v5738, %v5802
      %v5835 = vadd.f32 %v5739, %v5803
      %v5836 = vadd.f32 %v5740, %v5804
      %v5837 = vadd.f32 %v5741, %v5805
      %v5838 = vadd.f32 %v5742, %v5806
      %v5839 = vadd.f32 %v5743, %v5807
      %v5840 = vadd.f32 %v5744, %v5808
      %5841 = vst [vmem:[%s170] sm:$0xff] %v5809
      %5842 = vst [vmem:[%s170 + $0x8] sm:$0xff] %v5810
      %5843 = vst [vmem:[%s170 + $0x10] sm:$0xff] %v5811
      %5844 = vst [vmem:[%s170 + $0x18] sm:$0xff] %v5812
      %5845 = vst [vmem:[%s170 + $0x20] sm:$0xff] %v5813
      %5846 = vst [vmem:[%s170 + $0x28] sm:$0xff] %v5814
      %5847 = vst [vmem:[%s170 + $0x30] sm:$0xff] %v5815
      %5848 = vst [vmem:[%s170 + $0x38] sm:$0xff] %v5816
      %5849 = vst [vmem:[%s170 + $0x40] sm:$0xff] %v5817
      %5850 = vst [vmem:[%s170 + $0x48] sm:$0xff] %v5818
      %5851 = vst [vmem:[%s170 + $0x50] sm:$0xff] %v5819
      %5852 = vst [vmem:[%s170 + $0x58] sm:$0xff] %v5820
      %5853 = vst [vmem:[%s170 + $0x60] sm:$0xff] %v5821
      %5854 = vst [vmem:[%s170 + $0x68] sm:$0xff] %v5822
      %5855 = vst [vmem:[%s170 + $0x70] sm:$0xff] %v5823
      %5856 = vst [vmem:[%s170 + $0x78] sm:$0xff] %v5824
      %5857 = vst [vmem:[%s170 + $0x80] sm:$0xff] %v5825
      %5858 = vst [vmem:[%s170 + $0x88] sm:$0xff] %v5826
      %5859 = vst [vmem:[%s170 + $0x90] sm:$0xff] %v5827
      %5860 = vst [vmem:[%s170 + $0x98] sm:$0xff] %v5828
      %5861 = vst [vmem:[%s170 + $0xa0] sm:$0xff] %v5829
      %5862 = vst [vmem:[%s170 + $0xa8] sm:$0xff] %v5830
      %5863 = vst [vmem:[%s170 + $0xb0] sm:$0xff] %v5831
      %5864 = vst [vmem:[%s170 + $0xb8] sm:$0xff] %v5832
      %5865 = vst [vmem:[%s170 + $0xc0] sm:$0xff] %v5833
      %5866 = vst [vmem:[%s170 + $0xc8] sm:$0xff] %v5834
      %5867 = vst [vmem:[%s170 + $0xd0] sm:$0xff] %v5835
      %5868 = vst [vmem:[%s170 + $0xd8] sm:$0xff] %v5836
      %5869 = vst [vmem:[%s170 + $0xe0] sm:$0xff] %v5837
      %5870 = vst [vmem:[%s170 + $0xe8] sm:$0xff] %v5838
      %5871 = vst [vmem:[%s170 + $0xf0] sm:$0xff] %v5839
      %5872 = vst [vmem:[%s170 + $0xf8] sm:$0xff] %v5840
      %p5873 = scmp.lt.s32.totalorder %s14, 1
      %s5874 = scalar_select %p5873, %s14, 1
      %s5875 = smul.addr %s5874, 32
      %s5876 = smul.addr %s5875, 8
      %s5877 = scalar_lea.vmem %s3, %s5876
      // Predicated region
      $region33: #{resnet_block_forward.1} parent=31 // pred_check
        %p5878 = pneg %p100
      $region34: #{resnet_block_forward.1} parent=31 // pred_check_branch
        %5880 = sbr.rel (%p5878) target = $region36
      $region35: #{resnet_block_forward.1} parent=31 // pred_region
        _
      $region36: #{resnet_block_forward.1} parent=31 // pred_fallthru
        _
    $region32: #{resnet_block_forward.1} parent=5 // pred_fallthru
      _
    %p5881 = scmp.le.s32.totalorder 2, %s9
    // Predicated region
    $region37: #{resnet_block_forward.1} parent=5 // pred_check
      %p5882 = pneg %p5881
    $region38: #{resnet_block_forward.1} parent=5 // pred_check_branch
      %5884 = sbr.rel (%p5882) target = $region40
    $region39: #{resnet_block_forward.1} parent=5 // pred_region
      %s5885 = ssub.s32 %s9, 2
      // Predicated region
      $region41: #{resnet_block_forward.1} parent=39 // pred_check
        %p5886 = pneg %p106
      $region42: #{resnet_block_forward.1} parent=39 // pred_check_branch
        %5888 = sbr.rel (%p5886) target = $region44
      $region43: #{resnet_block_forward.1} parent=39 // pred_region
        %p5889 = scmp.lt.s32.totalorder %s15, 1
        %s5890 = scalar_select %p5889, %s15, 1
        %s5891 = smul.addr %s5890, 32
        %s5892 = smul.addr %s5891, 8
        %s5893 = scalar_lea.vmem %s3, %s5892
      $region44: #{resnet_block_forward.1} parent=39 // pred_fallthru
        _
    $region40: #{resnet_block_forward.1} parent=5 // pred_fallthru
      _
  $region6: #{resnet_block_forward.1} parent=0 // loop_footer
    %s13 = sadd.s32 1, %s9
  $region7: #{resnet_block_forward.1} parent=0 // loop_footer_branch
    %8 = sbr.rel target = $region3
  $region8: #{resnet_block_forward.1} parent=0 // loop_exit
    _

</llo_original>
